<compile_context>
chip_gen: v5e
topology: v5e:2x2
jax: 0.10.0
libtpu: 0.0.40
codegen_flags: <defaults>
</compile_context>

<pallas_src>
import functools

import jax
import jax.numpy as jnp
from jax.experimental import pallas as pl
from jax.experimental.pallas import tpu as pltpu

EPS = 1e-5                      # BatchNorm2d default eps
_GELU_C = 0.7978845608028654    # sqrt(2/pi)


def _round_up(x, m):
    return (x + m - 1) // m * m


def _const_map(nd):
    # index_map for full (untiled) parameter tensors
    return lambda b: (0,) * nd


def encoder_kernel(x_ref,
                   s1_ref, t1_ref,            # BatchNorm #1 folded affine: scale, shift (1, Cp)
                   wqkv_ref, bqkv_ref,        # fused QKV: (Cp, 3Cp) bf16, (1, 3Cp) f32
                   wo3_ref, bo_ref,           # per-head output proj: (Bt*nh, hdp, Cp) bf16, (1, Cp)
                   s2_ref, t2_ref,            # BatchNorm #2 folded affine
                   w1_ref, c1_ref,            # FFN up:   (Cp, Hp) bf16, (1, Hp)
                   w2_ref, c2_ref,            # FFN down: (Hp, Cp) bf16, (1, Cp)
                   o_ref,
                   *, num_heads, batch_tile, seq_len, head_dim_p):
    bf16 = jnp.bfloat16
    cp = x_ref.shape[-1]

    x = x_ref[...]                                # (Bt*S, Cp) f32 tokens
    resid1 = x

    # ---- BatchNorm #1 (pre-folded affine) ----
    xn = x * s1_ref[...] + t1_ref[...]

    # ---- fused QKV projection (one MXU matmul, bf16 operands, f32 accumulation) ----
    qkv = jnp.dot(xn.astype(bf16), wqkv_ref[...],
                  preferred_element_type=jnp.float32) + bqkv_ref[...]
    q = qkv[:, 0 * cp:1 * cp].astype(bf16)
    k = qkv[:, 1 * cp:2 * cp].astype(bf16)
    v = qkv[:, 2 * cp:3 * cp].astype(bf16)

    def head_stack(t):
        # (Bt*S, Cp) -> (Bt*num_heads, S, hdp); head h lives in cols [h*hdp, (h+1)*hdp)
        parts = []
        for b in range(batch_tile):
            rows = t[b * seq_len:(b + 1) * seq_len, :]
            for h in range(num_heads):
                parts.append(rows[:, h * head_dim_p:(h + 1) * head_dim_p])
        return jnp.stack(parts, axis=0)

    qh = head_stack(q)
    kh = head_stack(k)
    vh = head_stack(v)

    # ---- batched attention over (batch_tile * num_heads) ----
    # 1/sqrt(hd) is already folded into wq/bq; padded per-head channels are zero -> no effect.
    s = jnp.einsum("bqd,bkd->bqk", qh, kh, preferred_element_type=jnp.float32)
    s = s - jnp.max(s, axis=-1, keepdims=True)
    p = jnp.exp(s)
    p = p * pl.reciprocal(jnp.sum(p, axis=-1, keepdims=True), approx=True)
    ctx = jnp.einsum("bqk,bkd->bqd", p.astype(bf16), vh,
                     preferred_element_type=jnp.float32)          # (Bt*nh, S, hdp)

    # ---- per-head output projection, summed over heads (== concat(heads) @ Wo + bo) ----
    proj = jnp.einsum("bqd,bdc->bqc", ctx.astype(bf16), wo3_ref[...],
                      preferred_element_type=jnp.float32)         # (Bt*nh, S, Cp)
    attn_rows = []
    for b in range(batch_tile):
        acc = proj[b * num_heads]
        for h in range(1, num_heads):
            acc = acc + proj[b * num_heads + h]
        attn_rows.append(acc)
    attn = jnp.concatenate(attn_rows, axis=0) + bo_ref[...]       # (Bt*S, Cp)

    x2 = attn + resid1
    resid2 = x2

    # ---- BatchNorm #2 (pre-folded affine) ----
    xn2 = x2 * s2_ref[...] + t2_ref[...]

    # ---- FeedForward (1x1 convs == channel matmuls), GELU tanh approx, dropout = identity ----
    h1 = jnp.dot(xn2.astype(bf16), w1_ref[...],
                 preferred_element_type=jnp.float32) + c1_ref[...]
    h1 = 0.5 * h1 * (1.0 + jnp.tanh(_GELU_C * (h1 + 0.044715 * h1 * h1 * h1)))
    ff = jnp.dot(h1.astype(bf16), w2_ref[...],
                 preferred_element_type=jnp.float32) + c2_ref[...]

    o_ref[...] = ff + resid2


def init_params(key, in_channels, mlp_ratio):
    C = in_channels
    H = C * mlp_ratio
    ks = jax.random.split(key, 20)
    n = lambda k, shp, s=0.1: s * jax.random.normal(k, shp, dtype=jnp.float32)
    return dict(
        # BatchNorm #1
        g1=1.0 + n(ks[0], (1, C)), b1=n(ks[1], (1, C)),
        m1=n(ks[2], (1, C)), v1=1.0 + jnp.abs(n(ks[3], (1, C))),
        # Attention (weights stored transposed so that y = x @ W)
        wq=n(ks[4], (C, C)), wk=n(ks[5], (C, C)), wv=n(ks[6], (C, C)),
        bq=n(ks[7], (1, C)), bk=n(ks[8], (1, C)), bv=n(ks[9], (1, C)),
        wo=n(ks[10], (C, C)), bo=n(ks[11], (1, C)),
        # BatchNorm #2
        g2=1.0 + n(ks[12], (1, C)), b2=n(ks[13], (1, C)),
        m2=n(ks[14], (1, C)), v2=1.0 + jnp.abs(n(ks[15], (1, C))),
        # FeedForward
        w1=n(ks[16], (C, H)), c1=n(ks[17], (1, H)),
        w2=n(ks[18], (H, C)), c2=n(ks[19], (1, C)),
    )


def prepare_params(params, in_channels, num_heads, batch_tile):
    """Fold BN into affine scale/shift, fuse+pad QKV (head-major padded columns, 1/sqrt(hd)
    folded into Q), stack Wo per head, zero-pad to lane-dense Cp/Hp, cast weights to bf16."""
    C = in_channels
    H = params["w1"].shape[1]
    Cp = _round_up(C, 128)
    Hp = _round_up(H, 128)
    hd = C // num_heads
    hdp = Cp // num_heads
    qscale = 1.0 / float(hd) ** 0.5
    f32, bf16 = jnp.float32, jnp.bfloat16

    def bn_affine(g, b, m, v):
        scale = g * jax.lax.rsqrt(v + EPS)
        shift = b - m * scale
        sp = jnp.zeros((1, Cp), f32).at[:, :C].set(scale)
        tp = jnp.zeros((1, Cp), f32).at[:, :C].set(shift)
        return sp, tp

    def head_major(w, b, scale=1.0):
        # rearrange output columns so head h occupies [h*hdp, h*hdp+hd), rest zero
        wp = jnp.zeros((Cp, Cp), f32)
        bp = jnp.zeros((1, Cp), f32)
        for h in range(num_heads):
            wp = wp.at[:C, h * hdp:h * hdp + hd].set(w[:, h * hd:(h + 1) * hd] * scale)
            bp = bp.at[:, h * hdp:h * hdp + hd].set(b[:, h * hd:(h + 1) * hd] * scale)
        return wp, bp

    s1, t1 = bn_affine(params["g1"], params["b1"], params["m1"], params["v1"])
    s2, t2 = bn_affine(params["g2"], params["b2"], params["m2"], params["v2"])

    wq_p, bq_p = head_major(params["wq"], params["bq"], qscale)
    wk_p, bk_p = head_major(params["wk"], params["bk"])
    wv_p, bv_p = head_major(params["wv"], params["bv"])
    wqkv = jnp.concatenate([wq_p, wk_p, wv_p], axis=1).astype(bf16)   # (Cp, 3*Cp)
    bqkv = jnp.concatenate([bq_p, bk_p, bv_p], axis=1)                # (1, 3*Cp) f32

    wo3 = jnp.zeros((num_heads, hdp, Cp), f32)
    for h in range(num_heads):
        wo3 = wo3.at[h, :hd, :C].set(params["wo"][h * hd:(h + 1) * hd, :])
    wo3 = jnp.tile(wo3, (batch_tile, 1, 1)).astype(bf16)              # (Bt*nh, hdp, Cp)
    bo = jnp.zeros((1, Cp), f32).at[:, :C].set(params["bo"])

    w1 = jnp.zeros((Cp, Hp), f32).at[:C, :H].set(params["w1"]).astype(bf16)
    c1 = jnp.zeros((1, Hp), f32).at[:, :H].set(params["c1"])
    w2 = jnp.zeros((Hp, Cp), f32).at[:H, :C].set(params["w2"]).astype(bf16)
    c2 = jnp.zeros((1, Cp), f32).at[:, :C].set(params["c2"])

    plist = [s1, t1, wqkv, bqkv, wo3, bo, s2, t2, w1, c1, w2, c2]
    return plist, Cp, hdp


def encoder_forward(x_nchw, params, num_heads, *, batch_tile=None):
    N, C, Hs, Ws = x_nchw.shape
    S = Hs * Ws
    if batch_tile is None:
        # Single-TC chips (v5e/v6e): fuse the whole batch into one grid step.
        # On v7x (2 TensorCores) pass batch_tile = N // 2 (or 1) so the "parallel"
        # batch axis is sharded across both cores.
        batch_tile = N
    assert N % batch_tile == 0
    assert C % num_heads == 0

    plist, Cp, hdp = prepare_params(params, C, num_heads, batch_tile)

    x_tok = jnp.transpose(x_nchw, (0, 2, 3, 1)).reshape(N * S, C)     # (N*S, C) tokens
    if Cp > C:
        x_tok = jnp.pad(x_tok, ((0, 0), (0, Cp - C)))                 # lane-dense channels

    rows = batch_tile * S
    in_specs = [pl.BlockSpec((rows, Cp), lambda b: (b, 0))]
    for p in plist:
        in_specs.append(pl.BlockSpec(p.shape, _const_map(p.ndim)))

    out = pl.pallas_call(
        functools.partial(encoder_kernel, num_heads=num_heads, batch_tile=batch_tile,
                          seq_len=S, head_dim_p=hdp),
        out_shape=jax.ShapeDtypeStruct((N * S, Cp), jnp.float32),
        grid=(N // batch_tile,),
        in_specs=in_specs,
        out_specs=pl.BlockSpec((rows, Cp), lambda b: (b, 0)),
        compiler_params=pltpu.CompilerParams(
            dimension_semantics=("parallel",),
            vmem_limit_bytes=32 * 1024 * 1024,
        ),
    )(x_tok, *plist)

    out = out[:, :C].reshape(N, Hs, Ws, C)
    return jnp.transpose(out, (0, 3, 1, 2))


def encoder_reference(x_nchw, params, num_heads):
    """Pure-JAX f32 reference (same math as the PyTorch module) for a numerics check."""
    N, C, Hsp, Wsp = x_nchw.shape
    S = Hsp * Wsp
    hd = C // num_heads
    hi = jax.lax.Precision.HIGHEST
    x = jnp.transpose(x_nchw, (0, 2, 3, 1)).reshape(N, S, C)
    r1 = x
    xn = (x - params["m1"]) / jnp.sqrt(params["v1"] + EPS) * params["g1"] + params["b1"]
    q = jnp.dot(xn, params["wq"], precision=hi) + params["bq"]
    k = jnp.dot(xn, params["wk"], precision=hi) + params["bk"]
    v = jnp.dot(xn, params["wv"], precision=hi) + params["bv"]
    qh = q.reshape(N, S, num_heads, hd)
    kh = k.reshape(N, S, num_heads, hd)
    vh = v.reshape(N, S, num_heads, hd)
    s = jnp.einsum("nqhd,nkhd->nhqk", qh, kh, precision=hi) / jnp.sqrt(float(hd))
    p = jax.nn.softmax(s, axis=-1)
    attn = jnp.einsum("nhqk,nkhd->nqhd", p, vh, precision=hi).reshape(N, S, C)
    attn = jnp.dot(attn, params["wo"], precision=hi) + params["bo"]
    x = attn + r1
    r2 = x
    xn = (x - params["m2"]) / jnp.sqrt(params["v2"] + EPS) * params["g2"] + params["b2"]
    h1 = jnp.dot(xn, params["w1"], precision=hi) + params["c1"]
    h1 = 0.5 * h1 * (1.0 + jnp.tanh(_GELU_C * (h1 + 0.044715 * h1 ** 3)))
    ff = jnp.dot(h1, params["w2"], precision=hi) + params["c2"]
    out = ff + r2
    return jnp.transpose(out.reshape(N, Hsp, Wsp, C), (0, 3, 1, 2))


if __name__ == "__main__":
    # Small shapes: batch=2, channels=32, spatial=8x8, num_heads=4, mlp_ratio=4.
    N, C, Hsp, Wsp = 2, 32, 8, 8
    num_heads, mlp_ratio = 4, 4

    key = jax.random.PRNGKey(0)
    kx, kp = jax.random.split(key)
    x = jax.random.normal(kx, (N, C, Hsp, Wsp), dtype=jnp.float32)
    params = init_params(kp, C, mlp_ratio)

    ref = encoder_reference(x, params, num_heads)

    # Batch fused into a single grid step (single-TC v5e/v6e setting).
    out_fused = jax.block_until_ready(encoder_forward(x, params, num_heads, batch_tile=N))
    # One batch element per grid step, "parallel" batch axis (v7x two-TC setting).
    out_split = jax.block_until_ready(encoder_forward(x, params, num_heads, batch_tile=1))

    assert out_fused.shape == x.shape
    # bf16 MXU operands vs. f32 HIGHEST-precision reference -> loosened tolerance.
    assert jnp.allclose(out_fused, ref, rtol=5e-2, atol=5e-2), "fused-batch output mismatch vs reference"
    assert jnp.allclose(out_split, ref, rtol=5e-2, atol=5e-2), "per-batch-grid output mismatch vs reference"
    assert jnp.allclose(out_fused, out_split, rtol=1e-2, atol=1e-2), "batch_tile variants disagree"

    print("KERNEL_OK")
</pallas_src>

<mosaic_0001>
module attributes {stable_mosaic.version = 11 : i64} {
  func.func @encoder_kernel(%arg0: i32, %arg1: memref<128x128xf32, #tpu.memory_space<vmem>>, %arg2: memref<1x128xf32, #tpu.memory_space<vmem>>, %arg3: memref<1x128xf32, #tpu.memory_space<vmem>>, %arg4: memref<128x384xbf16, #tpu.memory_space<vmem>>, %arg5: memref<1x384xf32, #tpu.memory_space<vmem>>, %arg6: memref<8x32x128xbf16, #tpu.memory_space<vmem>>, %arg7: memref<1x128xf32, #tpu.memory_space<vmem>>, %arg8: memref<1x128xf32, #tpu.memory_space<vmem>>, %arg9: memref<1x128xf32, #tpu.memory_space<vmem>>, %arg10: memref<128x128xbf16, #tpu.memory_space<vmem>>, %arg11: memref<1x128xf32, #tpu.memory_space<vmem>>, %arg12: memref<128x128xbf16, #tpu.memory_space<vmem>>, %arg13: memref<1x128xf32, #tpu.memory_space<vmem>>, %arg14: memref<128x128xf32, #tpu.memory_space<vmem>>) attributes {dimension_semantics = [#tpu.dimension_semantics<parallel>], iteration_bounds = array<i64: 1>, scalar_prefetch = 0 : i64, scratch_operands = 0 : i64, tpu.core_type = #tpu.core_type<tc>, window_params = [{transform_indices = @transform_0, window_bounds = array<i64: 128, 128>}, {pipeline_mode = #tpu.pipeline_mode<synchronous>, transform_indices = @transform_1, window_bounds = array<i64: 1, 128>}, {pipeline_mode = #tpu.pipeline_mode<synchronous>, transform_indices = @transform_2, window_bounds = array<i64: 1, 128>}, {pipeline_mode = #tpu.pipeline_mode<synchronous>, transform_indices = @transform_3, window_bounds = array<i64: 128, 384>}, {pipeline_mode = #tpu.pipeline_mode<synchronous>, transform_indices = @transform_4, window_bounds = array<i64: 1, 384>}, {pipeline_mode = #tpu.pipeline_mode<synchronous>, transform_indices = @transform_5, window_bounds = array<i64: 8, 32, 128>}, {pipeline_mode = #tpu.pipeline_mode<synchronous>, transform_indices = @transform_6, window_bounds = array<i64: 1, 128>}, {pipeline_mode = #tpu.pipeline_mode<synchronous>, transform_indices = @transform_7, window_bounds = array<i64: 1, 128>}, {pipeline_mode = #tpu.pipeline_mode<synchronous>, transform_indices = @transform_8, window_bounds = array<i64: 1, 128>}, {pipeline_mode = #tpu.pipeline_mode<synchronous>, transform_indices = @transform_9, window_bounds = array<i64: 128, 128>}, {pipeline_mode = #tpu.pipeline_mode<synchronous>, transform_indices = @transform_10, window_bounds = array<i64: 1, 128>}, {pipeline_mode = #tpu.pipeline_mode<synchronous>, transform_indices = @transform_11, window_bounds = array<i64: 128, 128>}, {pipeline_mode = #tpu.pipeline_mode<synchronous>, transform_indices = @transform_12, window_bounds = array<i64: 1, 128>}, {transform_indices = @transform_13, window_bounds = array<i64: 128, 128>}]} {
    %c0 = arith.constant 0 : index
    %c0_0 = arith.constant 0 : index
    %0 = vector.load %arg1[%c0, %c0_0] : memref<128x128xf32, #tpu.memory_space<vmem>>, vector<128x128xf32>
    %c0_1 = arith.constant 0 : index
    %c0_2 = arith.constant 0 : index
    %1 = vector.load %arg2[%c0_1, %c0_2] : memref<1x128xf32, #tpu.memory_space<vmem>>, vector<1x128xf32>
    %2 = vector.broadcast %1 : vector<1x128xf32> to vector<128x128xf32>
    %3 = arith.mulf %0, %2 : vector<128x128xf32>
    %c0_3 = arith.constant 0 : index
    %c0_4 = arith.constant 0 : index
    %4 = vector.load %arg3[%c0_3, %c0_4] : memref<1x128xf32, #tpu.memory_space<vmem>>, vector<1x128xf32>
    %5 = vector.broadcast %4 : vector<1x128xf32> to vector<128x128xf32>
    %6 = arith.addf %3, %5 : vector<128x128xf32>
    %7 = arith.truncf %6 : vector<128x128xf32> to vector<128x128xbf16>
    %c0_5 = arith.constant 0 : index
    %c0_6 = arith.constant 0 : index
    %8 = vector.load %arg4[%c0_5, %c0_6] : memref<128x384xbf16, #tpu.memory_space<vmem>>, vector<128x384xbf16>
    %cst = arith.constant dense<0.000000e+00> : vector<128x384xf32>
    %9 = tpu.matmul %7, %8, %cst {dimension_numbers = #tpu.dot_dimension_numbers<[1], [0], [0], [1], [0, 0, 1, 1], [], []>} : vector<128x128xbf16>, vector<128x384xbf16>, vector<128x384xf32> -> vector<128x384xf32>
    %c0_7 = arith.constant 0 : index
    %c0_8 = arith.constant 0 : index
    %10 = vector.load %arg5[%c0_7, %c0_8] : memref<1x384xf32, #tpu.memory_space<vmem>>, vector<1x384xf32>
    %11 = vector.broadcast %10 : vector<1x384xf32> to vector<128x384xf32>
    %12 = arith.addf %9, %11 : vector<128x384xf32>
    %13 = vector.extract_strided_slice %12 {offsets = [0, 0], sizes = [128, 128], strides = [1, 1]} : vector<128x384xf32> to vector<128x128xf32>
    %14 = arith.truncf %13 : vector<128x128xf32> to vector<128x128xbf16>
    %15 = vector.extract_strided_slice %12 {offsets = [0, 128], sizes = [128, 128], strides = [1, 1]} : vector<128x384xf32> to vector<128x128xf32>
    %16 = arith.truncf %15 : vector<128x128xf32> to vector<128x128xbf16>
    %17 = vector.extract_strided_slice %12 {offsets = [0, 256], sizes = [128, 128], strides = [1, 1]} : vector<128x384xf32> to vector<128x128xf32>
    %18 = arith.truncf %17 : vector<128x128xf32> to vector<128x128xbf16>
    %19 = vector.extract_strided_slice %14 {offsets = [0, 0], sizes = [64, 128], strides = [1, 1]} : vector<128x128xbf16> to vector<64x128xbf16>
    %20 = vector.extract_strided_slice %19 {offsets = [0, 0], sizes = [64, 32], strides = [1, 1]} : vector<64x128xbf16> to vector<64x32xbf16>
    %21 = vector.extract_strided_slice %19 {offsets = [0, 32], sizes = [64, 32], strides = [1, 1]} : vector<64x128xbf16> to vector<64x32xbf16>
    %22 = vector.extract_strided_slice %19 {offsets = [0, 64], sizes = [64, 32], strides = [1, 1]} : vector<64x128xbf16> to vector<64x32xbf16>
    %23 = vector.extract_strided_slice %19 {offsets = [0, 96], sizes = [64, 32], strides = [1, 1]} : vector<64x128xbf16> to vector<64x32xbf16>
    %24 = vector.extract_strided_slice %14 {offsets = [64, 0], sizes = [64, 128], strides = [1, 1]} : vector<128x128xbf16> to vector<64x128xbf16>
    %25 = vector.extract_strided_slice %24 {offsets = [0, 0], sizes = [64, 32], strides = [1, 1]} : vector<64x128xbf16> to vector<64x32xbf16>
    %26 = vector.extract_strided_slice %24 {offsets = [0, 32], sizes = [64, 32], strides = [1, 1]} : vector<64x128xbf16> to vector<64x32xbf16>
    %27 = vector.extract_strided_slice %24 {offsets = [0, 64], sizes = [64, 32], strides = [1, 1]} : vector<64x128xbf16> to vector<64x32xbf16>
    %28 = vector.extract_strided_slice %24 {offsets = [0, 96], sizes = [64, 32], strides = [1, 1]} : vector<64x128xbf16> to vector<64x32xbf16>
    %29 = vector.shape_cast %20 : vector<64x32xbf16> to vector<1x64x32xbf16>
    %30 = vector.shape_cast %21 : vector<64x32xbf16> to vector<1x64x32xbf16>
    %31 = vector.shape_cast %22 : vector<64x32xbf16> to vector<1x64x32xbf16>
    %32 = vector.shape_cast %23 : vector<64x32xbf16> to vector<1x64x32xbf16>
    %33 = vector.shape_cast %25 : vector<64x32xbf16> to vector<1x64x32xbf16>
    %34 = vector.shape_cast %26 : vector<64x32xbf16> to vector<1x64x32xbf16>
    %35 = vector.shape_cast %27 : vector<64x32xbf16> to vector<1x64x32xbf16>
    %36 = vector.shape_cast %28 : vector<64x32xbf16> to vector<1x64x32xbf16>
    %37 = tpu.concatenate %29, %30, %31, %32, %33, %34, %35, %36 in 0 : vector<1x64x32xbf16>, vector<1x64x32xbf16>, vector<1x64x32xbf16>, vector<1x64x32xbf16>, vector<1x64x32xbf16>, vector<1x64x32xbf16>, vector<1x64x32xbf16>, vector<1x64x32xbf16> -> vector<8x64x32xbf16>
    %38 = vector.extract_strided_slice %16 {offsets = [0, 0], sizes = [64, 128], strides = [1, 1]} : vector<128x128xbf16> to vector<64x128xbf16>
    %39 = vector.extract_strided_slice %38 {offsets = [0, 0], sizes = [64, 32], strides = [1, 1]} : vector<64x128xbf16> to vector<64x32xbf16>
    %40 = vector.extract_strided_slice %38 {offsets = [0, 32], sizes = [64, 32], strides = [1, 1]} : vector<64x128xbf16> to vector<64x32xbf16>
    %41 = vector.extract_strided_slice %38 {offsets = [0, 64], sizes = [64, 32], strides = [1, 1]} : vector<64x128xbf16> to vector<64x32xbf16>
    %42 = vector.extract_strided_slice %38 {offsets = [0, 96], sizes = [64, 32], strides = [1, 1]} : vector<64x128xbf16> to vector<64x32xbf16>
    %43 = vector.extract_strided_slice %16 {offsets = [64, 0], sizes = [64, 128], strides = [1, 1]} : vector<128x128xbf16> to vector<64x128xbf16>
    %44 = vector.extract_strided_slice %43 {offsets = [0, 0], sizes = [64, 32], strides = [1, 1]} : vector<64x128xbf16> to vector<64x32xbf16>
    %45 = vector.extract_strided_slice %43 {offsets = [0, 32], sizes = [64, 32], strides = [1, 1]} : vector<64x128xbf16> to vector<64x32xbf16>
    %46 = vector.extract_strided_slice %43 {offsets = [0, 64], sizes = [64, 32], strides = [1, 1]} : vector<64x128xbf16> to vector<64x32xbf16>
    %47 = vector.extract_strided_slice %43 {offsets = [0, 96], sizes = [64, 32], strides = [1, 1]} : vector<64x128xbf16> to vector<64x32xbf16>
    %48 = vector.shape_cast %39 : vector<64x32xbf16> to vector<1x64x32xbf16>
    %49 = vector.shape_cast %40 : vector<64x32xbf16> to vector<1x64x32xbf16>
    %50 = vector.shape_cast %41 : vector<64x32xbf16> to vector<1x64x32xbf16>
    %51 = vector.shape_cast %42 : vector<64x32xbf16> to vector<1x64x32xbf16>
    %52 = vector.shape_cast %44 : vector<64x32xbf16> to vector<1x64x32xbf16>
    %53 = vector.shape_cast %45 : vector<64x32xbf16> to vector<1x64x32xbf16>
    %54 = vector.shape_cast %46 : vector<64x32xbf16> to vector<1x64x32xbf16>
    %55 = vector.shape_cast %47 : vector<64x32xbf16> to vector<1x64x32xbf16>
    %56 = tpu.concatenate %48, %49, %50, %51, %52, %53, %54, %55 in 0 : vector<1x64x32xbf16>, vector<1x64x32xbf16>, vector<1x64x32xbf16>, vector<1x64x32xbf16>, vector<1x64x32xbf16>, vector<1x64x32xbf16>, vector<1x64x32xbf16>, vector<1x64x32xbf16> -> vector<8x64x32xbf16>
    %57 = vector.extract_strided_slice %18 {offsets = [0, 0], sizes = [64, 128], strides = [1, 1]} : vector<128x128xbf16> to vector<64x128xbf16>
    %58 = vector.extract_strided_slice %57 {offsets = [0, 0], sizes = [64, 32], strides = [1, 1]} : vector<64x128xbf16> to vector<64x32xbf16>
    %59 = vector.extract_strided_slice %57 {offsets = [0, 32], sizes = [64, 32], strides = [1, 1]} : vector<64x128xbf16> to vector<64x32xbf16>
    %60 = vector.extract_strided_slice %57 {offsets = [0, 64], sizes = [64, 32], strides = [1, 1]} : vector<64x128xbf16> to vector<64x32xbf16>
    %61 = vector.extract_strided_slice %57 {offsets = [0, 96], sizes = [64, 32], strides = [1, 1]} : vector<64x128xbf16> to vector<64x32xbf16>
    %62 = vector.extract_strided_slice %18 {offsets = [64, 0], sizes = [64, 128], strides = [1, 1]} : vector<128x128xbf16> to vector<64x128xbf16>
    %63 = vector.extract_strided_slice %62 {offsets = [0, 0], sizes = [64, 32], strides = [1, 1]} : vector<64x128xbf16> to vector<64x32xbf16>
    %64 = vector.extract_strided_slice %62 {offsets = [0, 32], sizes = [64, 32], strides = [1, 1]} : vector<64x128xbf16> to vector<64x32xbf16>
    %65 = vector.extract_strided_slice %62 {offsets = [0, 64], sizes = [64, 32], strides = [1, 1]} : vector<64x128xbf16> to vector<64x32xbf16>
    %66 = vector.extract_strided_slice %62 {offsets = [0, 96], sizes = [64, 32], strides = [1, 1]} : vector<64x128xbf16> to vector<64x32xbf16>
    %67 = vector.shape_cast %58 : vector<64x32xbf16> to vector<1x64x32xbf16>
    %68 = vector.shape_cast %59 : vector<64x32xbf16> to vector<1x64x32xbf16>
    %69 = vector.shape_cast %60 : vector<64x32xbf16> to vector<1x64x32xbf16>
    %70 = vector.shape_cast %61 : vector<64x32xbf16> to vector<1x64x32xbf16>
    %71 = vector.shape_cast %63 : vector<64x32xbf16> to vector<1x64x32xbf16>
    %72 = vector.shape_cast %64 : vector<64x32xbf16> to vector<1x64x32xbf16>
    %73 = vector.shape_cast %65 : vector<64x32xbf16> to vector<1x64x32xbf16>
    %74 = vector.shape_cast %66 : vector<64x32xbf16> to vector<1x64x32xbf16>
    %75 = tpu.concatenate %67, %68, %69, %70, %71, %72, %73, %74 in 0 : vector<1x64x32xbf16>, vector<1x64x32xbf16>, vector<1x64x32xbf16>, vector<1x64x32xbf16>, vector<1x64x32xbf16>, vector<1x64x32xbf16>, vector<1x64x32xbf16>, vector<1x64x32xbf16> -> vector<8x64x32xbf16>
    "tpu.trace_start"() <{level = 10 : i32, message = "bqd,bkd->bqk"}> : () -> ()
    %cst_9 = arith.constant dense<0.000000e+00> : vector<8x64x64xf32>
    %76 = tpu.matmul %37, %56, %cst_9 {dimension_numbers = #tpu.dot_dimension_numbers<[2], [2], [1], [1], [0, 0, 0, 1, 1, 1], [0], [0]>} : vector<8x64x32xbf16>, vector<8x64x32xbf16>, vector<8x64x64xf32> -> vector<8x64x64xf32>
    "tpu.trace_stop"() : () -> ()
    %cst_10 = arith.constant dense<0xFF800000> : vector<8x64xf32>
    %77 = vector.multi_reduction <maximumf>, %76, %cst_10 [2] : vector<8x64x64xf32> to vector<8x64xf32>
    %78 = vector.shape_cast %77 : vector<8x64xf32> to vector<8x64x1xf32>
    %79 = vector.broadcast %78 : vector<8x64x1xf32> to vector<8x64x64xf32>
    %80 = arith.subf %76, %79 : vector<8x64x64xf32>
    %81 = math.exp %80 : vector<8x64x64xf32>
    %cst_11 = arith.constant dense<0.000000e+00> : vector<8x64xf32>
    %82 = vector.multi_reduction <add>, %81, %cst_11 [2] : vector<8x64x64xf32> to vector<8x64xf32>
    %83 = vector.shape_cast %82 : vector<8x64xf32> to vector<8x64x1xf32>
    %84 = tpu.reciprocal %83 {approx = true} : vector<8x64x1xf32> -> vector<8x64x1xf32>
    %85 = vector.broadcast %84 : vector<8x64x1xf32> to vector<8x64x64xf32>
    %86 = arith.mulf %81, %85 : vector<8x64x64xf32>
    %87 = arith.truncf %86 : vector<8x64x64xf32> to vector<8x64x64xbf16>
    "tpu.trace_start"() <{level = 10 : i32, message = "bqk,bkd->bqd"}> : () -> ()
    %cst_12 = arith.constant dense<0.000000e+00> : vector<8x64x32xf32>
    %88 = tpu.matmul %87, %75, %cst_12 {dimension_numbers = #tpu.dot_dimension_numbers<[2], [1], [1], [2], [0, 0, 0, 1, 1, 2], [0], [0]>} : vector<8x64x64xbf16>, vector<8x64x32xbf16>, vector<8x64x32xf32> -> vector<8x64x32xf32>
    "tpu.trace_stop"() : () -> ()
    %89 = arith.truncf %88 : vector<8x64x32xf32> to vector<8x64x32xbf16>
    %c0_13 = arith.constant 0 : index
    %c0_14 = arith.constant 0 : index
    %c0_15 = arith.constant 0 : index
    %90 = vector.load %arg6[%c0_13, %c0_14, %c0_15] : memref<8x32x128xbf16, #tpu.memory_space<vmem>>, vector<8x32x128xbf16>
    "tpu.trace_start"() <{level = 10 : i32, message = "bqd,bdc->bqc"}> : () -> ()
    %cst_16 = arith.constant dense<0.000000e+00> : vector<8x64x128xf32>
    %91 = tpu.matmul %89, %90, %cst_16 {dimension_numbers = #tpu.dot_dimension_numbers<[2], [1], [1], [2], [0, 0, 0, 1, 1, 2], [0], [0]>} : vector<8x64x32xbf16>, vector<8x32x128xbf16>, vector<8x64x128xf32> -> vector<8x64x128xf32>
    "tpu.trace_stop"() : () -> ()
    %92 = vector.extract_strided_slice %91 {offsets = [0, 0, 0], sizes = [1, 64, 128], strides = [1, 1, 1]} : vector<8x64x128xf32> to vector<1x64x128xf32>
    %93 = vector.shape_cast %92 : vector<1x64x128xf32> to vector<64x128xf32>
    %94 = vector.extract_strided_slice %91 {offsets = [1, 0, 0], sizes = [1, 64, 128], strides = [1, 1, 1]} : vector<8x64x128xf32> to vector<1x64x128xf32>
    %95 = vector.shape_cast %94 : vector<1x64x128xf32> to vector<64x128xf32>
    %96 = arith.addf %93, %95 : vector<64x128xf32>
    %97 = vector.extract_strided_slice %91 {offsets = [2, 0, 0], sizes = [1, 64, 128], strides = [1, 1, 1]} : vector<8x64x128xf32> to vector<1x64x128xf32>
    %98 = vector.shape_cast %97 : vector<1x64x128xf32> to vector<64x128xf32>
    %99 = arith.addf %96, %98 : vector<64x128xf32>
    %100 = vector.extract_strided_slice %91 {offsets = [3, 0, 0], sizes = [1, 64, 128], strides = [1, 1, 1]} : vector<8x64x128xf32> to vector<1x64x128xf32>
    %101 = vector.shape_cast %100 : vector<1x64x128xf32> to vector<64x128xf32>
    %102 = arith.addf %99, %101 : vector<64x128xf32>
    %103 = vector.extract_strided_slice %91 {offsets = [4, 0, 0], sizes = [1, 64, 128], strides = [1, 1, 1]} : vector<8x64x128xf32> to vector<1x64x128xf32>
    %104 = vector.shape_cast %103 : vector<1x64x128xf32> to vector<64x128xf32>
    %105 = vector.extract_strided_slice %91 {offsets = [5, 0, 0], sizes = [1, 64, 128], strides = [1, 1, 1]} : vector<8x64x128xf32> to vector<1x64x128xf32>
    %106 = vector.shape_cast %105 : vector<1x64x128xf32> to vector<64x128xf32>
    %107 = arith.addf %104, %106 : vector<64x128xf32>
    %108 = vector.extract_strided_slice %91 {offsets = [6, 0, 0], sizes = [1, 64, 128], strides = [1, 1, 1]} : vector<8x64x128xf32> to vector<1x64x128xf32>
    %109 = vector.shape_cast %108 : vector<1x64x128xf32> to vector<64x128xf32>
    %110 = arith.addf %107, %109 : vector<64x128xf32>
    %111 = vector.extract_strided_slice %91 {offsets = [7, 0, 0], sizes = [1, 64, 128], strides = [1, 1, 1]} : vector<8x64x128xf32> to vector<1x64x128xf32>
    %112 = vector.shape_cast %111 : vector<1x64x128xf32> to vector<64x128xf32>
    %113 = arith.addf %110, %112 : vector<64x128xf32>
    %114 = tpu.concatenate %102, %113 in 0 : vector<64x128xf32>, vector<64x128xf32> -> vector<128x128xf32>
    %c0_17 = arith.constant 0 : index
    %c0_18 = arith.constant 0 : index
    %115 = vector.load %arg7[%c0_17, %c0_18] : memref<1x128xf32, #tpu.memory_space<vmem>>, vector<1x128xf32>
    %116 = vector.broadcast %115 : vector<1x128xf32> to vector<128x128xf32>
    %117 = arith.addf %114, %116 : vector<128x128xf32>
    %118 = arith.addf %117, %0 : vector<128x128xf32>
    %c0_19 = arith.constant 0 : index
    %c0_20 = arith.constant 0 : index
    %119 = vector.load %arg8[%c0_19, %c0_20] : memref<1x128xf32, #tpu.memory_space<vmem>>, vector<1x128xf32>
    %120 = vector.broadcast %119 : vector<1x128xf32> to vector<128x128xf32>
    %121 = arith.mulf %118, %120 : vector<128x128xf32>
    %c0_21 = arith.constant 0 : index
    %c0_22 = arith.constant 0 : index
    %122 = vector.load %arg9[%c0_21, %c0_22] : memref<1x128xf32, #tpu.memory_space<vmem>>, vector<1x128xf32>
    %123 = vector.broadcast %122 : vector<1x128xf32> to vector<128x128xf32>
    %124 = arith.addf %121, %123 : vector<128x128xf32>
    %125 = arith.truncf %124 : vector<128x128xf32> to vector<128x128xbf16>
    %c0_23 = arith.constant 0 : index
    %c0_24 = arith.constant 0 : index
    %126 = vector.load %arg10[%c0_23, %c0_24] : memref<128x128xbf16, #tpu.memory_space<vmem>>, vector<128x128xbf16>
    %cst_25 = arith.constant dense<0.000000e+00> : vector<128x128xf32>
    %127 = tpu.matmul %125, %126, %cst_25 {dimension_numbers = #tpu.dot_dimension_numbers<[1], [0], [0], [1], [0, 0, 1, 1], [], []>} : vector<128x128xbf16>, vector<128x128xbf16>, vector<128x128xf32> -> vector<128x128xf32>
    %c0_26 = arith.constant 0 : index
    %c0_27 = arith.constant 0 : index
    %128 = vector.load %arg11[%c0_26, %c0_27] : memref<1x128xf32, #tpu.memory_space<vmem>>, vector<1x128xf32>
    %129 = vector.broadcast %128 : vector<1x128xf32> to vector<128x128xf32>
    %130 = arith.addf %127, %129 : vector<128x128xf32>
    %cst_28 = arith.constant 5.000000e-01 : f32
    %131 = vector.broadcast %cst_28 : f32 to vector<128x128xf32>
    %132 = arith.mulf %131, %130 : vector<128x128xf32>
    %cst_29 = arith.constant 4.471500e-02 : f32
    %133 = vector.broadcast %cst_29 : f32 to vector<128x128xf32>
    %134 = arith.mulf %133, %130 : vector<128x128xf32>
    %135 = arith.mulf %134, %130 : vector<128x128xf32>
    %136 = arith.mulf %135, %130 : vector<128x128xf32>
    %137 = arith.addf %130, %136 : vector<128x128xf32>
    %cst_30 = arith.constant 0.797884583 : f32
    %138 = vector.broadcast %cst_30 : f32 to vector<128x128xf32>
    %139 = arith.mulf %138, %137 : vector<128x128xf32>
    %140 = math.tanh %139 : vector<128x128xf32>
    %cst_31 = arith.constant 1.000000e+00 : f32
    %141 = vector.broadcast %cst_31 : f32 to vector<128x128xf32>
    %142 = arith.addf %141, %140 : vector<128x128xf32>
    %143 = arith.mulf %132, %142 : vector<128x128xf32>
    %144 = arith.truncf %143 : vector<128x128xf32> to vector<128x128xbf16>
    %c0_32 = arith.constant 0 : index
    %c0_33 = arith.constant 0 : index
    %145 = vector.load %arg12[%c0_32, %c0_33] : memref<128x128xbf16, #tpu.memory_space<vmem>>, vector<128x128xbf16>
    %cst_34 = arith.constant dense<0.000000e+00> : vector<128x128xf32>
    %146 = tpu.matmul %144, %145, %cst_34 {dimension_numbers = #tpu.dot_dimension_numbers<[1], [0], [0], [1], [0, 0, 1, 1], [], []>} : vector<128x128xbf16>, vector<128x128xbf16>, vector<128x128xf32> -> vector<128x128xf32>
    %c0_35 = arith.constant 0 : index
    %c0_36 = arith.constant 0 : index
    %147 = vector.load %arg13[%c0_35, %c0_36] : memref<1x128xf32, #tpu.memory_space<vmem>>, vector<1x128xf32>
    %148 = vector.broadcast %147 : vector<1x128xf32> to vector<128x128xf32>
    %149 = arith.addf %146, %148 : vector<128x128xf32>
    %150 = arith.addf %149, %118 : vector<128x128xf32>
    %c0_37 = arith.constant 0 : index
    %c0_38 = arith.constant 0 : index
    %151 = vector.load %arg14[%c0_37, %c0_38] : memref<128x128xf32, #tpu.memory_space<vmem>>, vector<128x128xf32>
    tpu.vector_store %arg14[%c0_37, %c0_38], %150 {strides = array<i32>} : memref<128x128xf32, #tpu.memory_space<vmem>>, vector<128x128xf32>,
    return
  }
  func.func @transform_0(%arg0: i32) -> (i32, i32) {
    %c0_i32 = arith.constant 0 : i32
    %c0_i32_0 = arith.constant 0 : i32
    return %arg0, %c0_i32 : i32, i32
  }
  func.func @transform_1(%arg0: i32) -> (i32, i32) {
    %c0_i32 = arith.constant 0 : i32
    %c0_i32_0 = arith.constant 0 : i32
    %c0_i32_1 = arith.constant 0 : i32
    return %c0_i32, %c0_i32_0 : i32, i32
  }
  func.func @transform_2(%arg0: i32) -> (i32, i32) {
    %c0_i32 = arith.constant 0 : i32
    %c0_i32_0 = arith.constant 0 : i32
    %c0_i32_1 = arith.constant 0 : i32
    return %c0_i32, %c0_i32_0 : i32, i32
  }
  func.func @transform_3(%arg0: i32) -> (i32, i32) {
    %c0_i32 = arith.constant 0 : i32
    %c0_i32_0 = arith.constant 0 : i32
    %c0_i32_1 = arith.constant 0 : i32
    return %c0_i32, %c0_i32_0 : i32, i32
  }
  func.func @transform_4(%arg0: i32) -> (i32, i32) {
    %c0_i32 = arith.constant 0 : i32
    %c0_i32_0 = arith.constant 0 : i32
    %c0_i32_1 = arith.constant 0 : i32
    return %c0_i32, %c0_i32_0 : i32, i32
  }
  func.func @transform_5(%arg0: i32) -> (i32, i32, i32) {
    %c0_i32 = arith.constant 0 : i32
    %c0_i32_0 = arith.constant 0 : i32
    %c0_i32_1 = arith.constant 0 : i32
    %c0_i32_2 = arith.constant 0 : i32
    return %c0_i32, %c0_i32_0, %c0_i32_1 : i32, i32, i32
  }
  func.func @transform_6(%arg0: i32) -> (i32, i32) {
    %c0_i32 = arith.constant 0 : i32
    %c0_i32_0 = arith.constant 0 : i32
    %c0_i32_1 = arith.constant 0 : i32
    return %c0_i32, %c0_i32_0 : i32, i32
  }
  func.func @transform_7(%arg0: i32) -> (i32, i32) {
    %c0_i32 = arith.constant 0 : i32
    %c0_i32_0 = arith.constant 0 : i32
    %c0_i32_1 = arith.constant 0 : i32
    return %c0_i32, %c0_i32_0 : i32, i32
  }
  func.func @transform_8(%arg0: i32) -> (i32, i32) {
    %c0_i32 = arith.constant 0 : i32
    %c0_i32_0 = arith.constant 0 : i32
    %c0_i32_1 = arith.constant 0 : i32
    return %c0_i32, %c0_i32_0 : i32, i32
  }
  func.func @transform_9(%arg0: i32) -> (i32, i32) {
    %c0_i32 = arith.constant 0 : i32
    %c0_i32_0 = arith.constant 0 : i32
    %c0_i32_1 = arith.constant 0 : i32
    return %c0_i32, %c0_i32_0 : i32, i32
  }
  func.func @transform_10(%arg0: i32) -> (i32, i32) {
    %c0_i32 = arith.constant 0 : i32
    %c0_i32_0 = arith.constant 0 : i32
    %c0_i32_1 = arith.constant 0 : i32
    return %c0_i32, %c0_i32_0 : i32, i32
  }
  func.func @transform_11(%arg0: i32) -> (i32, i32) {
    %c0_i32 = arith.constant 0 : i32
    %c0_i32_0 = arith.constant 0 : i32
    %c0_i32_1 = arith.constant 0 : i32
    return %c0_i32, %c0_i32_0 : i32, i32
  }
  func.func @transform_12(%arg0: i32) -> (i32, i32) {
    %c0_i32 = arith.constant 0 : i32
    %c0_i32_0 = arith.constant 0 : i32
    %c0_i32_1 = arith.constant 0 : i32
    return %c0_i32, %c0_i32_0 : i32, i32
  }
  func.func @transform_13(%arg0: i32) -> (i32, i32) {
    %c0_i32 = arith.constant 0 : i32
    %c0_i32_0 = arith.constant 0 : i32
    return %arg0, %c0_i32 : i32, i32
  }
}

</mosaic_0001>

<llo_original>
// kernel: tpu_custom_call.1
$region0: #{tpu_custom_call.1}
  #allocation0 [shape = 'u32[]', space=smem, size = 0x4, offset = 0x4, fixed_abs, tag = 'smem constant byte address 0x4 - core index']
  #allocation1 [shape = 'u32[72,128]{1,0:T(1,128)}', space=vmem, size = 0x9000, scoped, tag = 'internal scratch']
  %s0 = inlined_call_operand.hbm [shape: f32[128,128], index: 0, kind: input, shape index: {}]
  %s1 = inlined_call_operand.hbm [shape: f32[1,128], index: 1, kind: input, shape index: {}]
  %s2 = inlined_call_operand.hbm [shape: f32[1,128], index: 2, kind: input, shape index: {}]
  %s3 = inlined_call_operand.hbm [shape: bf16[128,384], index: 3, kind: input, shape index: {}]
  %s4 = inlined_call_operand.vmem [shape: f32[1,384], index: 4, kind: input, shape index: {}]
  %s5 = inlined_call_operand.hbm [shape: bf16[8,32,128], index: 5, kind: input, shape index: {}]
  %s6 = inlined_call_operand.vmem [shape: f32[1,128], index: 6, kind: input, shape index: {}]
  %s7 = inlined_call_operand.vmem [shape: f32[1,128], index: 7, kind: input, shape index: {}]
  %s8 = inlined_call_operand.vmem [shape: f32[1,128], index: 8, kind: input, shape index: {}]
  %s9 = inlined_call_operand.hbm [shape: bf16[128,128], index: 9, kind: input, shape index: {}]
  %s10 = inlined_call_operand.vmem [shape: f32[1,128], index: 10, kind: input, shape index: {}]
  %s11 = inlined_call_operand.hbm [shape: bf16[128,128], index: 11, kind: input, shape index: {}]
  %s12 = inlined_call_operand.vmem [shape: f32[1,128], index: 12, kind: input, shape index: {}]
  %s13 = inlined_call_operand.hbm [shape: f32[128,128], index: 13, kind: output, shape index: {}]
  %s14 = sld [smem:[#allocation0]]
  $region90: #{tpu_custom_call.1} parent=0
    _
  %s16 = ssub.s32 1, %s14
  %s17 = scalar_select 0, %s16, %s14
  $region1: #{tpu_custom_call.1} parent=0
    #allocation2 [shape = 'u8[65536]{0}', space=vmem, size = 0x10000, scoped, tag = 'input window, operand 0, single buffered']
    #allocation3 [shape = 's32[1]{0}', space=sflag, size = 0x4, scoped, tag = 'scoped memory for tpu_custom_call.1']
    #allocation4 [shape = 's32[1]{0}', space=sflag, size = 0x4, scoped, tag = 'scoped memory for tpu_custom_call.1']
    #allocation5 [shape = 'u8[512]{0}', space=vmem, size = 0x400, scoped, tag = 'input window, operand 1, single buffered']
    #allocation6 [shape = 's32[1]{0}', space=sflag, size = 0x4, scoped, tag = 'scoped memory for tpu_custom_call.1']
    #allocation7 [shape = 'u8[512]{0}', space=vmem, size = 0x400, scoped, tag = 'input window, operand 2, single buffered']
    #allocation8 [shape = 'u8[98304]{0}', space=vmem, size = 0x18000, scoped, tag = 'input window, operand 3, single buffered']
    #allocation9 [shape = 's32[1]{0}', space=sflag, size = 0x4, scoped, tag = 'scoped memory for tpu_custom_call.1']
    #allocation10 [shape = 'u8[65536]{0}', space=vmem, size = 0x10000, scoped, tag = 'input window, operand 5, single buffered']
    #allocation11 [shape = 'u8[32768]{0}', space=vmem, size = 0x8000, scoped, tag = 'input window, operand 9, single buffered']
    #allocation12 [shape = 's32[1]{0}', space=sflag, size = 0x4, scoped, tag = 'scoped memory for tpu_custom_call.1']
    #allocation13 [shape = 'u8[32768]{0}', space=vmem, size = 0x8000, scoped, tag = 'input window, operand 11, single buffered']
    #allocation14 [shape = 'u8[65536]{0}', space=vmem, size = 0x10000, scoped, tag = 'output window, operand 0, single buffered']
    %18 = vsyncpa [#allocation3], 0
    %19 = vsyncpa [#allocation6], 0
    %20 = vsyncpa [#allocation9], 0
    %21 = vsyncpa [#allocation12], 0
    %22 = vsyncpa [#allocation4], 0
    // Predicated region
    $region2: #{tpu_custom_call.1} parent=1 // pred_check
      _
    $region3: #{tpu_custom_call.1} parent=1 // pred_check_branch
      %24 = sbr.rel (0) target = $region5
    $region4: #{tpu_custom_call.1} parent=1 // pred_region
      %26 = vsyncadd [#allocation3], 0
      %s27 = sshll.u32 %s0, 4
      %s28 = int_to_ptr.hbm [resolvable:$true] %s27
      %s29 = sshll.u32 [#allocation2], 4
      %s30 = int_to_ptr.vmem [resolvable:$true] %s29
      %35 = dma.hbm_to_vmem [thread:$0]  %s28, 2048, %s30, [#allocation3], 128, 128, 8
    $region5: #{tpu_custom_call.1} parent=1 // pred_fallthru
      _
    // Predicated region
    $region6: #{tpu_custom_call.1} parent=1 // pred_check
      _
    $region7: #{tpu_custom_call.1} parent=1 // pred_check_branch
      %37 = sbr.rel (0) target = $region9
    $region8: #{tpu_custom_call.1} parent=1 // pred_region
      %39 = vsyncadd [#allocation6], 0
      %s41 = sshll.u32 %s1, 4
      %s42 = int_to_ptr.hbm [resolvable:$true] %s41
      %s43 = sshll.u32 [#allocation5], 4
      %s44 = int_to_ptr.vmem [resolvable:$true] %s43
      %46 = dma.hbm_to_vmem [thread:$0]  %s42, 16, %s44, [#allocation6]
    $region9: #{tpu_custom_call.1} parent=1 // pred_fallthru
      _
    // Predicated region
    $region10: #{tpu_custom_call.1} parent=1 // pred_check
      _
    $region11: #{tpu_custom_call.1} parent=1 // pred_check_branch
      %48 = sbr.rel (0) target = $region13
    $region12: #{tpu_custom_call.1} parent=1 // pred_region
      %50 = vsyncadd [#allocation6], 0
      %s52 = sshll.u32 %s2, 4
      %s53 = int_to_ptr.hbm [resolvable:$true] %s52
      %s54 = sshll.u32 [#allocation7], 4
      %s55 = int_to_ptr.vmem [resolvable:$true] %s54
      %57 = dma.hbm_to_vmem [thread:$0]  %s53, 16, %s55, [#allocation6]
    $region13: #{tpu_custom_call.1} parent=1 // pred_fallthru
      _
    // Predicated region
    $region14: #{tpu_custom_call.1} parent=1 // pred_check
      _
    $region15: #{tpu_custom_call.1} parent=1 // pred_check_branch
      %59 = sbr.rel (0) target = $region17
    $region16: #{tpu_custom_call.1} parent=1 // pred_region
      %61 = vsyncadd [#allocation9], 0
      %s62 = sshll.u32 %s3, 4
      %s63 = int_to_ptr.hbm [resolvable:$true] %s62
      %s64 = sshll.u32 [#allocation8], 4
      %s65 = int_to_ptr.vmem [resolvable:$true] %s64
      %70 = dma.hbm_to_vmem [thread:$0]  %s63, 3072, %s65, [#allocation9], 192, 192, 12
    $region17: #{tpu_custom_call.1} parent=1 // pred_fallthru
      _
    // Predicated region
    $region18: #{tpu_custom_call.1} parent=1 // pred_check
      _
    $region19: #{tpu_custom_call.1} parent=1 // pred_check_branch
      %72 = sbr.rel (0) target = $region21
    $region20: #{tpu_custom_call.1} parent=1 // pred_region
      _
    $region21: #{tpu_custom_call.1} parent=1 // pred_fallthru
      _
    // Predicated region
    $region22: #{tpu_custom_call.1} parent=1 // pred_check
      _
    $region23: #{tpu_custom_call.1} parent=1 // pred_check_branch
      %74 = sbr.rel (0) target = $region25
    $region24: #{tpu_custom_call.1} parent=1 // pred_region
      %76 = vsyncadd [#allocation9], 0
      %s77 = sshll.u32 %s5, 4
      %s78 = int_to_ptr.hbm [resolvable:$true] %s77
      %s79 = sshll.u32 [#allocation10], 4
      %s80 = int_to_ptr.vmem [resolvable:$true] %s79
      %85 = dma.hbm_to_vmem [thread:$0]  %s78, 2048, %s80, [#allocation9], 64, 64, 4
    $region25: #{tpu_custom_call.1} parent=1 // pred_fallthru
      _
    // Predicated region
    $region26: #{tpu_custom_call.1} parent=1 // pred_check
      _
    $region27: #{tpu_custom_call.1} parent=1 // pred_check_branch
      %87 = sbr.rel (0) target = $region29
    $region28: #{tpu_custom_call.1} parent=1 // pred_region
      _
    $region29: #{tpu_custom_call.1} parent=1 // pred_fallthru
      _
    // Predicated region
    $region30: #{tpu_custom_call.1} parent=1 // pred_check
      _
    $region31: #{tpu_custom_call.1} parent=1 // pred_check_branch
      %89 = sbr.rel (0) target = $region33
    $region32: #{tpu_custom_call.1} parent=1 // pred_region
      _
    $region33: #{tpu_custom_call.1} parent=1 // pred_fallthru
      _
    // Predicated region
    $region34: #{tpu_custom_call.1} parent=1 // pred_check
      _
    $region35: #{tpu_custom_call.1} parent=1 // pred_check_branch
      %91 = sbr.rel (0) target = $region37
    $region36: #{tpu_custom_call.1} parent=1 // pred_region
      _
    $region37: #{tpu_custom_call.1} parent=1 // pred_fallthru
      _
    // Predicated region
    $region38: #{tpu_custom_call.1} parent=1 // pred_check
      _
    $region39: #{tpu_custom_call.1} parent=1 // pred_check_branch
      %93 = sbr.rel (0) target = $region41
    $region40: #{tpu_custom_call.1} parent=1 // pred_region
      %95 = vsyncadd [#allocation12], 0
      %s96 = sshll.u32 %s9, 4
      %s97 = int_to_ptr.hbm [resolvable:$true] %s96
      %s98 = sshll.u32 [#allocation11], 4
      %s99 = int_to_ptr.vmem [resolvable:$true] %s98
      %104 = dma.hbm_to_vmem [thread:$0]  %s97, 1024, %s99, [#allocation12], 64, 64, 4
    $region41: #{tpu_custom_call.1} parent=1 // pred_fallthru
      _
    // Predicated region
    $region42: #{tpu_custom_call.1} parent=1 // pred_check
      _
    $region43: #{tpu_custom_call.1} parent=1 // pred_check_branch
      %106 = sbr.rel (0) target = $region45
    $region44: #{tpu_custom_call.1} parent=1 // pred_region
      _
    $region45: #{tpu_custom_call.1} parent=1 // pred_fallthru
      _
    // Predicated region
    $region46: #{tpu_custom_call.1} parent=1 // pred_check
      _
    $region47: #{tpu_custom_call.1} parent=1 // pred_check_branch
      %108 = sbr.rel (0) target = $region49
    $region48: #{tpu_custom_call.1} parent=1 // pred_region
      %110 = vsyncadd [#allocation12], 0
      %s111 = sshll.u32 %s11, 4
      %s112 = int_to_ptr.hbm [resolvable:$true] %s111
      %s113 = sshll.u32 [#allocation13], 4
      %s114 = int_to_ptr.vmem [resolvable:$true] %s113
      %119 = dma.hbm_to_vmem [thread:$0]  %s112, 1024, %s114, [#allocation12], 64, 64, 4
    $region49: #{tpu_custom_call.1} parent=1 // pred_fallthru
      _
    // Predicated region
    $region50: #{tpu_custom_call.1} parent=1 // pred_check
      _
    $region51: #{tpu_custom_call.1} parent=1 // pred_check_branch
      %121 = sbr.rel (0) target = $region53
    $region52: #{tpu_custom_call.1} parent=1 // pred_region
      _
    $region53: #{tpu_custom_call.1} parent=1 // pred_fallthru
      _
    // Predicated region
    $region54: #{tpu_custom_call.1} parent=1 // pred_check
      _
    $region55: #{tpu_custom_call.1} parent=1 // pred_check_branch
      %123 = sbr.rel (0) target = $region57
    $region56: #{tpu_custom_call.1} parent=1 // pred_region
      %125 = dma.done [#allocation3], 2048
    $region57: #{tpu_custom_call.1} parent=1 // pred_fallthru
      _
    // Predicated region
    $region58: #{tpu_custom_call.1} parent=1 // pred_check
      _
    $region59: #{tpu_custom_call.1} parent=1 // pred_check_branch
      %127 = sbr.rel (0) target = $region61
    $region60: #{tpu_custom_call.1} parent=1 // pred_region
      %129 = dma.done [#allocation6], 16
    $region61: #{tpu_custom_call.1} parent=1 // pred_fallthru
      _
    // Predicated region
    $region62: #{tpu_custom_call.1} parent=1 // pred_check
      _
    $region63: #{tpu_custom_call.1} parent=1 // pred_check_branch
      %131 = sbr.rel (0) target = $region65
    $region64: #{tpu_custom_call.1} parent=1 // pred_region
      %133 = dma.done [#allocation6], 16
    $region65: #{tpu_custom_call.1} parent=1 // pred_fallthru
      _
    // Predicated region
    $region66: #{tpu_custom_call.1} parent=1 // pred_check
      _
    $region67: #{tpu_custom_call.1} parent=1 // pred_check_branch
      %135 = sbr.rel (0) target = $region69
    $region68: #{tpu_custom_call.1} parent=1 // pred_region
      %137 = dma.done [#allocation9], 3072
    $region69: #{tpu_custom_call.1} parent=1 // pred_fallthru
      _
    // Predicated region
    $region70: #{tpu_custom_call.1} parent=1 // pred_check
      _
    $region71: #{tpu_custom_call.1} parent=1 // pred_check_branch
      %139 = sbr.rel (0) target = $region73
    $region72: #{tpu_custom_call.1} parent=1 // pred_region
      %141 = dma.done [#allocation9], 2048
    $region73: #{tpu_custom_call.1} parent=1 // pred_fallthru
      _
    // Predicated region
    $region74: #{tpu_custom_call.1} parent=1 // pred_check
      _
    $region75: #{tpu_custom_call.1} parent=1 // pred_check_branch
      %143 = sbr.rel (0) target = $region77
    $region76: #{tpu_custom_call.1} parent=1 // pred_region
      %145 = dma.done [#allocation12], 1024
    $region77: #{tpu_custom_call.1} parent=1 // pred_fallthru
      _
    // Predicated region
    $region78: #{tpu_custom_call.1} parent=1 // pred_check
      _
    $region79: #{tpu_custom_call.1} parent=1 // pred_check_branch
      %147 = sbr.rel (0) target = $region81
    $region80: #{tpu_custom_call.1} parent=1 // pred_region
      %149 = dma.done [#allocation12], 1024
    $region81: #{tpu_custom_call.1} parent=1 // pred_fallthru
      _
    %v151 = vld [vmem:[#allocation2] sm:$0xff]
    %v152 = vld [vmem:[#allocation2 + $0x8] sm:$0xff]
    %v153 = vld [vmem:[#allocation2 + $0x10] sm:$0xff]
    %v154 = vld [vmem:[#allocation2 + $0x18] sm:$0xff]
    %v155 = vld [vmem:[#allocation2 + $0x20] sm:$0xff]
    %v156 = vld [vmem:[#allocation2 + $0x28] sm:$0xff]
    %v157 = vld [vmem:[#allocation2 + $0x30] sm:$0xff]
    %v158 = vld [vmem:[#allocation2 + $0x38] sm:$0xff]
    %v159 = vld [vmem:[#allocation2 + $0x40] sm:$0xff]
    %v160 = vld [vmem:[#allocation2 + $0x48] sm:$0xff]
    %v161 = vld [vmem:[#allocation2 + $0x50] sm:$0xff]
    %v162 = vld [vmem:[#allocation2 + $0x58] sm:$0xff]
    %v163 = vld [vmem:[#allocation2 + $0x60] sm:$0xff]
    %v164 = vld [vmem:[#allocation2 + $0x68] sm:$0xff]
    %v165 = vld [vmem:[#allocation2 + $0x70] sm:$0xff]
    %v166 = vld [vmem:[#allocation2 + $0x78] sm:$0xff]
    %v167 = vld [vmem:[#allocation5] sm:$0x1]
    %v169 = vperm.slane %v167, 0
    %v171 = vmul.f32 %v151, %v169
    %v172 = vmul.f32 %v152, %v169
    %v173 = vmul.f32 %v153, %v169
    %v174 = vmul.f32 %v154, %v169
    %v175 = vmul.f32 %v155, %v169
    %v176 = vmul.f32 %v156, %v169
    %v177 = vmul.f32 %v157, %v169
    %v178 = vmul.f32 %v158, %v169
    %v179 = vmul.f32 %v159, %v169
    %v180 = vmul.f32 %v160, %v169
    %v181 = vmul.f32 %v161, %v169
    %v182 = vmul.f32 %v162, %v169
    %v183 = vmul.f32 %v163, %v169
    %v184 = vmul.f32 %v164, %v169
    %v185 = vmul.f32 %v165, %v169
    %v186 = vmul.f32 %v166, %v169
    %v187 = vld [vmem:[#allocation7] sm:$0x1]
    %v189 = vperm.slane %v187, 0
    %v191 = vadd.f32 %v171, %v189
    %v192 = vadd.f32 %v172, %v189
    %v193 = vadd.f32 %v173, %v189
    %v194 = vadd.f32 %v174, %v189
    %v195 = vadd.f32 %v175, %v189
    %v196 = vadd.f32 %v176, %v189
    %v197 = vadd.f32 %v177, %v189
    %v198 = vadd.f32 %v178, %v189
    %v199 = vadd.f32 %v179, %v189
    %v200 = vadd.f32 %v180, %v189
    %v201 = vadd.f32 %v181, %v189
    %v202 = vadd.f32 %v182, %v189
    %v203 = vadd.f32 %v183, %v189
    %v204 = vadd.f32 %v184, %v189
    %v205 = vadd.f32 %v185, %v189
    %v206 = vadd.f32 %v186, %v189
    %v207 = vpack.c.bf16 %v192, %v191
    %v208 = vpack.c.bf16 %v194, %v193
    %v209 = vpack.c.bf16 %v196, %v195
    %v210 = vpack.c.bf16 %v198, %v197
    %v211 = vpack.c.bf16 %v200, %v199
    %v212 = vpack.c.bf16 %v202, %v201
    %v213 = vpack.c.bf16 %v204, %v203
    %v214 = vpack.c.bf16 %v206, %v205
    %v215 = vld [vmem:[#allocation8] sm:$0xff]
    %v216 = vld [vmem:[#allocation8 + $0x8] sm:$0xf]
    %v217 = vld [vmem:[#allocation8 + $0xc] sm:$0xff]
    %v218 = vld [vmem:[#allocation8 + $0x14] sm:$0xf]
    %v219 = vld [vmem:[#allocation8 + $0x18] sm:$0xff]
    %v220 = vld [vmem:[#allocation8 + $0x20] sm:$0xf]
    %v221 = vld [vmem:[#allocation8 + $0x24] sm:$0xff]
    %v222 = vld [vmem:[#allocation8 + $0x2c] sm:$0xf]
    %v223 = vld [vmem:[#allocation8 + $0x30] sm:$0xff]
    %v224 = vld [vmem:[#allocation8 + $0x38] sm:$0xf]
    %v225 = vld [vmem:[#allocation8 + $0x3c] sm:$0xff]
    %v226 = vld [vmem:[#allocation8 + $0x44] sm:$0xf]
    %v227 = vld [vmem:[#allocation8 + $0x48] sm:$0xff]
    %v228 = vld [vmem:[#allocation8 + $0x50] sm:$0xf]
    %v229 = vld [vmem:[#allocation8 + $0x54] sm:$0xff]
    %v230 = vld [vmem:[#allocation8 + $0x5c] sm:$0xf]
    %v231 = vld [vmem:[#allocation8 + $0x60] sm:$0xff]
    %v232 = vld [vmem:[#allocation8 + $0x68] sm:$0xf]
    %v233 = vld [vmem:[#allocation8 + $0x6c] sm:$0xff]
    %v234 = vld [vmem:[#allocation8 + $0x74] sm:$0xf]
    %v235 = vld [vmem:[#allocation8 + $0x78] sm:$0xff]
    %v236 = vld [vmem:[#allocation8 + $0x80] sm:$0xf]
    %v237 = vld [vmem:[#allocation8 + $0x84] sm:$0xff]
    %v238 = vld [vmem:[#allocation8 + $0x8c] sm:$0xf]
    %v239 = vld [vmem:[#allocation8 + $0x90] sm:$0xff]
    %v240 = vld [vmem:[#allocation8 + $0x98] sm:$0xf]
    %v241 = vld [vmem:[#allocation8 + $0x9c] sm:$0xff]
    %v242 = vld [vmem:[#allocation8 + $0xa4] sm:$0xf]
    %v243 = vld [vmem:[#allocation8 + $0xa8] sm:$0xff]
    %v244 = vld [vmem:[#allocation8 + $0xb0] sm:$0xf]
    %v245 = vld [vmem:[#allocation8 + $0xb4] sm:$0xff]
    %v246 = vld [vmem:[#allocation8 + $0xbc] sm:$0xf]
    %v247 = vld [vmem:[%s4] sm:$0x7]
    %v249 = vperm.slane %v247, 0
    %v250 = vperm.slane %v247, 1
    %v251 = vperm.slane %v247, 2
    %v287 = vunpack.c.l.b16 %v215
    %v288 = vunpack.c.h.b16 %v215
    %v289 = vunpack.c.l.b16 %v216
    %v290 = vunpack.c.l.b16 %v217
    %v291 = vunpack.c.h.b16 %v217
    %v292 = vunpack.c.l.b16 %v218
    %v293 = vunpack.c.l.b16 %v219
    %v294 = vunpack.c.h.b16 %v219
    %v295 = vunpack.c.l.b16 %v220
    %v296 = vunpack.c.l.b16 %v221
    %v297 = vunpack.c.h.b16 %v221
    %v298 = vunpack.c.l.b16 %v222
    %v299 = vunpack.c.l.b16 %v223
    %v300 = vunpack.c.h.b16 %v223
    %v301 = vunpack.c.l.b16 %v224
    %v302 = vunpack.c.l.b16 %v225
    %v303 = vunpack.c.h.b16 %v225
    %v304 = vunpack.c.l.b16 %v226
    %v305 = vunpack.c.l.b16 %v227
    %v306 = vunpack.c.h.b16 %v227
    %v307 = vunpack.c.l.b16 %v228
    %v308 = vunpack.c.l.b16 %v229
    %v309 = vunpack.c.h.b16 %v229
    %v310 = vunpack.c.l.b16 %v230
    %v311 = vunpack.c.l.b16 %v231
    %v312 = vunpack.c.h.b16 %v231
    %v313 = vunpack.c.l.b16 %v232
    %v314 = vunpack.c.l.b16 %v233
    %v315 = vunpack.c.h.b16 %v233
    %v316 = vunpack.c.l.b16 %v234
    %v317 = vunpack.c.l.b16 %v235
    %v318 = vunpack.c.h.b16 %v235
    %v319 = vunpack.c.l.b16 %v236
    %v320 = vunpack.c.l.b16 %v237
    %v321 = vunpack.c.h.b16 %v237
    %v322 = vunpack.c.l.b16 %v238
    %v323 = vunpack.c.l.b16 %v239
    %v324 = vunpack.c.h.b16 %v239
    %v325 = vunpack.c.l.b16 %v240
    %v326 = vunpack.c.l.b16 %v241
    %v327 = vunpack.c.h.b16 %v241
    %v328 = vunpack.c.l.b16 %v242
    %v329 = vunpack.c.l.b16 %v243
    %v330 = vunpack.c.h.b16 %v243
    %v331 = vunpack.c.l.b16 %v244
    %v332 = vunpack.c.l.b16 %v245
    %v333 = vunpack.c.h.b16 %v245
    %v334 = vunpack.c.l.b16 %v246
    %v335 = vpack.c.b16 %v290, %v287
    %v336 = vpack.c.b16 %v291, %v288
    %v337 = vpack.c.b16 %v292, %v289
    %v338 = vpack.c.b16 %v296, %v293
    %v339 = vpack.c.b16 %v297, %v294
    %v340 = vpack.c.b16 %v298, %v295
    %v341 = vpack.c.b16 %v302, %v299
    %v342 = vpack.c.b16 %v303, %v300
    %v343 = vpack.c.b16 %v304, %v301
    %v344 = vpack.c.b16 %v308, %v305
    %v345 = vpack.c.b16 %v309, %v306
    %v346 = vpack.c.b16 %v310, %v307
    %v347 = vpack.c.b16 %v314, %v311
    %v348 = vpack.c.b16 %v315, %v312
    %v349 = vpack.c.b16 %v316, %v313
    %v350 = vpack.c.b16 %v320, %v317
    %v351 = vpack.c.b16 %v321, %v318
    %v352 = vpack.c.b16 %v322, %v319
    %v353 = vpack.c.b16 %v326, %v323
    %v354 = vpack.c.b16 %v327, %v324
    %v355 = vpack.c.b16 %v328, %v325
    %v356 = vpack.c.b16 %v332, %v329
    %v357 = vpack.c.b16 %v333, %v330
    %v358 = vpack.c.b16 %v334, %v331
    %383 = vmatpush.bf16.msra.mxu0 %v356
    %384 = vmatpush.bf16.msra.mxu0 %v353
    %385 = vmatpush.bf16.msra.mxu0 %v350
    %386 = vmatpush.bf16.msra.mxu0 %v347
    %387 = vmatpush.bf16.msra.mxu0 %v344
    %388 = vmatpush.bf16.msra.mxu0 %v341
    %389 = vmatpush.bf16.msra.mxu0 %v338
    %390 = vmatpush.bf16.msra.mxu0 %v335
    %391 = vmatmul.bf16.gmra.mxu0 %v207
    %v392 = vpop.f32.mrf.mxu0
    %v393 = vadd.f32 %v249, %v392
    %v394 = vpop.f32.mrf.mxu0
    %v395 = vadd.f32 %v249, %v394
    %396 = vmatmul.bf16.gmra.mxu0 %v208
    %v397 = vpop.f32.mrf.mxu0
    %v398 = vadd.f32 %v249, %v397
    %v399 = vpop.f32.mrf.mxu0
    %v400 = vadd.f32 %v249, %v399
    %401 = vmatmul.bf16.gmra.mxu0 %v209
    %v402 = vpop.f32.mrf.mxu0
    %v403 = vadd.f32 %v249, %v402
    %v404 = vpop.f32.mrf.mxu0
    %v405 = vadd.f32 %v249, %v404
    %406 = vmatmul.bf16.gmra.mxu0 %v210
    %v407 = vpop.f32.mrf.mxu0
    %v408 = vadd.f32 %v249, %v407
    %v409 = vpop.f32.mrf.mxu0
    %v410 = vadd.f32 %v249, %v409
    %411 = vmatmul.bf16.gmra.mxu0 %v211
    %v412 = vpop.f32.mrf.mxu0
    %v413 = vadd.f32 %v249, %v412
    %v414 = vpop.f32.mrf.mxu0
    %v415 = vadd.f32 %v249, %v414
    %416 = vmatmul.bf16.gmra.mxu0 %v212
    %v417 = vpop.f32.mrf.mxu0
    %v418 = vadd.f32 %v249, %v417
    %v419 = vpop.f32.mrf.mxu0
    %v420 = vadd.f32 %v249, %v419
    %421 = vmatmul.bf16.gmra.mxu0 %v213
    %v422 = vpop.f32.mrf.mxu0
    %v423 = vadd.f32 %v249, %v422
    %v424 = vpop.f32.mrf.mxu0
    %v425 = vadd.f32 %v249, %v424
    %426 = vmatmul.bf16.gmra.mxu0 %v214
    %v427 = vpop.f32.mrf.mxu0
    %v428 = vadd.f32 %v249, %v427
    %v429 = vpop.f32.mrf.mxu0
    %v430 = vadd.f32 %v249, %v429
    %431 = vdwg.mxu0
    %432 = vmatpush.bf16.msra.mxu0 %v357
    %433 = vmatpush.bf16.msra.mxu0 %v354
    %434 = vmatpush.bf16.msra.mxu0 %v351
    %435 = vmatpush.bf16.msra.mxu0 %v348
    %436 = vmatpush.bf16.msra.mxu0 %v345
    %437 = vmatpush.bf16.msra.mxu0 %v342
    %438 = vmatpush.bf16.msra.mxu0 %v339
    %439 = vmatpush.bf16.msra.mxu0 %v336
    %440 = vmatmul.bf16.gmra.mxu0 %v207
    %v441 = vpop.f32.mrf.mxu0
    %v442 = vadd.f32 %v250, %v441
    %v443 = vpop.f32.mrf.mxu0
    %v444 = vadd.f32 %v250, %v443
    %445 = vmatmul.bf16.gmra.mxu0 %v208
    %v446 = vpop.f32.mrf.mxu0
    %v447 = vadd.f32 %v250, %v446
    %v448 = vpop.f32.mrf.mxu0
    %v449 = vadd.f32 %v250, %v448
    %450 = vmatmul.bf16.gmra.mxu0 %v209
    %v451 = vpop.f32.mrf.mxu0
    %v452 = vadd.f32 %v250, %v451
    %v453 = vpop.f32.mrf.mxu0
    %v454 = vadd.f32 %v250, %v453
    %455 = vmatmul.bf16.gmra.mxu0 %v210
    %v456 = vpop.f32.mrf.mxu0
    %v457 = vadd.f32 %v250, %v456
    %v458 = vpop.f32.mrf.mxu0
    %v459 = vadd.f32 %v250, %v458
    %460 = vmatmul.bf16.gmra.mxu0 %v211
    %v461 = vpop.f32.mrf.mxu0
    %v462 = vadd.f32 %v250, %v461
    %v463 = vpop.f32.mrf.mxu0
    %v464 = vadd.f32 %v250, %v463
    %465 = vmatmul.bf16.gmra.mxu0 %v212
    %v466 = vpop.f32.mrf.mxu0
    %v467 = vadd.f32 %v250, %v466
    %v468 = vpop.f32.mrf.mxu0
    %v469 = vadd.f32 %v250, %v468
    %470 = vmatmul.bf16.gmra.mxu0 %v213
    %v471 = vpop.f32.mrf.mxu0
    %v472 = vadd.f32 %v250, %v471
    %v473 = vpop.f32.mrf.mxu0
    %v474 = vadd.f32 %v250, %v473
    %475 = vmatmul.bf16.gmra.mxu0 %v214
    %v476 = vpop.f32.mrf.mxu0
    %v477 = vadd.f32 %v250, %v476
    %v478 = vpop.f32.mrf.mxu0
    %v479 = vadd.f32 %v250, %v478
    %480 = vdwg.mxu0
    %481 = vmatpush.bf16.msra.mxu0 %v358
    %482 = vmatpush.bf16.msra.mxu0 %v355
    %483 = vmatpush.bf16.msra.mxu0 %v352
    %484 = vmatpush.bf16.msra.mxu0 %v349
    %485 = vmatpush.bf16.msra.mxu0 %v346
    %486 = vmatpush.bf16.msra.mxu0 %v343
    %487 = vmatpush.bf16.msra.mxu0 %v340
    %488 = vmatpush.bf16.msra.mxu0 %v337
    %489 = vmatmul.bf16.gmra.mxu0 %v207
    %v490 = vpop.f32.mrf.mxu0
    %v491 = vadd.f32 %v251, %v490
    %v492 = vpop.f32.mrf.mxu0
    %v493 = vadd.f32 %v251, %v492
    %494 = vmatmul.bf16.gmra.mxu0 %v208
    %v495 = vpop.f32.mrf.mxu0
    %v496 = vadd.f32 %v251, %v495
    %v497 = vpop.f32.mrf.mxu0
    %v498 = vadd.f32 %v251, %v497
    %499 = vmatmul.bf16.gmra.mxu0 %v209
    %v500 = vpop.f32.mrf.mxu0
    %v501 = vadd.f32 %v251, %v500
    %v502 = vpop.f32.mrf.mxu0
    %v503 = vadd.f32 %v251, %v502
    %504 = vmatmul.bf16.gmra.mxu0 %v210
    %v505 = vpop.f32.mrf.mxu0
    %v506 = vadd.f32 %v251, %v505
    %v507 = vpop.f32.mrf.mxu0
    %v508 = vadd.f32 %v251, %v507
    %509 = vmatmul.bf16.gmra.mxu0 %v211
    %v510 = vpop.f32.mrf.mxu0
    %v511 = vadd.f32 %v251, %v510
    %v512 = vpop.f32.mrf.mxu0
    %v513 = vadd.f32 %v251, %v512
    %514 = vmatmul.bf16.gmra.mxu0 %v212
    %v515 = vpop.f32.mrf.mxu0
    %v516 = vadd.f32 %v251, %v515
    %v517 = vpop.f32.mrf.mxu0
    %v518 = vadd.f32 %v251, %v517
    %519 = vmatmul.bf16.gmra.mxu0 %v213
    %v520 = vpop.f32.mrf.mxu0
    %v521 = vadd.f32 %v251, %v520
    %v522 = vpop.f32.mrf.mxu0
    %v523 = vadd.f32 %v251, %v522
    %524 = vmatmul.bf16.gmra.mxu0 %v214
    %v525 = vpop.f32.mrf.mxu0
    %v526 = vadd.f32 %v251, %v525
    %v527 = vpop.f32.mrf.mxu0
    %v528 = vadd.f32 %v251, %v527
    %529 = vdwg.mxu0
    %v530 = vpack.c.bf16 %v393, %v393
    %v531 = vpack.c.bf16 %v395, %v395
    %v532 = vpack.c.bf16 %v398, %v398
    %v533 = vpack.c.bf16 %v400, %v400
    %v534 = vpack.c.bf16 %v403, %v403
    %v535 = vpack.c.bf16 %v405, %v405
    %v536 = vpack.c.bf16 %v408, %v408
    %v537 = vpack.c.bf16 %v410, %v410
    %v538 = vpack.c.bf16 %v413, %v413
    %v539 = vpack.c.bf16 %v415, %v415
    %v540 = vpack.c.bf16 %v418, %v418
    %v541 = vpack.c.bf16 %v420, %v420
    %v542 = vpack.c.bf16 %v423, %v423
    %v543 = vpack.c.bf16 %v425, %v425
    %v544 = vpack.c.bf16 %v428, %v428
    %v545 = vpack.c.bf16 %v430, %v430
    %v546 = vpack.c.bf16 %v442, %v442
    %v547 = vpack.c.bf16 %v444, %v444
    %v548 = vpack.c.bf16 %v447, %v447
    %v549 = vpack.c.bf16 %v449, %v449
    %v550 = vpack.c.bf16 %v452, %v452
    %v551 = vpack.c.bf16 %v454, %v454
    %v552 = vpack.c.bf16 %v457, %v457
    %v553 = vpack.c.bf16 %v459, %v459
    %v554 = vpack.c.bf16 %v462, %v462
    %v555 = vpack.c.bf16 %v464, %v464
    %v556 = vpack.c.bf16 %v467, %v467
    %v557 = vpack.c.bf16 %v469, %v469
    %v558 = vpack.c.bf16 %v472, %v472
    %v559 = vpack.c.bf16 %v474, %v474
    %v560 = vpack.c.bf16 %v477, %v477
    %v561 = vpack.c.bf16 %v479, %v479
    %v562 = vpack.c.bf16 %v491, %v491
    %v563 = vpack.c.bf16 %v493, %v493
    %v564 = vpack.c.bf16 %v496, %v496
    %v565 = vpack.c.bf16 %v498, %v498
    %v566 = vpack.c.bf16 %v501, %v501
    %v567 = vpack.c.bf16 %v503, %v503
    %v568 = vpack.c.bf16 %v506, %v506
    %v569 = vpack.c.bf16 %v508, %v508
    %v570 = vpack.c.bf16 %v511, %v511
    %v571 = vpack.c.bf16 %v513, %v513
    %v572 = vpack.c.bf16 %v516, %v516
    %v573 = vpack.c.bf16 %v518, %v518
    %v574 = vpack.c.bf16 %v521, %v521
    %v575 = vpack.c.bf16 %v523, %v523
    %v576 = vpack.c.bf16 %v526, %v526
    %v577 = vpack.c.bf16 %v528, %v528
    %586 = vrot.lane.b32.xlu0 %v530, 96
    %v587 = vpop.permute.xlu0 %586
    %588 = vrot.lane.b32.xlu0 %v531, 96
    %v589 = vpop.permute.xlu0 %588
    %590 = vrot.lane.b32.xlu0 %v532, 96
    %v591 = vpop.permute.xlu0 %590
    %592 = vrot.lane.b32.xlu0 %v533, 96
    %v593 = vpop.permute.xlu0 %592
    %594 = vrot.lane.b32.xlu0 %v534, 96
    %v595 = vpop.permute.xlu0 %594
    %596 = vrot.lane.b32.xlu0 %v535, 96
    %v597 = vpop.permute.xlu0 %596
    %598 = vrot.lane.b32.xlu0 %v536, 96
    %v599 = vpop.permute.xlu0 %598
    %600 = vrot.lane.b32.xlu0 %v537, 96
    %v601 = vpop.permute.xlu0 %600
    %602 = vrot.lane.b32.xlu0 %v530, 64
    %v603 = vpop.permute.xlu0 %602
    %604 = vrot.lane.b32.xlu0 %v531, 64
    %v605 = vpop.permute.xlu0 %604
    %606 = vrot.lane.b32.xlu0 %v532, 64
    %v607 = vpop.permute.xlu0 %606
    %608 = vrot.lane.b32.xlu0 %v533, 64
    %v609 = vpop.permute.xlu0 %608
    %610 = vrot.lane.b32.xlu0 %v534, 64
    %v611 = vpop.permute.xlu0 %610
    %612 = vrot.lane.b32.xlu0 %v535, 64
    %v613 = vpop.permute.xlu0 %612
    %614 = vrot.lane.b32.xlu0 %v536, 64
    %v615 = vpop.permute.xlu0 %614
    %616 = vrot.lane.b32.xlu0 %v537, 64
    %v617 = vpop.permute.xlu0 %616
    %618 = vrot.lane.b32.xlu0 %v530, 32
    %v619 = vpop.permute.xlu0 %618
    %620 = vrot.lane.b32.xlu0 %v531, 32
    %v621 = vpop.permute.xlu0 %620
    %622 = vrot.lane.b32.xlu0 %v532, 32
    %v623 = vpop.permute.xlu0 %622
    %624 = vrot.lane.b32.xlu0 %v533, 32
    %v625 = vpop.permute.xlu0 %624
    %626 = vrot.lane.b32.xlu0 %v534, 32
    %v627 = vpop.permute.xlu0 %626
    %628 = vrot.lane.b32.xlu0 %v535, 32
    %v629 = vpop.permute.xlu0 %628
    %630 = vrot.lane.b32.xlu0 %v536, 32
    %v631 = vpop.permute.xlu0 %630
    %632 = vrot.lane.b32.xlu0 %v537, 32
    %v633 = vpop.permute.xlu0 %632
    %642 = vrot.lane.b32.xlu0 %v538, 96
    %v643 = vpop.permute.xlu0 %642
    %644 = vrot.lane.b32.xlu0 %v539, 96
    %v645 = vpop.permute.xlu0 %644
    %646 = vrot.lane.b32.xlu0 %v540, 96
    %v647 = vpop.permute.xlu0 %646
    %648 = vrot.lane.b32.xlu0 %v541, 96
    %v649 = vpop.permute.xlu0 %648
    %650 = vrot.lane.b32.xlu0 %v542, 96
    %v651 = vpop.permute.xlu0 %650
    %652 = vrot.lane.b32.xlu0 %v543, 96
    %v653 = vpop.permute.xlu0 %652
    %654 = vrot.lane.b32.xlu0 %v544, 96
    %v655 = vpop.permute.xlu0 %654
    %656 = vrot.lane.b32.xlu0 %v545, 96
    %v657 = vpop.permute.xlu0 %656
    %658 = vrot.lane.b32.xlu0 %v538, 64
    %v659 = vpop.permute.xlu0 %658
    %660 = vrot.lane.b32.xlu0 %v539, 64
    %v661 = vpop.permute.xlu0 %660
    %662 = vrot.lane.b32.xlu0 %v540, 64
    %v663 = vpop.permute.xlu0 %662
    %664 = vrot.lane.b32.xlu0 %v541, 64
    %v665 = vpop.permute.xlu0 %664
    %666 = vrot.lane.b32.xlu0 %v542, 64
    %v667 = vpop.permute.xlu0 %666
    %668 = vrot.lane.b32.xlu0 %v543, 64
    %v669 = vpop.permute.xlu0 %668
    %670 = vrot.lane.b32.xlu0 %v544, 64
    %v671 = vpop.permute.xlu0 %670
    %672 = vrot.lane.b32.xlu0 %v545, 64
    %v673 = vpop.permute.xlu0 %672
    %674 = vrot.lane.b32.xlu0 %v538, 32
    %v675 = vpop.permute.xlu0 %674
    %676 = vrot.lane.b32.xlu0 %v539, 32
    %v677 = vpop.permute.xlu0 %676
    %678 = vrot.lane.b32.xlu0 %v540, 32
    %v679 = vpop.permute.xlu0 %678
    %680 = vrot.lane.b32.xlu0 %v541, 32
    %v681 = vpop.permute.xlu0 %680
    %682 = vrot.lane.b32.xlu0 %v542, 32
    %v683 = vpop.permute.xlu0 %682
    %684 = vrot.lane.b32.xlu0 %v543, 32
    %v685 = vpop.permute.xlu0 %684
    %686 = vrot.lane.b32.xlu0 %v544, 32
    %v687 = vpop.permute.xlu0 %686
    %688 = vrot.lane.b32.xlu0 %v545, 32
    %v689 = vpop.permute.xlu0 %688
    %698 = vrot.lane.b32.xlu0 %v546, 96
    %v699 = vpop.permute.xlu0 %698
    %700 = vrot.lane.b32.xlu0 %v547, 96
    %v701 = vpop.permute.xlu0 %700
    %702 = vrot.lane.b32.xlu0 %v548, 96
    %v703 = vpop.permute.xlu0 %702
    %704 = vrot.lane.b32.xlu0 %v549, 96
    %v705 = vpop.permute.xlu0 %704
    %706 = vrot.lane.b32.xlu0 %v550, 96
    %v707 = vpop.permute.xlu0 %706
    %708 = vrot.lane.b32.xlu0 %v551, 96
    %v709 = vpop.permute.xlu0 %708
    %710 = vrot.lane.b32.xlu0 %v552, 96
    %v711 = vpop.permute.xlu0 %710
    %712 = vrot.lane.b32.xlu0 %v553, 96
    %v713 = vpop.permute.xlu0 %712
    %714 = vrot.lane.b32.xlu0 %v546, 64
    %v715 = vpop.permute.xlu0 %714
    %716 = vrot.lane.b32.xlu0 %v547, 64
    %v717 = vpop.permute.xlu0 %716
    %718 = vrot.lane.b32.xlu0 %v548, 64
    %v719 = vpop.permute.xlu0 %718
    %720 = vrot.lane.b32.xlu0 %v549, 64
    %v721 = vpop.permute.xlu0 %720
    %722 = vrot.lane.b32.xlu0 %v550, 64
    %v723 = vpop.permute.xlu0 %722
    %724 = vrot.lane.b32.xlu0 %v551, 64
    %v725 = vpop.permute.xlu0 %724
    %726 = vrot.lane.b32.xlu0 %v552, 64
    %v727 = vpop.permute.xlu0 %726
    %728 = vrot.lane.b32.xlu0 %v553, 64
    %v729 = vpop.permute.xlu0 %728
    %730 = vrot.lane.b32.xlu0 %v546, 32
    %v731 = vpop.permute.xlu0 %730
    %732 = vrot.lane.b32.xlu0 %v547, 32
    %v733 = vpop.permute.xlu0 %732
    %734 = vrot.lane.b32.xlu0 %v548, 32
    %v735 = vpop.permute.xlu0 %734
    %736 = vrot.lane.b32.xlu0 %v549, 32
    %v737 = vpop.permute.xlu0 %736
    %738 = vrot.lane.b32.xlu0 %v550, 32
    %v739 = vpop.permute.xlu0 %738
    %740 = vrot.lane.b32.xlu0 %v551, 32
    %v741 = vpop.permute.xlu0 %740
    %742 = vrot.lane.b32.xlu0 %v552, 32
    %v743 = vpop.permute.xlu0 %742
    %744 = vrot.lane.b32.xlu0 %v553, 32
    %v745 = vpop.permute.xlu0 %744
    %754 = vrot.lane.b32.xlu0 %v554, 96
    %v755 = vpop.permute.xlu0 %754
    %756 = vrot.lane.b32.xlu0 %v555, 96
    %v757 = vpop.permute.xlu0 %756
    %758 = vrot.lane.b32.xlu0 %v556, 96
    %v759 = vpop.permute.xlu0 %758
    %760 = vrot.lane.b32.xlu0 %v557, 96
    %v761 = vpop.permute.xlu0 %760
    %762 = vrot.lane.b32.xlu0 %v558, 96
    %v763 = vpop.permute.xlu0 %762
    %764 = vrot.lane.b32.xlu0 %v559, 96
    %v765 = vpop.permute.xlu0 %764
    %766 = vrot.lane.b32.xlu0 %v560, 96
    %v767 = vpop.permute.xlu0 %766
    %768 = vrot.lane.b32.xlu0 %v561, 96
    %v769 = vpop.permute.xlu0 %768
    %770 = vrot.lane.b32.xlu0 %v554, 64
    %v771 = vpop.permute.xlu0 %770
    %772 = vrot.lane.b32.xlu0 %v555, 64
    %v773 = vpop.permute.xlu0 %772
    %774 = vrot.lane.b32.xlu0 %v556, 64
    %v775 = vpop.permute.xlu0 %774
    %776 = vrot.lane.b32.xlu0 %v557, 64
    %v777 = vpop.permute.xlu0 %776
    %778 = vrot.lane.b32.xlu0 %v558, 64
    %v779 = vpop.permute.xlu0 %778
    %780 = vrot.lane.b32.xlu0 %v559, 64
    %v781 = vpop.permute.xlu0 %780
    %782 = vrot.lane.b32.xlu0 %v560, 64
    %v783 = vpop.permute.xlu0 %782
    %784 = vrot.lane.b32.xlu0 %v561, 64
    %v785 = vpop.permute.xlu0 %784
    %786 = vrot.lane.b32.xlu0 %v554, 32
    %v787 = vpop.permute.xlu0 %786
    %788 = vrot.lane.b32.xlu0 %v555, 32
    %v789 = vpop.permute.xlu0 %788
    %790 = vrot.lane.b32.xlu0 %v556, 32
    %v791 = vpop.permute.xlu0 %790
    %792 = vrot.lane.b32.xlu0 %v557, 32
    %v793 = vpop.permute.xlu0 %792
    %794 = vrot.lane.b32.xlu0 %v558, 32
    %v795 = vpop.permute.xlu0 %794
    %796 = vrot.lane.b32.xlu0 %v559, 32
    %v797 = vpop.permute.xlu0 %796
    %798 = vrot.lane.b32.xlu0 %v560, 32
    %v799 = vpop.permute.xlu0 %798
    %800 = vrot.lane.b32.xlu0 %v561, 32
    %v801 = vpop.permute.xlu0 %800
    %810 = vrot.lane.b32.xlu0 %v562, 96
    %v811 = vpop.permute.xlu0 %810
    %812 = vrot.lane.b32.xlu0 %v563, 96
    %v813 = vpop.permute.xlu0 %812
    %814 = vrot.lane.b32.xlu0 %v564, 96
    %v815 = vpop.permute.xlu0 %814
    %816 = vrot.lane.b32.xlu0 %v565, 96
    %v817 = vpop.permute.xlu0 %816
    %818 = vrot.lane.b32.xlu0 %v566, 96
    %v819 = vpop.permute.xlu0 %818
    %820 = vrot.lane.b32.xlu0 %v567, 96
    %v821 = vpop.permute.xlu0 %820
    %822 = vrot.lane.b32.xlu0 %v568, 96
    %v823 = vpop.permute.xlu0 %822
    %824 = vrot.lane.b32.xlu0 %v569, 96
    %v825 = vpop.permute.xlu0 %824
    %826 = vrot.lane.b32.xlu0 %v562, 64
    %v827 = vpop.permute.xlu0 %826
    %828 = vrot.lane.b32.xlu0 %v563, 64
    %v829 = vpop.permute.xlu0 %828
    %830 = vrot.lane.b32.xlu0 %v564, 64
    %v831 = vpop.permute.xlu0 %830
    %832 = vrot.lane.b32.xlu0 %v565, 64
    %v833 = vpop.permute.xlu0 %832
    %834 = vrot.lane.b32.xlu0 %v566, 64
    %v835 = vpop.permute.xlu0 %834
    %836 = vrot.lane.b32.xlu0 %v567, 64
    %v837 = vpop.permute.xlu0 %836
    %838 = vrot.lane.b32.xlu0 %v568, 64
    %v839 = vpop.permute.xlu0 %838
    %840 = vrot.lane.b32.xlu0 %v569, 64
    %v841 = vpop.permute.xlu0 %840
    %842 = vrot.lane.b32.xlu0 %v562, 32
    %v843 = vpop.permute.xlu0 %842
    %844 = vrot.lane.b32.xlu0 %v563, 32
    %v845 = vpop.permute.xlu0 %844
    %846 = vrot.lane.b32.xlu0 %v564, 32
    %v847 = vpop.permute.xlu0 %846
    %848 = vrot.lane.b32.xlu0 %v565, 32
    %v849 = vpop.permute.xlu0 %848
    %850 = vrot.lane.b32.xlu0 %v566, 32
    %v851 = vpop.permute.xlu0 %850
    %852 = vrot.lane.b32.xlu0 %v567, 32
    %v853 = vpop.permute.xlu0 %852
    %854 = vrot.lane.b32.xlu0 %v568, 32
    %v855 = vpop.permute.xlu0 %854
    %856 = vrot.lane.b32.xlu0 %v569, 32
    %v857 = vpop.permute.xlu0 %856
    %866 = vrot.lane.b32.xlu0 %v570, 96
    %v867 = vpop.permute.xlu0 %866
    %868 = vrot.lane.b32.xlu0 %v571, 96
    %v869 = vpop.permute.xlu0 %868
    %870 = vrot.lane.b32.xlu0 %v572, 96
    %v871 = vpop.permute.xlu0 %870
    %872 = vrot.lane.b32.xlu0 %v573, 96
    %v873 = vpop.permute.xlu0 %872
    %874 = vrot.lane.b32.xlu0 %v574, 96
    %v875 = vpop.permute.xlu0 %874
    %876 = vrot.lane.b32.xlu0 %v575, 96
    %v877 = vpop.permute.xlu0 %876
    %878 = vrot.lane.b32.xlu0 %v576, 96
    %v879 = vpop.permute.xlu0 %878
    %880 = vrot.lane.b32.xlu0 %v577, 96
    %v881 = vpop.permute.xlu0 %880
    %882 = vrot.lane.b32.xlu0 %v570, 64
    %v883 = vpop.permute.xlu0 %882
    %884 = vrot.lane.b32.xlu0 %v571, 64
    %v885 = vpop.permute.xlu0 %884
    %886 = vrot.lane.b32.xlu0 %v572, 64
    %v887 = vpop.permute.xlu0 %886
    %888 = vrot.lane.b32.xlu0 %v573, 64
    %v889 = vpop.permute.xlu0 %888
    %890 = vrot.lane.b32.xlu0 %v574, 64
    %v891 = vpop.permute.xlu0 %890
    %892 = vrot.lane.b32.xlu0 %v575, 64
    %v893 = vpop.permute.xlu0 %892
    %894 = vrot.lane.b32.xlu0 %v576, 64
    %v895 = vpop.permute.xlu0 %894
    %896 = vrot.lane.b32.xlu0 %v577, 64
    %v897 = vpop.permute.xlu0 %896
    %898 = vrot.lane.b32.xlu0 %v570, 32
    %v899 = vpop.permute.xlu0 %898
    %900 = vrot.lane.b32.xlu0 %v571, 32
    %v901 = vpop.permute.xlu0 %900
    %902 = vrot.lane.b32.xlu0 %v572, 32
    %v903 = vpop.permute.xlu0 %902
    %904 = vrot.lane.b32.xlu0 %v573, 32
    %v905 = vpop.permute.xlu0 %904
    %906 = vrot.lane.b32.xlu0 %v574, 32
    %v907 = vpop.permute.xlu0 %906
    %908 = vrot.lane.b32.xlu0 %v575, 32
    %v909 = vpop.permute.xlu0 %908
    %910 = vrot.lane.b32.xlu0 %v576, 32
    %v911 = vpop.permute.xlu0 %910
    %912 = vrot.lane.b32.xlu0 %v577, 32
    %v913 = vpop.permute.xlu0 %912
    %v914 = vunpack.c.l.b16 %v530
    %v915 = vunpack.c.l.b16 %v531
    %v916 = vunpack.c.l.b16 %v532
    %v917 = vunpack.c.l.b16 %v533
    %v918 = vunpack.c.l.b16 %v534
    %v919 = vunpack.c.l.b16 %v535
    %v920 = vunpack.c.l.b16 %v536
    %v921 = vunpack.c.l.b16 %v537
    %v922 = vpack.c.b16 %v915, %v914
    %v923 = vpack.c.b16 %v917, %v916
    %v924 = vpack.c.b16 %v919, %v918
    %v925 = vpack.c.b16 %v921, %v920
    %v926 = vunpack.c.l.b16 %v546
    %v927 = vunpack.c.l.b16 %v547
    %v928 = vunpack.c.l.b16 %v548
    %v929 = vunpack.c.l.b16 %v549
    %v930 = vunpack.c.l.b16 %v550
    %v931 = vunpack.c.l.b16 %v551
    %v932 = vunpack.c.l.b16 %v552
    %v933 = vunpack.c.l.b16 %v553
    %v934 = vpack.c.b16 %v927, %v926
    %v935 = vpack.c.b16 %v929, %v928
    %v936 = vpack.c.b16 %v931, %v930
    %v937 = vpack.c.b16 %v933, %v932
    %vm938 = vcmask 261120
    %v940 = vsel %vm938, %v922, 0
    %v943 = vsel %vm938, %v923, 0
    %v946 = vsel %vm938, %v924, 0
    %v949 = vsel %vm938, %v925, 0
    %v952 = vsel %vm938, %v934, 0
    %v955 = vsel %vm938, %v935, 0
    %v958 = vsel %vm938, %v936, 0
    %v961 = vsel %vm938, %v937, 0
    %963 = vmatpush.bf16.xpose.msra.mxu0 0
    %964 = vmatpush.bf16.xpose.msra.mxu0 0
    %965 = vmatpush.bf16.xpose.msra.mxu0 0
    %966 = vmatpush.bf16.xpose.msra.mxu0 0
    %967 = vmatpush.bf16.xpose.msra.mxu0 %v961
    %968 = vmatpush.bf16.xpose.msra.mxu0 %v958
    %969 = vmatpush.bf16.xpose.msra.mxu0 %v955
    %970 = vmatpush.bf16.xpose.msra.mxu0 %v952
    %971 = vmatmul.bf16.gmra.mxu0 %v940
    %v972 = vpop.f32.mrf.mxu0
    %v973 = vadd.f32 0.0, %v972
    %v974 = vpop.f32.mrf.mxu0
    %v975 = vadd.f32 0.0, %v974
    %976 = vmatmul.bf16.gmra.mxu0 %v943
    %v977 = vpop.f32.mrf.mxu0
    %v978 = vadd.f32 0.0, %v977
    %v979 = vpop.f32.mrf.mxu0
    %v980 = vadd.f32 0.0, %v979
    %981 = vmatmul.bf16.gmra.mxu0 %v946
    %v982 = vpop.f32.mrf.mxu0
    %v983 = vadd.f32 0.0, %v982
    %v984 = vpop.f32.mrf.mxu0
    %v985 = vadd.f32 0.0, %v984
    %986 = vmatmul.bf16.gmra.mxu0 %v949
    %v987 = vpop.f32.mrf.mxu0
    %v988 = vadd.f32 0.0, %v987
    %v989 = vpop.f32.mrf.mxu0
    %v990 = vadd.f32 0.0, %v989
    %991 = vdwg.mxu0
    %v992 = vunpack.c.l.b16 %v587
    %v993 = vunpack.c.l.b16 %v589
    %v994 = vunpack.c.l.b16 %v591
    %v995 = vunpack.c.l.b16 %v593
    %v996 = vunpack.c.l.b16 %v595
    %v997 = vunpack.c.l.b16 %v597
    %v998 = vunpack.c.l.b16 %v599
    %v999 = vunpack.c.l.b16 %v601
    %v1000 = vpack.c.b16 %v993, %v992
    %v1001 = vpack.c.b16 %v995, %v994
    %v1002 = vpack.c.b16 %v997, %v996
    %v1003 = vpack.c.b16 %v999, %v998
    %v1004 = vunpack.c.l.b16 %v699
    %v1005 = vunpack.c.l.b16 %v701
    %v1006 = vunpack.c.l.b16 %v703
    %v1007 = vunpack.c.l.b16 %v705
    %v1008 = vunpack.c.l.b16 %v707
    %v1009 = vunpack.c.l.b16 %v709
    %v1010 = vunpack.c.l.b16 %v711
    %v1011 = vunpack.c.l.b16 %v713
    %v1012 = vpack.c.b16 %v1005, %v1004
    %v1013 = vpack.c.b16 %v1007, %v1006
    %v1014 = vpack.c.b16 %v1009, %v1008
    %v1015 = vpack.c.b16 %v1011, %v1010
    %v1017 = vsel %vm938, %v1000, 0
    %v1020 = vsel %vm938, %v1001, 0
    %v1023 = vsel %vm938, %v1002, 0
    %v1026 = vsel %vm938, %v1003, 0
    %v1029 = vsel %vm938, %v1012, 0
    %v1032 = vsel %vm938, %v1013, 0
    %v1035 = vsel %vm938, %v1014, 0
    %v1038 = vsel %vm938, %v1015, 0
    %1040 = vmatpush.bf16.xpose.msra.mxu0 0
    %1041 = vmatpush.bf16.xpose.msra.mxu0 0
    %1042 = vmatpush.bf16.xpose.msra.mxu0 0
    %1043 = vmatpush.bf16.xpose.msra.mxu0 0
    %1044 = vmatpush.bf16.xpose.msra.mxu0 %v1038
    %1045 = vmatpush.bf16.xpose.msra.mxu0 %v1035
    %1046 = vmatpush.bf16.xpose.msra.mxu0 %v1032
    %1047 = vmatpush.bf16.xpose.msra.mxu0 %v1029
    %1048 = vmatmul.bf16.gmra.mxu0 %v1017
    %v1049 = vpop.f32.mrf.mxu0
    %v1050 = vadd.f32 0.0, %v1049
    %v1051 = vpop.f32.mrf.mxu0
    %v1052 = vadd.f32 0.0, %v1051
    %1053 = vmatmul.bf16.gmra.mxu0 %v1020
    %v1054 = vpop.f32.mrf.mxu0
    %v1055 = vadd.f32 0.0, %v1054
    %v1056 = vpop.f32.mrf.mxu0
    %v1057 = vadd.f32 0.0, %v1056
    %1058 = vmatmul.bf16.gmra.mxu0 %v1023
    %v1059 = vpop.f32.mrf.mxu0
    %v1060 = vadd.f32 0.0, %v1059
    %v1061 = vpop.f32.mrf.mxu0
    %v1062 = vadd.f32 0.0, %v1061
    %1063 = vmatmul.bf16.gmra.mxu0 %v1026
    %v1064 = vpop.f32.mrf.mxu0
    %v1065 = vadd.f32 0.0, %v1064
    %v1066 = vpop.f32.mrf.mxu0
    %v1067 = vadd.f32 0.0, %v1066
    %1068 = vdwg.mxu0
    %v1069 = vunpack.c.l.b16 %v603
    %v1070 = vunpack.c.l.b16 %v605
    %v1071 = vunpack.c.l.b16 %v607
    %v1072 = vunpack.c.l.b16 %v609
    %v1073 = vunpack.c.l.b16 %v611
    %v1074 = vunpack.c.l.b16 %v613
    %v1075 = vunpack.c.l.b16 %v615
    %v1076 = vunpack.c.l.b16 %v617
    %v1077 = vpack.c.b16 %v1070, %v1069
    %v1078 = vpack.c.b16 %v1072, %v1071
    %v1079 = vpack.c.b16 %v1074, %v1073
    %v1080 = vpack.c.b16 %v1076, %v1075
    %v1081 = vunpack.c.l.b16 %v715
    %v1082 = vunpack.c.l.b16 %v717
    %v1083 = vunpack.c.l.b16 %v719
    %v1084 = vunpack.c.l.b16 %v721
    %v1085 = vunpack.c.l.b16 %v723
    %v1086 = vunpack.c.l.b16 %v725
    %v1087 = vunpack.c.l.b16 %v727
    %v1088 = vunpack.c.l.b16 %v729
    %v1089 = vpack.c.b16 %v1082, %v1081
    %v1090 = vpack.c.b16 %v1084, %v1083
    %v1091 = vpack.c.b16 %v1086, %v1085
    %v1092 = vpack.c.b16 %v1088, %v1087
    %v1094 = vsel %vm938, %v1077, 0
    %v1097 = vsel %vm938, %v1078, 0
    %v1100 = vsel %vm938, %v1079, 0
    %v1103 = vsel %vm938, %v1080, 0
    %v1106 = vsel %vm938, %v1089, 0
    %v1109 = vsel %vm938, %v1090, 0
    %v1112 = vsel %vm938, %v1091, 0
    %v1115 = vsel %vm938, %v1092, 0
    %1117 = vmatpush.bf16.xpose.msra.mxu0 0
    %1118 = vmatpush.bf16.xpose.msra.mxu0 0
    %1119 = vmatpush.bf16.xpose.msra.mxu0 0
    %1120 = vmatpush.bf16.xpose.msra.mxu0 0
    %1121 = vmatpush.bf16.xpose.msra.mxu0 %v1115
    %1122 = vmatpush.bf16.xpose.msra.mxu0 %v1112
    %1123 = vmatpush.bf16.xpose.msra.mxu0 %v1109
    %1124 = vmatpush.bf16.xpose.msra.mxu0 %v1106
    %1125 = vmatmul.bf16.gmra.mxu0 %v1094
    %v1126 = vpop.f32.mrf.mxu0
    %v1127 = vadd.f32 0.0, %v1126
    %v1128 = vpop.f32.mrf.mxu0
    %v1129 = vadd.f32 0.0, %v1128
    %1130 = vmatmul.bf16.gmra.mxu0 %v1097
    %v1131 = vpop.f32.mrf.mxu0
    %v1132 = vadd.f32 0.0, %v1131
    %v1133 = vpop.f32.mrf.mxu0
    %v1134 = vadd.f32 0.0, %v1133
    %1135 = vmatmul.bf16.gmra.mxu0 %v1100
    %v1136 = vpop.f32.mrf.mxu0
    %v1137 = vadd.f32 0.0, %v1136
    %v1138 = vpop.f32.mrf.mxu0
    %v1139 = vadd.f32 0.0, %v1138
    %1140 = vmatmul.bf16.gmra.mxu0 %v1103
    %v1141 = vpop.f32.mrf.mxu0
    %v1142 = vadd.f32 0.0, %v1141
    %v1143 = vpop.f32.mrf.mxu0
    %v1144 = vadd.f32 0.0, %v1143
    %1145 = vdwg.mxu0
    %v1146 = vunpack.c.l.b16 %v619
    %v1147 = vunpack.c.l.b16 %v621
    %v1148 = vunpack.c.l.b16 %v623
    %v1149 = vunpack.c.l.b16 %v625
    %v1150 = vunpack.c.l.b16 %v627
    %v1151 = vunpack.c.l.b16 %v629
    %v1152 = vunpack.c.l.b16 %v631
    %v1153 = vunpack.c.l.b16 %v633
    %v1154 = vpack.c.b16 %v1147, %v1146
    %v1155 = vpack.c.b16 %v1149, %v1148
    %v1156 = vpack.c.b16 %v1151, %v1150
    %v1157 = vpack.c.b16 %v1153, %v1152
    %v1158 = vunpack.c.l.b16 %v731
    %v1159 = vunpack.c.l.b16 %v733
    %v1160 = vunpack.c.l.b16 %v735
    %v1161 = vunpack.c.l.b16 %v737
    %v1162 = vunpack.c.l.b16 %v739
    %v1163 = vunpack.c.l.b16 %v741
    %v1164 = vunpack.c.l.b16 %v743
    %v1165 = vunpack.c.l.b16 %v745
    %v1166 = vpack.c.b16 %v1159, %v1158
    %v1167 = vpack.c.b16 %v1161, %v1160
    %v1168 = vpack.c.b16 %v1163, %v1162
    %v1169 = vpack.c.b16 %v1165, %v1164
    %v1171 = vsel %vm938, %v1154, 0
    %v1174 = vsel %vm938, %v1155, 0
    %v1177 = vsel %vm938, %v1156, 0
    %v1180 = vsel %vm938, %v1157, 0
    %v1183 = vsel %vm938, %v1166, 0
    %v1186 = vsel %vm938, %v1167, 0
    %v1189 = vsel %vm938, %v1168, 0
    %v1192 = vsel %vm938, %v1169, 0
    %1194 = vmatpush.bf16.xpose.msra.mxu0 0
    %1195 = vmatpush.bf16.xpose.msra.mxu0 0
    %1196 = vmatpush.bf16.xpose.msra.mxu0 0
    %1197 = vmatpush.bf16.xpose.msra.mxu0 0
    %1198 = vmatpush.bf16.xpose.msra.mxu0 %v1192
    %1199 = vmatpush.bf16.xpose.msra.mxu0 %v1189
    %1200 = vmatpush.bf16.xpose.msra.mxu0 %v1186
    %1201 = vmatpush.bf16.xpose.msra.mxu0 %v1183
    %1202 = vmatmul.bf16.gmra.mxu0 %v1171
    %v1203 = vpop.f32.mrf.mxu0
    %v1204 = vadd.f32 0.0, %v1203
    %v1205 = vpop.f32.mrf.mxu0
    %v1206 = vadd.f32 0.0, %v1205
    %1207 = vmatmul.bf16.gmra.mxu0 %v1174
    %v1208 = vpop.f32.mrf.mxu0
    %v1209 = vadd.f32 0.0, %v1208
    %v1210 = vpop.f32.mrf.mxu0
    %v1211 = vadd.f32 0.0, %v1210
    %1212 = vmatmul.bf16.gmra.mxu0 %v1177
    %v1213 = vpop.f32.mrf.mxu0
    %v1214 = vadd.f32 0.0, %v1213
    %v1215 = vpop.f32.mrf.mxu0
    %v1216 = vadd.f32 0.0, %v1215
    %1217 = vmatmul.bf16.gmra.mxu0 %v1180
    %v1218 = vpop.f32.mrf.mxu0
    %v1219 = vadd.f32 0.0, %v1218
    %v1220 = vpop.f32.mrf.mxu0
    %v1221 = vadd.f32 0.0, %v1220
    %1222 = vdwg.mxu0
    %v1223 = vunpack.c.l.b16 %v538
    %v1224 = vunpack.c.l.b16 %v539
    %v1225 = vunpack.c.l.b16 %v540
    %v1226 = vunpack.c.l.b16 %v541
    %v1227 = vunpack.c.l.b16 %v542
    %v1228 = vunpack.c.l.b16 %v543
    %v1229 = vunpack.c.l.b16 %v544
    %v1230 = vunpack.c.l.b16 %v545
    %v1231 = vpack.c.b16 %v1224, %v1223
    %v1232 = vpack.c.b16 %v1226, %v1225
    %v1233 = vpack.c.b16 %v1228, %v1227
    %v1234 = vpack.c.b16 %v1230, %v1229
    %v1235 = vunpack.c.l.b16 %v554
    %v1236 = vunpack.c.l.b16 %v555
    %v1237 = vunpack.c.l.b16 %v556
    %v1238 = vunpack.c.l.b16 %v557
    %v1239 = vunpack.c.l.b16 %v558
    %v1240 = vunpack.c.l.b16 %v559
    %v1241 = vunpack.c.l.b16 %v560
    %v1242 = vunpack.c.l.b16 %v561
    %v1243 = vpack.c.b16 %v1236, %v1235
    %v1244 = vpack.c.b16 %v1238, %v1237
    %v1245 = vpack.c.b16 %v1240, %v1239
    %v1246 = vpack.c.b16 %v1242, %v1241
    %v1248 = vsel %vm938, %v1231, 0
    %v1251 = vsel %vm938, %v1232, 0
    %v1254 = vsel %vm938, %v1233, 0
    %v1257 = vsel %vm938, %v1234, 0
    %v1260 = vsel %vm938, %v1243, 0
    %v1263 = vsel %vm938, %v1244, 0
    %v1266 = vsel %vm938, %v1245, 0
    %v1269 = vsel %vm938, %v1246, 0
    %1271 = vmatpush.bf16.xpose.msra.mxu0 0
    %1272 = vmatpush.bf16.xpose.msra.mxu0 0
    %1273 = vmatpush.bf16.xpose.msra.mxu0 0
    %1274 = vmatpush.bf16.xpose.msra.mxu0 0
    %1275 = vmatpush.bf16.xpose.msra.mxu0 %v1269
    %1276 = vmatpush.bf16.xpose.msra.mxu0 %v1266
    %1277 = vmatpush.bf16.xpose.msra.mxu0 %v1263
    %1278 = vmatpush.bf16.xpose.msra.mxu0 %v1260
    %1279 = vmatmul.bf16.gmra.mxu0 %v1248
    %v1280 = vpop.f32.mrf.mxu0
    %v1281 = vadd.f32 0.0, %v1280
    %v1282 = vpop.f32.mrf.mxu0
    %v1283 = vadd.f32 0.0, %v1282
    %1284 = vmatmul.bf16.gmra.mxu0 %v1251
    %v1285 = vpop.f32.mrf.mxu0
    %v1286 = vadd.f32 0.0, %v1285
    %v1287 = vpop.f32.mrf.mxu0
    %v1288 = vadd.f32 0.0, %v1287
    %1289 = vmatmul.bf16.gmra.mxu0 %v1254
    %v1290 = vpop.f32.mrf.mxu0
    %v1291 = vadd.f32 0.0, %v1290
    %v1292 = vpop.f32.mrf.mxu0
    %v1293 = vadd.f32 0.0, %v1292
    %1294 = vmatmul.bf16.gmra.mxu0 %v1257
    %v1295 = vpop.f32.mrf.mxu0
    %v1296 = vadd.f32 0.0, %v1295
    %v1297 = vpop.f32.mrf.mxu0
    %v1298 = vadd.f32 0.0, %v1297
    %1299 = vdwg.mxu0
    %v1300 = vunpack.c.l.b16 %v643
    %v1301 = vunpack.c.l.b16 %v645
    %v1302 = vunpack.c.l.b16 %v647
    %v1303 = vunpack.c.l.b16 %v649
    %v1304 = vunpack.c.l.b16 %v651
    %v1305 = vunpack.c.l.b16 %v653
    %v1306 = vunpack.c.l.b16 %v655
    %v1307 = vunpack.c.l.b16 %v657
    %v1308 = vpack.c.b16 %v1301, %v1300
    %v1309 = vpack.c.b16 %v1303, %v1302
    %v1310 = vpack.c.b16 %v1305, %v1304
    %v1311 = vpack.c.b16 %v1307, %v1306
    %v1312 = vunpack.c.l.b16 %v755
    %v1313 = vunpack.c.l.b16 %v757
    %v1314 = vunpack.c.l.b16 %v759
    %v1315 = vunpack.c.l.b16 %v761
    %v1316 = vunpack.c.l.b16 %v763
    %v1317 = vunpack.c.l.b16 %v765
    %v1318 = vunpack.c.l.b16 %v767
    %v1319 = vunpack.c.l.b16 %v769
    %v1320 = vpack.c.b16 %v1313, %v1312
    %v1321 = vpack.c.b16 %v1315, %v1314
    %v1322 = vpack.c.b16 %v1317, %v1316
    %v1323 = vpack.c.b16 %v1319, %v1318
    %v1325 = vsel %vm938, %v1308, 0
    %v1328 = vsel %vm938, %v1309, 0
    %v1331 = vsel %vm938, %v1310, 0
    %v1334 = vsel %vm938, %v1311, 0
    %v1337 = vsel %vm938, %v1320, 0
    %v1340 = vsel %vm938, %v1321, 0
    %v1343 = vsel %vm938, %v1322, 0
    %v1346 = vsel %vm938, %v1323, 0
    %1348 = vmatpush.bf16.xpose.msra.mxu0 0
    %1349 = vmatpush.bf16.xpose.msra.mxu0 0
    %1350 = vmatpush.bf16.xpose.msra.mxu0 0
    %1351 = vmatpush.bf16.xpose.msra.mxu0 0
    %1352 = vmatpush.bf16.xpose.msra.mxu0 %v1346
    %1353 = vmatpush.bf16.xpose.msra.mxu0 %v1343
    %1354 = vmatpush.bf16.xpose.msra.mxu0 %v1340
    %1355 = vmatpush.bf16.xpose.msra.mxu0 %v1337
    %1356 = vmatmul.bf16.gmra.mxu0 %v1325
    %v1357 = vpop.f32.mrf.mxu0
    %v1358 = vadd.f32 0.0, %v1357
    %v1359 = vpop.f32.mrf.mxu0
    %v1360 = vadd.f32 0.0, %v1359
    %1361 = vmatmul.bf16.gmra.mxu0 %v1328
    %v1362 = vpop.f32.mrf.mxu0
    %v1363 = vadd.f32 0.0, %v1362
    %v1364 = vpop.f32.mrf.mxu0
    %v1365 = vadd.f32 0.0, %v1364
    %1366 = vmatmul.bf16.gmra.mxu0 %v1331
    %v1367 = vpop.f32.mrf.mxu0
    %v1368 = vadd.f32 0.0, %v1367
    %v1369 = vpop.f32.mrf.mxu0
    %v1370 = vadd.f32 0.0, %v1369
    %1371 = vmatmul.bf16.gmra.mxu0 %v1334
    %v1372 = vpop.f32.mrf.mxu0
    %v1373 = vadd.f32 0.0, %v1372
    %v1374 = vpop.f32.mrf.mxu0
    %v1375 = vadd.f32 0.0, %v1374
    %1376 = vdwg.mxu0
    %v1377 = vunpack.c.l.b16 %v659
    %v1378 = vunpack.c.l.b16 %v661
    %v1379 = vunpack.c.l.b16 %v663
    %v1380 = vunpack.c.l.b16 %v665
    %v1381 = vunpack.c.l.b16 %v667
    %v1382 = vunpack.c.l.b16 %v669
    %v1383 = vunpack.c.l.b16 %v671
    %v1384 = vunpack.c.l.b16 %v673
    %v1385 = vpack.c.b16 %v1378, %v1377
    %v1386 = vpack.c.b16 %v1380, %v1379
    %v1387 = vpack.c.b16 %v1382, %v1381
    %v1388 = vpack.c.b16 %v1384, %v1383
    %v1389 = vunpack.c.l.b16 %v771
    %v1390 = vunpack.c.l.b16 %v773
    %v1391 = vunpack.c.l.b16 %v775
    %v1392 = vunpack.c.l.b16 %v777
    %v1393 = vunpack.c.l.b16 %v779
    %v1394 = vunpack.c.l.b16 %v781
    %v1395 = vunpack.c.l.b16 %v783
    %v1396 = vunpack.c.l.b16 %v785
    %v1397 = vpack.c.b16 %v1390, %v1389
    %v1398 = vpack.c.b16 %v1392, %v1391
    %v1399 = vpack.c.b16 %v1394, %v1393
    %v1400 = vpack.c.b16 %v1396, %v1395
    %v1402 = vsel %vm938, %v1385, 0
    %v1405 = vsel %vm938, %v1386, 0
    %v1408 = vsel %vm938, %v1387, 0
    %v1411 = vsel %vm938, %v1388, 0
    %v1414 = vsel %vm938, %v1397, 0
    %v1417 = vsel %vm938, %v1398, 0
    %v1420 = vsel %vm938, %v1399, 0
    %v1423 = vsel %vm938, %v1400, 0
    %1425 = vmatpush.bf16.xpose.msra.mxu0 0
    %1426 = vmatpush.bf16.xpose.msra.mxu0 0
    %1427 = vmatpush.bf16.xpose.msra.mxu0 0
    %1428 = vmatpush.bf16.xpose.msra.mxu0 0
    %1429 = vmatpush.bf16.xpose.msra.mxu0 %v1423
    %1430 = vmatpush.bf16.xpose.msra.mxu0 %v1420
    %1431 = vmatpush.bf16.xpose.msra.mxu0 %v1417
    %1432 = vmatpush.bf16.xpose.msra.mxu0 %v1414
    %1433 = vmatmul.bf16.gmra.mxu0 %v1402
    %v1434 = vpop.f32.mrf.mxu0
    %v1435 = vadd.f32 0.0, %v1434
    %v1436 = vpop.f32.mrf.mxu0
    %v1437 = vadd.f32 0.0, %v1436
    %1438 = vmatmul.bf16.gmra.mxu0 %v1405
    %v1439 = vpop.f32.mrf.mxu0
    %v1440 = vadd.f32 0.0, %v1439
    %v1441 = vpop.f32.mrf.mxu0
    %v1442 = vadd.f32 0.0, %v1441
    %1443 = vmatmul.bf16.gmra.mxu0 %v1408
    %v1444 = vpop.f32.mrf.mxu0
    %v1445 = vadd.f32 0.0, %v1444
    %v1446 = vpop.f32.mrf.mxu0
    %v1447 = vadd.f32 0.0, %v1446
    %1448 = vmatmul.bf16.gmra.mxu0 %v1411
    %v1449 = vpop.f32.mrf.mxu0
    %v1450 = vadd.f32 0.0, %v1449
    %v1451 = vpop.f32.mrf.mxu0
    %v1452 = vadd.f32 0.0, %v1451
    %1453 = vdwg.mxu0
    %v1454 = vunpack.c.l.b16 %v675
    %v1455 = vunpack.c.l.b16 %v677
    %v1456 = vunpack.c.l.b16 %v679
    %v1457 = vunpack.c.l.b16 %v681
    %v1458 = vunpack.c.l.b16 %v683
    %v1459 = vunpack.c.l.b16 %v685
    %v1460 = vunpack.c.l.b16 %v687
    %v1461 = vunpack.c.l.b16 %v689
    %v1462 = vpack.c.b16 %v1455, %v1454
    %v1463 = vpack.c.b16 %v1457, %v1456
    %v1464 = vpack.c.b16 %v1459, %v1458
    %v1465 = vpack.c.b16 %v1461, %v1460
    %v1466 = vunpack.c.l.b16 %v787
    %v1467 = vunpack.c.l.b16 %v789
    %v1468 = vunpack.c.l.b16 %v791
    %v1469 = vunpack.c.l.b16 %v793
    %v1470 = vunpack.c.l.b16 %v795
    %v1471 = vunpack.c.l.b16 %v797
    %v1472 = vunpack.c.l.b16 %v799
    %v1473 = vunpack.c.l.b16 %v801
    %v1474 = vpack.c.b16 %v1467, %v1466
    %v1475 = vpack.c.b16 %v1469, %v1468
    %v1476 = vpack.c.b16 %v1471, %v1470
    %v1477 = vpack.c.b16 %v1473, %v1472
    %v1479 = vsel %vm938, %v1462, 0
    %v1482 = vsel %vm938, %v1463, 0
    %v1485 = vsel %vm938, %v1464, 0
    %v1488 = vsel %vm938, %v1465, 0
    %v1491 = vsel %vm938, %v1474, 0
    %v1494 = vsel %vm938, %v1475, 0
    %v1497 = vsel %vm938, %v1476, 0
    %v1500 = vsel %vm938, %v1477, 0
    %1502 = vmatpush.bf16.xpose.msra.mxu0 0
    %1503 = vmatpush.bf16.xpose.msra.mxu0 0
    %1504 = vmatpush.bf16.xpose.msra.mxu0 0
    %1505 = vmatpush.bf16.xpose.msra.mxu0 0
    %1506 = vmatpush.bf16.xpose.msra.mxu0 %v1500
    %1507 = vmatpush.bf16.xpose.msra.mxu0 %v1497
    %1508 = vmatpush.bf16.xpose.msra.mxu0 %v1494
    %1509 = vmatpush.bf16.xpose.msra.mxu0 %v1491
    %1510 = vmatmul.bf16.gmra.mxu0 %v1479
    %v1511 = vpop.f32.mrf.mxu0
    %v1512 = vadd.f32 0.0, %v1511
    %v1513 = vpop.f32.mrf.mxu0
    %v1514 = vadd.f32 0.0, %v1513
    %1515 = vmatmul.bf16.gmra.mxu0 %v1482
    %v1516 = vpop.f32.mrf.mxu0
    %v1517 = vadd.f32 0.0, %v1516
    %v1518 = vpop.f32.mrf.mxu0
    %v1519 = vadd.f32 0.0, %v1518
    %1520 = vmatmul.bf16.gmra.mxu0 %v1485
    %v1521 = vpop.f32.mrf.mxu0
    %v1522 = vadd.f32 0.0, %v1521
    %v1523 = vpop.f32.mrf.mxu0
    %v1524 = vadd.f32 0.0, %v1523
    %1525 = vmatmul.bf16.gmra.mxu0 %v1488
    %v1526 = vpop.f32.mrf.mxu0
    %v1527 = vadd.f32 0.0, %v1526
    %v1528 = vpop.f32.mrf.mxu0
    %v1529 = vadd.f32 0.0, %v1528
    %1530 = vdwg.mxu0
    %vm1531 = vcmask 523264
    %v1532 = vsel %vm1531, %v973, -inf
    %1533 = vmax.xlane.f32.xlu0 %v1532
    %v1534 = vpop.xlane.xlu0 %1533
    %v1535 = vsel %vm1531, %v975, -inf
    %1536 = vmax.xlane.f32.xlu0 %v1535
    %v1537 = vpop.xlane.xlu0 %1536
    %v1538 = vsel %vm1531, %v978, -inf
    %1539 = vmax.xlane.f32.xlu0 %v1538
    %v1540 = vpop.xlane.xlu0 %1539
    %v1541 = vsel %vm1531, %v980, -inf
    %1542 = vmax.xlane.f32.xlu0 %v1541
    %v1543 = vpop.xlane.xlu0 %1542
    %v1544 = vsel %vm1531, %v983, -inf
    %1545 = vmax.xlane.f32.xlu0 %v1544
    %v1546 = vpop.xlane.xlu0 %1545
    %v1547 = vsel %vm1531, %v985, -inf
    %1548 = vmax.xlane.f32.xlu0 %v1547
    %v1549 = vpop.xlane.xlu0 %1548
    %v1550 = vsel %vm1531, %v988, -inf
    %1551 = vmax.xlane.f32.xlu0 %v1550
    %v1552 = vpop.xlane.xlu0 %1551
    %v1553 = vsel %vm1531, %v990, -inf
    %1554 = vmax.xlane.f32.xlu0 %v1553
    %v1555 = vpop.xlane.xlu0 %1554
    %v1556 = vsel %vm1531, %v1050, -inf
    %1557 = vmax.xlane.f32.xlu0 %v1556
    %v1558 = vpop.xlane.xlu0 %1557
    %v1559 = vsel %vm1531, %v1052, -inf
    %1560 = vmax.xlane.f32.xlu0 %v1559
    %v1561 = vpop.xlane.xlu0 %1560
    %v1562 = vsel %vm1531, %v1055, -inf
    %1563 = vmax.xlane.f32.xlu0 %v1562
    %v1564 = vpop.xlane.xlu0 %1563
    %v1565 = vsel %vm1531, %v1057, -inf
    %1566 = vmax.xlane.f32.xlu0 %v1565
    %v1567 = vpop.xlane.xlu0 %1566
    %v1568 = vsel %vm1531, %v1060, -inf
    %1569 = vmax.xlane.f32.xlu0 %v1568
    %v1570 = vpop.xlane.xlu0 %1569
    %v1571 = vsel %vm1531, %v1062, -inf
    %1572 = vmax.xlane.f32.xlu0 %v1571
    %v1573 = vpop.xlane.xlu0 %1572
    %v1574 = vsel %vm1531, %v1065, -inf
    %1575 = vmax.xlane.f32.xlu0 %v1574
    %v1576 = vpop.xlane.xlu0 %1575
    %v1577 = vsel %vm1531, %v1067, -inf
    %1578 = vmax.xlane.f32.xlu0 %v1577
    %v1579 = vpop.xlane.xlu0 %1578
    %v1580 = vsel %vm1531, %v1127, -inf
    %1581 = vmax.xlane.f32.xlu0 %v1580
    %v1582 = vpop.xlane.xlu0 %1581
    %v1583 = vsel %vm1531, %v1129, -inf
    %1584 = vmax.xlane.f32.xlu0 %v1583
    %v1585 = vpop.xlane.xlu0 %1584
    %v1586 = vsel %vm1531, %v1132, -inf
    %1587 = vmax.xlane.f32.xlu0 %v1586
    %v1588 = vpop.xlane.xlu0 %1587
    %v1589 = vsel %vm1531, %v1134, -inf
    %1590 = vmax.xlane.f32.xlu0 %v1589
    %v1591 = vpop.xlane.xlu0 %1590
    %v1592 = vsel %vm1531, %v1137, -inf
    %1593 = vmax.xlane.f32.xlu0 %v1592
    %v1594 = vpop.xlane.xlu0 %1593
    %v1595 = vsel %vm1531, %v1139, -inf
    %1596 = vmax.xlane.f32.xlu0 %v1595
    %v1597 = vpop.xlane.xlu0 %1596
    %v1598 = vsel %vm1531, %v1142, -inf
    %1599 = vmax.xlane.f32.xlu0 %v1598
    %v1600 = vpop.xlane.xlu0 %1599
    %v1601 = vsel %vm1531, %v1144, -inf
    %1602 = vmax.xlane.f32.xlu0 %v1601
    %v1603 = vpop.xlane.xlu0 %1602
    %v1604 = vsel %vm1531, %v1204, -inf
    %1605 = vmax.xlane.f32.xlu0 %v1604
    %v1606 = vpop.xlane.xlu0 %1605
    %v1607 = vsel %vm1531, %v1206, -inf
    %1608 = vmax.xlane.f32.xlu0 %v1607
    %v1609 = vpop.xlane.xlu0 %1608
    %v1610 = vsel %vm1531, %v1209, -inf
    %1611 = vmax.xlane.f32.xlu0 %v1610
    %v1612 = vpop.xlane.xlu0 %1611
    %v1613 = vsel %vm1531, %v1211, -inf
    %1614 = vmax.xlane.f32.xlu0 %v1613
    %v1615 = vpop.xlane.xlu0 %1614
    %v1616 = vsel %vm1531, %v1214, -inf
    %1617 = vmax.xlane.f32.xlu0 %v1616
    %v1618 = vpop.xlane.xlu0 %1617
    %v1619 = vsel %vm1531, %v1216, -inf
    %1620 = vmax.xlane.f32.xlu0 %v1619
    %v1621 = vpop.xlane.xlu0 %1620
    %v1622 = vsel %vm1531, %v1219, -inf
    %1623 = vmax.xlane.f32.xlu0 %v1622
    %v1624 = vpop.xlane.xlu0 %1623
    %v1625 = vsel %vm1531, %v1221, -inf
    %1626 = vmax.xlane.f32.xlu0 %v1625
    %v1627 = vpop.xlane.xlu0 %1626
    %v1628 = vsel %vm1531, %v1281, -inf
    %1629 = vmax.xlane.f32.xlu0 %v1628
    %v1630 = vpop.xlane.xlu0 %1629
    %v1631 = vsel %vm1531, %v1283, -inf
    %1632 = vmax.xlane.f32.xlu0 %v1631
    %v1633 = vpop.xlane.xlu0 %1632
    %v1634 = vsel %vm1531, %v1286, -inf
    %1635 = vmax.xlane.f32.xlu0 %v1634
    %v1636 = vpop.xlane.xlu0 %1635
    %v1637 = vsel %vm1531, %v1288, -inf
    %1638 = vmax.xlane.f32.xlu0 %v1637
    %v1639 = vpop.xlane.xlu0 %1638
    %v1640 = vsel %vm1531, %v1291, -inf
    %1641 = vmax.xlane.f32.xlu0 %v1640
    %v1642 = vpop.xlane.xlu0 %1641
    %v1643 = vsel %vm1531, %v1293, -inf
    %1644 = vmax.xlane.f32.xlu0 %v1643
    %v1645 = vpop.xlane.xlu0 %1644
    %v1646 = vsel %vm1531, %v1296, -inf
    %1647 = vmax.xlane.f32.xlu0 %v1646
    %v1648 = vpop.xlane.xlu0 %1647
    %v1649 = vsel %vm1531, %v1298, -inf
    %1650 = vmax.xlane.f32.xlu0 %v1649
    %v1651 = vpop.xlane.xlu0 %1650
    %v1652 = vsel %vm1531, %v1358, -inf
    %1653 = vmax.xlane.f32.xlu0 %v1652
    %v1654 = vpop.xlane.xlu0 %1653
    %v1655 = vsel %vm1531, %v1360, -inf
    %1656 = vmax.xlane.f32.xlu0 %v1655
    %v1657 = vpop.xlane.xlu0 %1656
    %v1658 = vsel %vm1531, %v1363, -inf
    %1659 = vmax.xlane.f32.xlu0 %v1658
    %v1660 = vpop.xlane.xlu0 %1659
    %v1661 = vsel %vm1531, %v1365, -inf
    %1662 = vmax.xlane.f32.xlu0 %v1661
    %v1663 = vpop.xlane.xlu0 %1662
    %v1664 = vsel %vm1531, %v1368, -inf
    %1665 = vmax.xlane.f32.xlu0 %v1664
    %v1666 = vpop.xlane.xlu0 %1665
    %v1667 = vsel %vm1531, %v1370, -inf
    %1668 = vmax.xlane.f32.xlu0 %v1667
    %v1669 = vpop.xlane.xlu0 %1668
    %v1670 = vsel %vm1531, %v1373, -inf
    %1671 = vmax.xlane.f32.xlu0 %v1670
    %v1672 = vpop.xlane.xlu0 %1671
    %v1673 = vsel %vm1531, %v1375, -inf
    %1674 = vmax.xlane.f32.xlu0 %v1673
    %v1675 = vpop.xlane.xlu0 %1674
    %v1676 = vsel %vm1531, %v1435, -inf
    %1677 = vmax.xlane.f32.xlu0 %v1676
    %v1678 = vpop.xlane.xlu0 %1677
    %v1679 = vsel %vm1531, %v1437, -inf
    %1680 = vmax.xlane.f32.xlu0 %v1679
    %v1681 = vpop.xlane.xlu0 %1680
    %v1682 = vsel %vm1531, %v1440, -inf
    %1683 = vmax.xlane.f32.xlu0 %v1682
    %v1684 = vpop.xlane.xlu0 %1683
    %v1685 = vsel %vm1531, %v1442, -inf
    %1686 = vmax.xlane.f32.xlu0 %v1685
    %v1687 = vpop.xlane.xlu0 %1686
    %v1688 = vsel %vm1531, %v1445, -inf
    %1689 = vmax.xlane.f32.xlu0 %v1688
    %v1690 = vpop.xlane.xlu0 %1689
    %v1691 = vsel %vm1531, %v1447, -inf
    %1692 = vmax.xlane.f32.xlu0 %v1691
    %v1693 = vpop.xlane.xlu0 %1692
    %v1694 = vsel %vm1531, %v1450, -inf
    %1695 = vmax.xlane.f32.xlu0 %v1694
    %v1696 = vpop.xlane.xlu0 %1695
    %v1697 = vsel %vm1531, %v1452, -inf
    %1698 = vmax.xlane.f32.xlu0 %v1697
    %v1699 = vpop.xlane.xlu0 %1698
    %v1700 = vsel %vm1531, %v1512, -inf
    %1701 = vmax.xlane.f32.xlu0 %v1700
    %v1702 = vpop.xlane.xlu0 %1701
    %v1703 = vsel %vm1531, %v1514, -inf
    %1704 = vmax.xlane.f32.xlu0 %v1703
    %v1705 = vpop.xlane.xlu0 %1704
    %v1706 = vsel %vm1531, %v1517, -inf
    %1707 = vmax.xlane.f32.xlu0 %v1706
    %v1708 = vpop.xlane.xlu0 %1707
    %v1709 = vsel %vm1531, %v1519, -inf
    %1710 = vmax.xlane.f32.xlu0 %v1709
    %v1711 = vpop.xlane.xlu0 %1710
    %v1712 = vsel %vm1531, %v1522, -inf
    %1713 = vmax.xlane.f32.xlu0 %v1712
    %v1714 = vpop.xlane.xlu0 %1713
    %v1715 = vsel %vm1531, %v1524, -inf
    %1716 = vmax.xlane.f32.xlu0 %v1715
    %v1717 = vpop.xlane.xlu0 %1716
    %v1718 = vsel %vm1531, %v1527, -inf
    %1719 = vmax.xlane.f32.xlu0 %v1718
    %v1720 = vpop.xlane.xlu0 %1719
    %v1721 = vsel %vm1531, %v1529, -inf
    %1722 = vmax.xlane.f32.xlu0 %v1721
    %v1723 = vpop.xlane.xlu0 %1722
    %v1724 = vsub.f32 %v973, %v1534
    %v1725 = vsub.f32 %v975, %v1537
    %v1726 = vsub.f32 %v978, %v1540
    %v1727 = vsub.f32 %v980, %v1543
    %v1728 = vsub.f32 %v983, %v1546
    %v1729 = vsub.f32 %v985, %v1549
    %v1730 = vsub.f32 %v988, %v1552
    %v1731 = vsub.f32 %v990, %v1555
    %v1732 = vsub.f32 %v1050, %v1558
    %v1733 = vsub.f32 %v1052, %v1561
    %v1734 = vsub.f32 %v1055, %v1564
    %v1735 = vsub.f32 %v1057, %v1567
    %v1736 = vsub.f32 %v1060, %v1570
    %v1737 = vsub.f32 %v1062, %v1573
    %v1738 = vsub.f32 %v1065, %v1576
    %v1739 = vsub.f32 %v1067, %v1579
    %v1740 = vsub.f32 %v1127, %v1582
    %v1741 = vsub.f32 %v1129, %v1585
    %v1742 = vsub.f32 %v1132, %v1588
    %v1743 = vsub.f32 %v1134, %v1591
    %v1744 = vsub.f32 %v1137, %v1594
    %v1745 = vsub.f32 %v1139, %v1597
    %v1746 = vsub.f32 %v1142, %v1600
    %v1747 = vsub.f32 %v1144, %v1603
    %v1748 = vsub.f32 %v1204, %v1606
    %v1749 = vsub.f32 %v1206, %v1609
    %v1750 = vsub.f32 %v1209, %v1612
    %v1751 = vsub.f32 %v1211, %v1615
    %v1752 = vsub.f32 %v1214, %v1618
    %v1753 = vsub.f32 %v1216, %v1621
    %v1754 = vsub.f32 %v1219, %v1624
    %v1755 = vsub.f32 %v1221, %v1627
    %v1756 = vsub.f32 %v1281, %v1630
    %v1757 = vsub.f32 %v1283, %v1633
    %v1758 = vsub.f32 %v1286, %v1636
    %v1759 = vsub.f32 %v1288, %v1639
    %v1760 = vsub.f32 %v1291, %v1642
    %v1761 = vsub.f32 %v1293, %v1645
    %v1762 = vsub.f32 %v1296, %v1648
    %v1763 = vsub.f32 %v1298, %v1651
    %v1764 = vsub.f32 %v1358, %v1654
    %v1765 = vsub.f32 %v1360, %v1657
    %v1766 = vsub.f32 %v1363, %v1660
    %v1767 = vsub.f32 %v1365, %v1663
    %v1768 = vsub.f32 %v1368, %v1666
    %v1769 = vsub.f32 %v1370, %v1669
    %v1770 = vsub.f32 %v1373, %v1672
    %v1771 = vsub.f32 %v1375, %v1675
    %v1772 = vsub.f32 %v1435, %v1678
    %v1773 = vsub.f32 %v1437, %v1681
    %v1774 = vsub.f32 %v1440, %v1684
    %v1775 = vsub.f32 %v1442, %v1687
    %v1776 = vsub.f32 %v1445, %v1690
    %v1777 = vsub.f32 %v1447, %v1693
    %v1778 = vsub.f32 %v1450, %v1696
    %v1779 = vsub.f32 %v1452, %v1699
    %v1780 = vsub.f32 %v1512, %v1702
    %v1781 = vsub.f32 %v1514, %v1705
    %v1782 = vsub.f32 %v1517, %v1708
    %v1783 = vsub.f32 %v1519, %v1711
    %v1784 = vsub.f32 %v1522, %v1714
    %v1785 = vsub.f32 %v1524, %v1717
    %v1786 = vsub.f32 %v1527, %v1720
    %v1787 = vsub.f32 %v1529, %v1723
    %v1788 = vmul.f32 %v1724, 1.442695
    %v1789 = vpow.pop %v1788
    %v1790 = vmul.f32 %v1725, 1.442695
    %v1791 = vpow.pop %v1790
    %v1792 = vmul.f32 %v1726, 1.442695
    %v1793 = vpow.pop %v1792
    %v1794 = vmul.f32 %v1727, 1.442695
    %v1795 = vpow.pop %v1794
    %v1796 = vmul.f32 %v1728, 1.442695
    %v1797 = vpow.pop %v1796
    %v1798 = vmul.f32 %v1729, 1.442695
    %v1799 = vpow.pop %v1798
    %v1800 = vmul.f32 %v1730, 1.442695
    %v1801 = vpow.pop %v1800
    %v1802 = vmul.f32 %v1731, 1.442695
    %v1803 = vpow.pop %v1802
    %v1804 = vmul.f32 %v1732, 1.442695
    %v1805 = vpow.pop %v1804
    %v1806 = vmul.f32 %v1733, 1.442695
    %v1807 = vpow.pop %v1806
    %v1808 = vmul.f32 %v1734, 1.442695
    %v1809 = vpow.pop %v1808
    %v1810 = vmul.f32 %v1735, 1.442695
    %v1811 = vpow.pop %v1810
    %v1812 = vmul.f32 %v1736, 1.442695
    %v1813 = vpow.pop %v1812
    %v1814 = vmul.f32 %v1737, 1.442695
    %v1815 = vpow.pop %v1814
    %v1816 = vmul.f32 %v1738, 1.442695
    %v1817 = vpow.pop %v1816
    %v1818 = vmul.f32 %v1739, 1.442695
    %v1819 = vpow.pop %v1818
    %v1820 = vmul.f32 %v1740, 1.442695
    %v1821 = vpow.pop %v1820
    %v1822 = vmul.f32 %v1741, 1.442695
    %v1823 = vpow.pop %v1822
    %v1824 = vmul.f32 %v1742, 1.442695
    %v1825 = vpow.pop %v1824
    %v1826 = vmul.f32 %v1743, 1.442695
    %v1827 = vpow.pop %v1826
    %v1828 = vmul.f32 %v1744, 1.442695
    %v1829 = vpow.pop %v1828
    %v1830 = vmul.f32 %v1745, 1.442695
    %v1831 = vpow.pop %v1830
    %v1832 = vmul.f32 %v1746, 1.442695
    %v1833 = vpow.pop %v1832
    %v1834 = vmul.f32 %v1747, 1.442695
    %v1835 = vpow.pop %v1834
    %v1836 = vmul.f32 %v1748, 1.442695
    %v1837 = vpow.pop %v1836
    %v1838 = vmul.f32 %v1749, 1.442695
    %v1839 = vpow.pop %v1838
    %v1840 = vmul.f32 %v1750, 1.442695
    %v1841 = vpow.pop %v1840
    %v1842 = vmul.f32 %v1751, 1.442695
    %v1843 = vpow.pop %v1842
    %v1844 = vmul.f32 %v1752, 1.442695
    %v1845 = vpow.pop %v1844
    %v1846 = vmul.f32 %v1753, 1.442695
    %v1847 = vpow.pop %v1846
    %v1848 = vmul.f32 %v1754, 1.442695
    %v1849 = vpow.pop %v1848
    %v1850 = vmul.f32 %v1755, 1.442695
    %v1851 = vpow.pop %v1850
    %v1852 = vmul.f32 %v1756, 1.442695
    %v1853 = vpow.pop %v1852
    %v1854 = vmul.f32 %v1757, 1.442695
    %v1855 = vpow.pop %v1854
    %v1856 = vmul.f32 %v1758, 1.442695
    %v1857 = vpow.pop %v1856
    %v1858 = vmul.f32 %v1759, 1.442695
    %v1859 = vpow.pop %v1858
    %v1860 = vmul.f32 %v1760, 1.442695
    %v1861 = vpow.pop %v1860
    %v1862 = vmul.f32 %v1761, 1.442695
    %v1863 = vpow.pop %v1862
    %v1864 = vmul.f32 %v1762, 1.442695
    %v1865 = vpow.pop %v1864
    %v1866 = vmul.f32 %v1763, 1.442695
    %v1867 = vpow.pop %v1866
    %v1868 = vmul.f32 %v1764, 1.442695
    %v1869 = vpow.pop %v1868
    %v1870 = vmul.f32 %v1765, 1.442695
    %v1871 = vpow.pop %v1870
    %v1872 = vmul.f32 %v1766, 1.442695
    %v1873 = vpow.pop %v1872
    %v1874 = vmul.f32 %v1767, 1.442695
    %v1875 = vpow.pop %v1874
    %v1876 = vmul.f32 %v1768, 1.442695
    %v1877 = vpow.pop %v1876
    %v1878 = vmul.f32 %v1769, 1.442695
    %v1879 = vpow.pop %v1878
    %v1880 = vmul.f32 %v1770, 1.442695
    %v1881 = vpow.pop %v1880
    %v1882 = vmul.f32 %v1771, 1.442695
    %v1883 = vpow.pop %v1882
    %v1884 = vmul.f32 %v1772, 1.442695
    %v1885 = vpow.pop %v1884
    %v1886 = vmul.f32 %v1773, 1.442695
    %v1887 = vpow.pop %v1886
    %v1888 = vmul.f32 %v1774, 1.442695
    %v1889 = vpow.pop %v1888
    %v1890 = vmul.f32 %v1775, 1.442695
    %v1891 = vpow.pop %v1890
    %v1892 = vmul.f32 %v1776, 1.442695
    %v1893 = vpow.pop %v1892
    %v1894 = vmul.f32 %v1777, 1.442695
    %v1895 = vpow.pop %v1894
    %v1896 = vmul.f32 %v1778, 1.442695
    %v1897 = vpow.pop %v1896
    %v1898 = vmul.f32 %v1779, 1.442695
    %v1899 = vpow.pop %v1898
    %v1900 = vmul.f32 %v1780, 1.442695
    %v1901 = vpow.pop %v1900
    %v1902 = vmul.f32 %v1781, 1.442695
    %v1903 = vpow.pop %v1902
    %v1904 = vmul.f32 %v1782, 1.442695
    %v1905 = vpow.pop %v1904
    %v1906 = vmul.f32 %v1783, 1.442695
    %v1907 = vpow.pop %v1906
    %v1908 = vmul.f32 %v1784, 1.442695
    %v1909 = vpow.pop %v1908
    %v1910 = vmul.f32 %v1785, 1.442695
    %v1911 = vpow.pop %v1910
    %v1912 = vmul.f32 %v1786, 1.442695
    %v1913 = vpow.pop %v1912
    %v1914 = vmul.f32 %v1787, 1.442695
    %v1915 = vpow.pop %v1914
    %v1916 = vsel %vm1531, %v1789, 0.0
    %1917 = vadd.xlane.f32.xlu0 %v1916
    %v1918 = vpop.xlane.xlu0 %1917
    %v1919 = vsel %vm1531, %v1791, 0.0
    %1920 = vadd.xlane.f32.xlu0 %v1919
    %v1921 = vpop.xlane.xlu0 %1920
    %v1922 = vsel %vm1531, %v1793, 0.0
    %1923 = vadd.xlane.f32.xlu0 %v1922
    %v1924 = vpop.xlane.xlu0 %1923
    %v1925 = vsel %vm1531, %v1795, 0.0
    %1926 = vadd.xlane.f32.xlu0 %v1925
    %v1927 = vpop.xlane.xlu0 %1926
    %v1928 = vsel %vm1531, %v1797, 0.0
    %1929 = vadd.xlane.f32.xlu0 %v1928
    %v1930 = vpop.xlane.xlu0 %1929
    %v1931 = vsel %vm1531, %v1799, 0.0
    %1932 = vadd.xlane.f32.xlu0 %v1931
    %v1933 = vpop.xlane.xlu0 %1932
    %v1934 = vsel %vm1531, %v1801, 0.0
    %1935 = vadd.xlane.f32.xlu0 %v1934
    %v1936 = vpop.xlane.xlu0 %1935
    %v1937 = vsel %vm1531, %v1803, 0.0
    %1938 = vadd.xlane.f32.xlu0 %v1937
    %v1939 = vpop.xlane.xlu0 %1938
    %v1940 = vsel %vm1531, %v1805, 0.0
    %1941 = vadd.xlane.f32.xlu0 %v1940
    %v1942 = vpop.xlane.xlu0 %1941
    %v1943 = vsel %vm1531, %v1807, 0.0
    %1944 = vadd.xlane.f32.xlu0 %v1943
    %v1945 = vpop.xlane.xlu0 %1944
    %v1946 = vsel %vm1531, %v1809, 0.0
    %1947 = vadd.xlane.f32.xlu0 %v1946
    %v1948 = vpop.xlane.xlu0 %1947
    %v1949 = vsel %vm1531, %v1811, 0.0
    %1950 = vadd.xlane.f32.xlu0 %v1949
    %v1951 = vpop.xlane.xlu0 %1950
    %v1952 = vsel %vm1531, %v1813, 0.0
    %1953 = vadd.xlane.f32.xlu0 %v1952
    %v1954 = vpop.xlane.xlu0 %1953
    %v1955 = vsel %vm1531, %v1815, 0.0
    %1956 = vadd.xlane.f32.xlu0 %v1955
    %v1957 = vpop.xlane.xlu0 %1956
    %v1958 = vsel %vm1531, %v1817, 0.0
    %1959 = vadd.xlane.f32.xlu0 %v1958
    %v1960 = vpop.xlane.xlu0 %1959
    %v1961 = vsel %vm1531, %v1819, 0.0
    %1962 = vadd.xlane.f32.xlu0 %v1961
    %v1963 = vpop.xlane.xlu0 %1962
    %v1964 = vsel %vm1531, %v1821, 0.0
    %1965 = vadd.xlane.f32.xlu0 %v1964
    %v1966 = vpop.xlane.xlu0 %1965
    %v1967 = vsel %vm1531, %v1823, 0.0
    %1968 = vadd.xlane.f32.xlu0 %v1967
    %v1969 = vpop.xlane.xlu0 %1968
    %v1970 = vsel %vm1531, %v1825, 0.0
    %1971 = vadd.xlane.f32.xlu0 %v1970
    %v1972 = vpop.xlane.xlu0 %1971
    %v1973 = vsel %vm1531, %v1827, 0.0
    %1974 = vadd.xlane.f32.xlu0 %v1973
    %v1975 = vpop.xlane.xlu0 %1974
    %v1976 = vsel %vm1531, %v1829, 0.0
    %1977 = vadd.xlane.f32.xlu0 %v1976
    %v1978 = vpop.xlane.xlu0 %1977
    %v1979 = vsel %vm1531, %v1831, 0.0
    %1980 = vadd.xlane.f32.xlu0 %v1979
    %v1981 = vpop.xlane.xlu0 %1980
    %v1982 = vsel %vm1531, %v1833, 0.0
    %1983 = vadd.xlane.f32.xlu0 %v1982
    %v1984 = vpop.xlane.xlu0 %1983
    %v1985 = vsel %vm1531, %v1835, 0.0
    %1986 = vadd.xlane.f32.xlu0 %v1985
    %v1987 = vpop.xlane.xlu0 %1986
    %v1988 = vsel %vm1531, %v1837, 0.0
    %1989 = vadd.xlane.f32.xlu0 %v1988
    %v1990 = vpop.xlane.xlu0 %1989
    %v1991 = vsel %vm1531, %v1839, 0.0
    %1992 = vadd.xlane.f32.xlu0 %v1991
    %v1993 = vpop.xlane.xlu0 %1992
    %v1994 = vsel %vm1531, %v1841, 0.0
    %1995 = vadd.xlane.f32.xlu0 %v1994
    %v1996 = vpop.xlane.xlu0 %1995
    %v1997 = vsel %vm1531, %v1843, 0.0
    %1998 = vadd.xlane.f32.xlu0 %v1997
    %v1999 = vpop.xlane.xlu0 %1998
    %v2000 = vsel %vm1531, %v1845, 0.0
    %2001 = vadd.xlane.f32.xlu0 %v2000
    %v2002 = vpop.xlane.xlu0 %2001
    %v2003 = vsel %vm1531, %v1847, 0.0
    %2004 = vadd.xlane.f32.xlu0 %v2003
    %v2005 = vpop.xlane.xlu0 %2004
    %v2006 = vsel %vm1531, %v1849, 0.0
    %2007 = vadd.xlane.f32.xlu0 %v2006
    %v2008 = vpop.xlane.xlu0 %2007
    %v2009 = vsel %vm1531, %v1851, 0.0
    %2010 = vadd.xlane.f32.xlu0 %v2009
    %v2011 = vpop.xlane.xlu0 %2010
    %v2012 = vsel %vm1531, %v1853, 0.0
    %2013 = vadd.xlane.f32.xlu0 %v2012
    %v2014 = vpop.xlane.xlu0 %2013
    %v2015 = vsel %vm1531, %v1855, 0.0
    %2016 = vadd.xlane.f32.xlu0 %v2015
    %v2017 = vpop.xlane.xlu0 %2016
    %v2018 = vsel %vm1531, %v1857, 0.0
    %2019 = vadd.xlane.f32.xlu0 %v2018
    %v2020 = vpop.xlane.xlu0 %2019
    %v2021 = vsel %vm1531, %v1859, 0.0
    %2022 = vadd.xlane.f32.xlu0 %v2021
    %v2023 = vpop.xlane.xlu0 %2022
    %v2024 = vsel %vm1531, %v1861, 0.0
    %2025 = vadd.xlane.f32.xlu0 %v2024
    %v2026 = vpop.xlane.xlu0 %2025
    %v2027 = vsel %vm1531, %v1863, 0.0
    %2028 = vadd.xlane.f32.xlu0 %v2027
    %v2029 = vpop.xlane.xlu0 %2028
    %v2030 = vsel %vm1531, %v1865, 0.0
    %2031 = vadd.xlane.f32.xlu0 %v2030
    %v2032 = vpop.xlane.xlu0 %2031
    %v2033 = vsel %vm1531, %v1867, 0.0
    %2034 = vadd.xlane.f32.xlu0 %v2033
    %v2035 = vpop.xlane.xlu0 %2034
    %v2036 = vsel %vm1531, %v1869, 0.0
    %2037 = vadd.xlane.f32.xlu0 %v2036
    %v2038 = vpop.xlane.xlu0 %2037
    %v2039 = vsel %vm1531, %v1871, 0.0
    %2040 = vadd.xlane.f32.xlu0 %v2039
    %v2041 = vpop.xlane.xlu0 %2040
    %v2042 = vsel %vm1531, %v1873, 0.0
    %2043 = vadd.xlane.f32.xlu0 %v2042
    %v2044 = vpop.xlane.xlu0 %2043
    %v2045 = vsel %vm1531, %v1875, 0.0
    %2046 = vadd.xlane.f32.xlu0 %v2045
    %v2047 = vpop.xlane.xlu0 %2046
    %v2048 = vsel %vm1531, %v1877, 0.0
    %2049 = vadd.xlane.f32.xlu0 %v2048
    %v2050 = vpop.xlane.xlu0 %2049
    %v2051 = vsel %vm1531, %v1879, 0.0
    %2052 = vadd.xlane.f32.xlu0 %v2051
    %v2053 = vpop.xlane.xlu0 %2052
    %v2054 = vsel %vm1531, %v1881, 0.0
    %2055 = vadd.xlane.f32.xlu0 %v2054
    %v2056 = vpop.xlane.xlu0 %2055
    %v2057 = vsel %vm1531, %v1883, 0.0
    %2058 = vadd.xlane.f32.xlu0 %v2057
    %v2059 = vpop.xlane.xlu0 %2058
    %v2060 = vsel %vm1531, %v1885, 0.0
    %2061 = vadd.xlane.f32.xlu0 %v2060
    %v2062 = vpop.xlane.xlu0 %2061
    %v2063 = vsel %vm1531, %v1887, 0.0
    %2064 = vadd.xlane.f32.xlu0 %v2063
    %v2065 = vpop.xlane.xlu0 %2064
    %v2066 = vsel %vm1531, %v1889, 0.0
    %2067 = vadd.xlane.f32.xlu0 %v2066
    %v2068 = vpop.xlane.xlu0 %2067
    %v2069 = vsel %vm1531, %v1891, 0.0
    %2070 = vadd.xlane.f32.xlu0 %v2069
    %v2071 = vpop.xlane.xlu0 %2070
    %v2072 = vsel %vm1531, %v1893, 0.0
    %2073 = vadd.xlane.f32.xlu0 %v2072
    %v2074 = vpop.xlane.xlu0 %2073
    %v2075 = vsel %vm1531, %v1895, 0.0
    %2076 = vadd.xlane.f32.xlu0 %v2075
    %v2077 = vpop.xlane.xlu0 %2076
    %v2078 = vsel %vm1531, %v1897, 0.0
    %2079 = vadd.xlane.f32.xlu0 %v2078
    %v2080 = vpop.xlane.xlu0 %2079
    %v2081 = vsel %vm1531, %v1899, 0.0
    %2082 = vadd.xlane.f32.xlu0 %v2081
    %v2083 = vpop.xlane.xlu0 %2082
    %v2084 = vsel %vm1531, %v1901, 0.0
    %2085 = vadd.xlane.f32.xlu0 %v2084
    %v2086 = vpop.xlane.xlu0 %2085
    %v2087 = vsel %vm1531, %v1903, 0.0
    %2088 = vadd.xlane.f32.xlu0 %v2087
    %v2089 = vpop.xlane.xlu0 %2088
    %v2090 = vsel %vm1531, %v1905, 0.0
    %2091 = vadd.xlane.f32.xlu0 %v2090
    %v2092 = vpop.xlane.xlu0 %2091
    %v2093 = vsel %vm1531, %v1907, 0.0
    %2094 = vadd.xlane.f32.xlu0 %v2093
    %v2095 = vpop.xlane.xlu0 %2094
    %v2096 = vsel %vm1531, %v1909, 0.0
    %2097 = vadd.xlane.f32.xlu0 %v2096
    %v2098 = vpop.xlane.xlu0 %2097
    %v2099 = vsel %vm1531, %v1911, 0.0
    %2100 = vadd.xlane.f32.xlu0 %v2099
    %v2101 = vpop.xlane.xlu0 %2100
    %v2102 = vsel %vm1531, %v1913, 0.0
    %2103 = vadd.xlane.f32.xlu0 %v2102
    %v2104 = vpop.xlane.xlu0 %2103
    %v2105 = vsel %vm1531, %v1915, 0.0
    %2106 = vadd.xlane.f32.xlu0 %v2105
    %v2107 = vpop.xlane.xlu0 %2106
    %v2108 = vrcp.pop %v1918
    %v2109 = vrcp.pop %v1921
    %v2110 = vrcp.pop %v1924
    %v2111 = vrcp.pop %v1927
    %v2112 = vrcp.pop %v1930
    %v2113 = vrcp.pop %v1933
    %v2114 = vrcp.pop %v1936
    %v2115 = vrcp.pop %v1939
    %v2116 = vrcp.pop %v1942
    %v2117 = vrcp.pop %v1945
    %v2118 = vrcp.pop %v1948
    %v2119 = vrcp.pop %v1951
    %v2120 = vrcp.pop %v1954
    %v2121 = vrcp.pop %v1957
    %v2122 = vrcp.pop %v1960
    %v2123 = vrcp.pop %v1963
    %v2124 = vrcp.pop %v1966
    %v2125 = vrcp.pop %v1969
    %v2126 = vrcp.pop %v1972
    %v2127 = vrcp.pop %v1975
    %v2128 = vrcp.pop %v1978
    %v2129 = vrcp.pop %v1981
    %v2130 = vrcp.pop %v1984
    %v2131 = vrcp.pop %v1987
    %v2132 = vrcp.pop %v1990
    %v2133 = vrcp.pop %v1993
    %v2134 = vrcp.pop %v1996
    %v2135 = vrcp.pop %v1999
    %v2136 = vrcp.pop %v2002
    %v2137 = vrcp.pop %v2005
    %v2138 = vrcp.pop %v2008
    %v2139 = vrcp.pop %v2011
    %v2140 = vrcp.pop %v2014
    %v2141 = vrcp.pop %v2017
    %v2142 = vrcp.pop %v2020
    %v2143 = vrcp.pop %v2023
    %v2144 = vrcp.pop %v2026
    %v2145 = vrcp.pop %v2029
    %v2146 = vrcp.pop %v2032
    %v2147 = vrcp.pop %v2035
    %v2148 = vrcp.pop %v2038
    %v2149 = vrcp.pop %v2041
    %v2150 = vrcp.pop %v2044
    %v2151 = vrcp.pop %v2047
    %v2152 = vrcp.pop %v2050
    %v2153 = vrcp.pop %v2053
    %v2154 = vrcp.pop %v2056
    %v2155 = vrcp.pop %v2059
    %v2156 = vrcp.pop %v2062
    %v2157 = vrcp.pop %v2065
    %v2158 = vrcp.pop %v2068
    %v2159 = vrcp.pop %v2071
    %v2160 = vrcp.pop %v2074
    %v2161 = vrcp.pop %v2077
    %v2162 = vrcp.pop %v2080
    %v2163 = vrcp.pop %v2083
    %v2164 = vrcp.pop %v2086
    %v2165 = vrcp.pop %v2089
    %v2166 = vrcp.pop %v2092
    %v2167 = vrcp.pop %v2095
    %v2168 = vrcp.pop %v2098
    %v2169 = vrcp.pop %v2101
    %v2170 = vrcp.pop %v2104
    %v2171 = vrcp.pop %v2107
    %v2172 = vmul.f32 %v1789, %v2108
    %v2173 = vmul.f32 %v1791, %v2109
    %v2174 = vmul.f32 %v1793, %v2110
    %v2175 = vmul.f32 %v1795, %v2111
    %v2176 = vmul.f32 %v1797, %v2112
    %v2177 = vmul.f32 %v1799, %v2113
    %v2178 = vmul.f32 %v1801, %v2114
    %v2179 = vmul.f32 %v1803, %v2115
    %v2180 = vmul.f32 %v1805, %v2116
    %v2181 = vmul.f32 %v1807, %v2117
    %v2182 = vmul.f32 %v1809, %v2118
    %v2183 = vmul.f32 %v1811, %v2119
    %v2184 = vmul.f32 %v1813, %v2120
    %v2185 = vmul.f32 %v1815, %v2121
    %v2186 = vmul.f32 %v1817, %v2122
    %v2187 = vmul.f32 %v1819, %v2123
    %v2188 = vmul.f32 %v1821, %v2124
    %v2189 = vmul.f32 %v1823, %v2125
    %v2190 = vmul.f32 %v1825, %v2126
    %v2191 = vmul.f32 %v1827, %v2127
    %v2192 = vmul.f32 %v1829, %v2128
    %v2193 = vmul.f32 %v1831, %v2129
    %v2194 = vmul.f32 %v1833, %v2130
    %v2195 = vmul.f32 %v1835, %v2131
    %v2196 = vmul.f32 %v1837, %v2132
    %v2197 = vmul.f32 %v1839, %v2133
    %v2198 = vmul.f32 %v1841, %v2134
    %v2199 = vmul.f32 %v1843, %v2135
    %v2200 = vmul.f32 %v1845, %v2136
    %v2201 = vmul.f32 %v1847, %v2137
    %v2202 = vmul.f32 %v1849, %v2138
    %v2203 = vmul.f32 %v1851, %v2139
    %v2204 = vmul.f32 %v1853, %v2140
    %v2205 = vmul.f32 %v1855, %v2141
    %v2206 = vmul.f32 %v1857, %v2142
    %v2207 = vmul.f32 %v1859, %v2143
    %v2208 = vmul.f32 %v1861, %v2144
    %v2209 = vmul.f32 %v1863, %v2145
    %v2210 = vmul.f32 %v1865, %v2146
    %v2211 = vmul.f32 %v1867, %v2147
    %v2212 = vmul.f32 %v1869, %v2148
    %v2213 = vmul.f32 %v1871, %v2149
    %v2214 = vmul.f32 %v1873, %v2150
    %v2215 = vmul.f32 %v1875, %v2151
    %v2216 = vmul.f32 %v1877, %v2152
    %v2217 = vmul.f32 %v1879, %v2153
    %v2218 = vmul.f32 %v1881, %v2154
    %v2219 = vmul.f32 %v1883, %v2155
    %v2220 = vmul.f32 %v1885, %v2156
    %v2221 = vmul.f32 %v1887, %v2157
    %v2222 = vmul.f32 %v1889, %v2158
    %v2223 = vmul.f32 %v1891, %v2159
    %v2224 = vmul.f32 %v1893, %v2160
    %v2225 = vmul.f32 %v1895, %v2161
    %v2226 = vmul.f32 %v1897, %v2162
    %v2227 = vmul.f32 %v1899, %v2163
    %v2228 = vmul.f32 %v1901, %v2164
    %v2229 = vmul.f32 %v1903, %v2165
    %v2230 = vmul.f32 %v1905, %v2166
    %v2231 = vmul.f32 %v1907, %v2167
    %v2232 = vmul.f32 %v1909, %v2168
    %v2233 = vmul.f32 %v1911, %v2169
    %v2234 = vmul.f32 %v1913, %v2170
    %v2235 = vmul.f32 %v1915, %v2171
    %v2236 = vpack.c.bf16 %v2172, %v2172
    %v2237 = vpack.c.bf16 %v2173, %v2173
    %v2238 = vpack.c.bf16 %v2174, %v2174
    %v2239 = vpack.c.bf16 %v2175, %v2175
    %v2240 = vpack.c.bf16 %v2176, %v2176
    %v2241 = vpack.c.bf16 %v2177, %v2177
    %v2242 = vpack.c.bf16 %v2178, %v2178
    %v2243 = vpack.c.bf16 %v2179, %v2179
    %v2244 = vpack.c.bf16 %v2180, %v2180
    %v2245 = vpack.c.bf16 %v2181, %v2181
    %v2246 = vpack.c.bf16 %v2182, %v2182
    %v2247 = vpack.c.bf16 %v2183, %v2183
    %v2248 = vpack.c.bf16 %v2184, %v2184
    %v2249 = vpack.c.bf16 %v2185, %v2185
    %v2250 = vpack.c.bf16 %v2186, %v2186
    %v2251 = vpack.c.bf16 %v2187, %v2187
    %v2252 = vpack.c.bf16 %v2188, %v2188
    %v2253 = vpack.c.bf16 %v2189, %v2189
    %v2254 = vpack.c.bf16 %v2190, %v2190
    %v2255 = vpack.c.bf16 %v2191, %v2191
    %v2256 = vpack.c.bf16 %v2192, %v2192
    %v2257 = vpack.c.bf16 %v2193, %v2193
    %v2258 = vpack.c.bf16 %v2194, %v2194
    %v2259 = vpack.c.bf16 %v2195, %v2195
    %v2260 = vpack.c.bf16 %v2196, %v2196
    %v2261 = vpack.c.bf16 %v2197, %v2197
    %v2262 = vpack.c.bf16 %v2198, %v2198
    %v2263 = vpack.c.bf16 %v2199, %v2199
    %v2264 = vpack.c.bf16 %v2200, %v2200
    %v2265 = vpack.c.bf16 %v2201, %v2201
    %v2266 = vpack.c.bf16 %v2202, %v2202
    %v2267 = vpack.c.bf16 %v2203, %v2203
    %v2268 = vpack.c.bf16 %v2204, %v2204
    %v2269 = vpack.c.bf16 %v2205, %v2205
    %v2270 = vpack.c.bf16 %v2206, %v2206
    %v2271 = vpack.c.bf16 %v2207, %v2207
    %v2272 = vpack.c.bf16 %v2208, %v2208
    %v2273 = vpack.c.bf16 %v2209, %v2209
    %v2274 = vpack.c.bf16 %v2210, %v2210
    %v2275 = vpack.c.bf16 %v2211, %v2211
    %v2276 = vpack.c.bf16 %v2212, %v2212
    %v2277 = vpack.c.bf16 %v2213, %v2213
    %v2278 = vpack.c.bf16 %v2214, %v2214
    %v2279 = vpack.c.bf16 %v2215, %v2215
    %v2280 = vpack.c.bf16 %v2216, %v2216
    %v2281 = vpack.c.bf16 %v2217, %v2217
    %v2282 = vpack.c.bf16 %v2218, %v2218
    %v2283 = vpack.c.bf16 %v2219, %v2219
    %v2284 = vpack.c.bf16 %v2220, %v2220
    %v2285 = vpack.c.bf16 %v2221, %v2221
    %v2286 = vpack.c.bf16 %v2222, %v2222
    %v2287 = vpack.c.bf16 %v2223, %v2223
    %v2288 = vpack.c.bf16 %v2224, %v2224
    %v2289 = vpack.c.bf16 %v2225, %v2225
    %v2290 = vpack.c.bf16 %v2226, %v2226
    %v2291 = vpack.c.bf16 %v2227, %v2227
    %v2292 = vpack.c.bf16 %v2228, %v2228
    %v2293 = vpack.c.bf16 %v2229, %v2229
    %v2294 = vpack.c.bf16 %v2230, %v2230
    %v2295 = vpack.c.bf16 %v2231, %v2231
    %v2296 = vpack.c.bf16 %v2232, %v2232
    %v2297 = vpack.c.bf16 %v2233, %v2233
    %v2298 = vpack.c.bf16 %v2234, %v2234
    %v2299 = vpack.c.bf16 %v2235, %v2235
    %v2308 = vunpack.c.l.b16 %v2236
    %v2309 = vunpack.c.l.b16 %v2237
    %v2310 = vunpack.c.l.b16 %v2238
    %v2311 = vunpack.c.l.b16 %v2239
    %v2312 = vunpack.c.l.b16 %v2240
    %v2313 = vunpack.c.l.b16 %v2241
    %v2314 = vunpack.c.l.b16 %v2242
    %v2315 = vunpack.c.l.b16 %v2243
    %v2316 = vpack.c.b16 %v2309, %v2308
    %v2317 = vpack.c.b16 %v2311, %v2310
    %v2318 = vpack.c.b16 %v2313, %v2312
    %v2319 = vpack.c.b16 %v2315, %v2314
    %v2320 = vunpack.c.l.b16 %v562
    %v2321 = vunpack.c.l.b16 %v563
    %v2322 = vunpack.c.l.b16 %v564
    %v2323 = vunpack.c.l.b16 %v565
    %v2324 = vunpack.c.l.b16 %v566
    %v2325 = vunpack.c.l.b16 %v567
    %v2326 = vunpack.c.l.b16 %v568
    %v2327 = vunpack.c.l.b16 %v569
    %v2328 = vpack.c.b16 %v2321, %v2320
    %v2329 = vpack.c.b16 %v2323, %v2322
    %v2330 = vpack.c.b16 %v2325, %v2324
    %v2331 = vpack.c.b16 %v2327, %v2326
    %v2337 = vsel %vm1531, %v2316, 0
    %v2340 = vsel %vm1531, %v2317, 0
    %v2343 = vsel %vm1531, %v2318, 0
    %v2346 = vsel %vm1531, %v2319, 0
    %2348 = vmatpush.bf16.msra.mxu0 0
    %2349 = vmatpush.bf16.msra.mxu0 0
    %2350 = vmatpush.bf16.msra.mxu0 0
    %2351 = vmatpush.bf16.msra.mxu0 0
    %2352 = vmatpush.bf16.msra.mxu0 %v2331
    %2353 = vmatpush.bf16.msra.mxu0 %v2330
    %2354 = vmatpush.bf16.msra.mxu0 %v2329
    %2355 = vmatpush.bf16.msra.mxu0 %v2328
    %2356 = vmatmul.bf16.gmra.mxu0 %v2337
    %v2357 = vpop.f32.mrf.mxu0
    %v2358 = vadd.f32 0.0, %v2357
    %v2359 = vpop.f32.mrf.mxu0
    %v2360 = vadd.f32 0.0, %v2359
    %2361 = vmatmul.bf16.gmra.mxu0 %v2340
    %v2362 = vpop.f32.mrf.mxu0
    %v2363 = vadd.f32 0.0, %v2362
    %v2364 = vpop.f32.mrf.mxu0
    %v2365 = vadd.f32 0.0, %v2364
    %2366 = vmatmul.bf16.gmra.mxu0 %v2343
    %v2367 = vpop.f32.mrf.mxu0
    %v2368 = vadd.f32 0.0, %v2367
    %v2369 = vpop.f32.mrf.mxu0
    %v2370 = vadd.f32 0.0, %v2369
    %2371 = vmatmul.bf16.gmra.mxu0 %v2346
    %v2372 = vpop.f32.mrf.mxu0
    %v2373 = vadd.f32 0.0, %v2372
    %v2374 = vpop.f32.mrf.mxu0
    %v2375 = vadd.f32 0.0, %v2374
    %2376 = vdwg.mxu0
    %v2385 = vunpack.c.l.b16 %v2244
    %v2386 = vunpack.c.l.b16 %v2245
    %v2387 = vunpack.c.l.b16 %v2246
    %v2388 = vunpack.c.l.b16 %v2247
    %v2389 = vunpack.c.l.b16 %v2248
    %v2390 = vunpack.c.l.b16 %v2249
    %v2391 = vunpack.c.l.b16 %v2250
    %v2392 = vunpack.c.l.b16 %v2251
    %v2393 = vpack.c.b16 %v2386, %v2385
    %v2394 = vpack.c.b16 %v2388, %v2387
    %v2395 = vpack.c.b16 %v2390, %v2389
    %v2396 = vpack.c.b16 %v2392, %v2391
    %v2397 = vunpack.c.l.b16 %v811
    %v2398 = vunpack.c.l.b16 %v813
    %v2399 = vunpack.c.l.b16 %v815
    %v2400 = vunpack.c.l.b16 %v817
    %v2401 = vunpack.c.l.b16 %v819
    %v2402 = vunpack.c.l.b16 %v821
    %v2403 = vunpack.c.l.b16 %v823
    %v2404 = vunpack.c.l.b16 %v825
    %v2405 = vpack.c.b16 %v2398, %v2397
    %v2406 = vpack.c.b16 %v2400, %v2399
    %v2407 = vpack.c.b16 %v2402, %v2401
    %v2408 = vpack.c.b16 %v2404, %v2403
    %v2414 = vsel %vm1531, %v2393, 0
    %v2417 = vsel %vm1531, %v2394, 0
    %v2420 = vsel %vm1531, %v2395, 0
    %v2423 = vsel %vm1531, %v2396, 0
    %2425 = vmatpush.bf16.msra.mxu0 0
    %2426 = vmatpush.bf16.msra.mxu0 0
    %2427 = vmatpush.bf16.msra.mxu0 0
    %2428 = vmatpush.bf16.msra.mxu0 0
    %2429 = vmatpush.bf16.msra.mxu0 %v2408
    %2430 = vmatpush.bf16.msra.mxu0 %v2407
    %2431 = vmatpush.bf16.msra.mxu0 %v2406
    %2432 = vmatpush.bf16.msra.mxu0 %v2405
    %2433 = vmatmul.bf16.gmra.mxu0 %v2414
    %v2434 = vpop.f32.mrf.mxu0
    %v2435 = vadd.f32 0.0, %v2434
    %v2436 = vpop.f32.mrf.mxu0
    %v2437 = vadd.f32 0.0, %v2436
    %2438 = vmatmul.bf16.gmra.mxu0 %v2417
    %v2439 = vpop.f32.mrf.mxu0
    %v2440 = vadd.f32 0.0, %v2439
    %v2441 = vpop.f32.mrf.mxu0
    %v2442 = vadd.f32 0.0, %v2441
    %2443 = vmatmul.bf16.gmra.mxu0 %v2420
    %v2444 = vpop.f32.mrf.mxu0
    %v2445 = vadd.f32 0.0, %v2444
    %v2446 = vpop.f32.mrf.mxu0
    %v2447 = vadd.f32 0.0, %v2446
    %2448 = vmatmul.bf16.gmra.mxu0 %v2423
    %v2449 = vpop.f32.mrf.mxu0
    %v2450 = vadd.f32 0.0, %v2449
    %v2451 = vpop.f32.mrf.mxu0
    %v2452 = vadd.f32 0.0, %v2451
    %2453 = vdwg.mxu0
    %v2462 = vunpack.c.l.b16 %v2252
    %v2463 = vunpack.c.l.b16 %v2253
    %v2464 = vunpack.c.l.b16 %v2254
    %v2465 = vunpack.c.l.b16 %v2255
    %v2466 = vunpack.c.l.b16 %v2256
    %v2467 = vunpack.c.l.b16 %v2257
    %v2468 = vunpack.c.l.b16 %v2258
    %v2469 = vunpack.c.l.b16 %v2259
    %v2470 = vpack.c.b16 %v2463, %v2462
    %v2471 = vpack.c.b16 %v2465, %v2464
    %v2472 = vpack.c.b16 %v2467, %v2466
    %v2473 = vpack.c.b16 %v2469, %v2468
    %v2474 = vunpack.c.l.b16 %v827
    %v2475 = vunpack.c.l.b16 %v829
    %v2476 = vunpack.c.l.b16 %v831
    %v2477 = vunpack.c.l.b16 %v833
    %v2478 = vunpack.c.l.b16 %v835
    %v2479 = vunpack.c.l.b16 %v837
    %v2480 = vunpack.c.l.b16 %v839
    %v2481 = vunpack.c.l.b16 %v841
    %v2482 = vpack.c.b16 %v2475, %v2474
    %v2483 = vpack.c.b16 %v2477, %v2476
    %v2484 = vpack.c.b16 %v2479, %v2478
    %v2485 = vpack.c.b16 %v2481, %v2480
    %v2491 = vsel %vm1531, %v2470, 0
    %v2494 = vsel %vm1531, %v2471, 0
    %v2497 = vsel %vm1531, %v2472, 0
    %v2500 = vsel %vm1531, %v2473, 0
    %2502 = vmatpush.bf16.msra.mxu0 0
    %2503 = vmatpush.bf16.msra.mxu0 0
    %2504 = vmatpush.bf16.msra.mxu0 0
    %2505 = vmatpush.bf16.msra.mxu0 0
    %2506 = vmatpush.bf16.msra.mxu0 %v2485
    %2507 = vmatpush.bf16.msra.mxu0 %v2484
    %2508 = vmatpush.bf16.msra.mxu0 %v2483
    %2509 = vmatpush.bf16.msra.mxu0 %v2482
    %2510 = vmatmul.bf16.gmra.mxu0 %v2491
    %v2511 = vpop.f32.mrf.mxu0
    %v2512 = vadd.f32 0.0, %v2511
    %v2513 = vpop.f32.mrf.mxu0
    %v2514 = vadd.f32 0.0, %v2513
    %2515 = vmatmul.bf16.gmra.mxu0 %v2494
    %v2516 = vpop.f32.mrf.mxu0
    %v2517 = vadd.f32 0.0, %v2516
    %v2518 = vpop.f32.mrf.mxu0
    %v2519 = vadd.f32 0.0, %v2518
    %2520 = vmatmul.bf16.gmra.mxu0 %v2497
    %v2521 = vpop.f32.mrf.mxu0
    %v2522 = vadd.f32 0.0, %v2521
    %v2523 = vpop.f32.mrf.mxu0
    %v2524 = vadd.f32 0.0, %v2523
    %2525 = vmatmul.bf16.gmra.mxu0 %v2500
    %v2526 = vpop.f32.mrf.mxu0
    %v2527 = vadd.f32 0.0, %v2526
    %v2528 = vpop.f32.mrf.mxu0
    %v2529 = vadd.f32 0.0, %v2528
    %2530 = vdwg.mxu0
    %v2539 = vunpack.c.l.b16 %v2260
    %v2540 = vunpack.c.l.b16 %v2261
    %v2541 = vunpack.c.l.b16 %v2262
    %v2542 = vunpack.c.l.b16 %v2263
    %v2543 = vunpack.c.l.b16 %v2264
    %v2544 = vunpack.c.l.b16 %v2265
    %v2545 = vunpack.c.l.b16 %v2266
    %v2546 = vunpack.c.l.b16 %v2267
    %v2547 = vpack.c.b16 %v2540, %v2539
    %v2548 = vpack.c.b16 %v2542, %v2541
    %v2549 = vpack.c.b16 %v2544, %v2543
    %v2550 = vpack.c.b16 %v2546, %v2545
    %v2551 = vunpack.c.l.b16 %v843
    %v2552 = vunpack.c.l.b16 %v845
    %v2553 = vunpack.c.l.b16 %v847
    %v2554 = vunpack.c.l.b16 %v849
    %v2555 = vunpack.c.l.b16 %v851
    %v2556 = vunpack.c.l.b16 %v853
    %v2557 = vunpack.c.l.b16 %v855
    %v2558 = vunpack.c.l.b16 %v857
    %v2559 = vpack.c.b16 %v2552, %v2551
    %v2560 = vpack.c.b16 %v2554, %v2553
    %v2561 = vpack.c.b16 %v2556, %v2555
    %v2562 = vpack.c.b16 %v2558, %v2557
    %v2568 = vsel %vm1531, %v2547, 0
    %v2571 = vsel %vm1531, %v2548, 0
    %v2574 = vsel %vm1531, %v2549, 0
    %v2577 = vsel %vm1531, %v2550, 0
    %2579 = vmatpush.bf16.msra.mxu0 0
    %2580 = vmatpush.bf16.msra.mxu0 0
    %2581 = vmatpush.bf16.msra.mxu0 0
    %2582 = vmatpush.bf16.msra.mxu0 0
    %2583 = vmatpush.bf16.msra.mxu0 %v2562
    %2584 = vmatpush.bf16.msra.mxu0 %v2561
    %2585 = vmatpush.bf16.msra.mxu0 %v2560
    %2586 = vmatpush.bf16.msra.mxu0 %v2559
    %2587 = vmatmul.bf16.gmra.mxu0 %v2568
    %v2588 = vpop.f32.mrf.mxu0
    %v2589 = vadd.f32 0.0, %v2588
    %v2590 = vpop.f32.mrf.mxu0
    %v2591 = vadd.f32 0.0, %v2590
    %2592 = vmatmul.bf16.gmra.mxu0 %v2571
    %v2593 = vpop.f32.mrf.mxu0
    %v2594 = vadd.f32 0.0, %v2593
    %v2595 = vpop.f32.mrf.mxu0
    %v2596 = vadd.f32 0.0, %v2595
    %2597 = vmatmul.bf16.gmra.mxu0 %v2574
    %v2598 = vpop.f32.mrf.mxu0
    %v2599 = vadd.f32 0.0, %v2598
    %v2600 = vpop.f32.mrf.mxu0
    %v2601 = vadd.f32 0.0, %v2600
    %2602 = vmatmul.bf16.gmra.mxu0 %v2577
    %v2603 = vpop.f32.mrf.mxu0
    %v2604 = vadd.f32 0.0, %v2603
    %v2605 = vpop.f32.mrf.mxu0
    %v2606 = vadd.f32 0.0, %v2605
    %2607 = vdwg.mxu0
    %v2616 = vunpack.c.l.b16 %v2268
    %v2617 = vunpack.c.l.b16 %v2269
    %v2618 = vunpack.c.l.b16 %v2270
    %v2619 = vunpack.c.l.b16 %v2271
    %v2620 = vunpack.c.l.b16 %v2272
    %v2621 = vunpack.c.l.b16 %v2273
    %v2622 = vunpack.c.l.b16 %v2274
    %v2623 = vunpack.c.l.b16 %v2275
    %v2624 = vpack.c.b16 %v2617, %v2616
    %v2625 = vpack.c.b16 %v2619, %v2618
    %v2626 = vpack.c.b16 %v2621, %v2620
    %v2627 = vpack.c.b16 %v2623, %v2622
    %v2628 = vunpack.c.l.b16 %v570
    %v2629 = vunpack.c.l.b16 %v571
    %v2630 = vunpack.c.l.b16 %v572
    %v2631 = vunpack.c.l.b16 %v573
    %v2632 = vunpack.c.l.b16 %v574
    %v2633 = vunpack.c.l.b16 %v575
    %v2634 = vunpack.c.l.b16 %v576
    %v2635 = vunpack.c.l.b16 %v577
    %v2636 = vpack.c.b16 %v2629, %v2628
    %v2637 = vpack.c.b16 %v2631, %v2630
    %v2638 = vpack.c.b16 %v2633, %v2632
    %v2639 = vpack.c.b16 %v2635, %v2634
    %v2645 = vsel %vm1531, %v2624, 0
    %v2648 = vsel %vm1531, %v2625, 0
    %v2651 = vsel %vm1531, %v2626, 0
    %v2654 = vsel %vm1531, %v2627, 0
    %2656 = vmatpush.bf16.msra.mxu0 0
    %2657 = vmatpush.bf16.msra.mxu0 0
    %2658 = vmatpush.bf16.msra.mxu0 0
    %2659 = vmatpush.bf16.msra.mxu0 0
    %2660 = vmatpush.bf16.msra.mxu0 %v2639
    %2661 = vmatpush.bf16.msra.mxu0 %v2638
    %2662 = vmatpush.bf16.msra.mxu0 %v2637
    %2663 = vmatpush.bf16.msra.mxu0 %v2636
    %2664 = vmatmul.bf16.gmra.mxu0 %v2645
    %v2665 = vpop.f32.mrf.mxu0
    %v2666 = vadd.f32 0.0, %v2665
    %v2667 = vpop.f32.mrf.mxu0
    %v2668 = vadd.f32 0.0, %v2667
    %2669 = vmatmul.bf16.gmra.mxu0 %v2648
    %v2670 = vpop.f32.mrf.mxu0
    %v2671 = vadd.f32 0.0, %v2670
    %v2672 = vpop.f32.mrf.mxu0
    %v2673 = vadd.f32 0.0, %v2672
    %2674 = vmatmul.bf16.gmra.mxu0 %v2651
    %v2675 = vpop.f32.mrf.mxu0
    %v2676 = vadd.f32 0.0, %v2675
    %v2677 = vpop.f32.mrf.mxu0
    %v2678 = vadd.f32 0.0, %v2677
    %2679 = vmatmul.bf16.gmra.mxu0 %v2654
    %v2680 = vpop.f32.mrf.mxu0
    %v2681 = vadd.f32 0.0, %v2680
    %v2682 = vpop.f32.mrf.mxu0
    %v2683 = vadd.f32 0.0, %v2682
    %2684 = vdwg.mxu0
    %v2693 = vunpack.c.l.b16 %v2276
    %v2694 = vunpack.c.l.b16 %v2277
    %v2695 = vunpack.c.l.b16 %v2278
    %v2696 = vunpack.c.l.b16 %v2279
    %v2697 = vunpack.c.l.b16 %v2280
    %v2698 = vunpack.c.l.b16 %v2281
    %v2699 = vunpack.c.l.b16 %v2282
    %v2700 = vunpack.c.l.b16 %v2283
    %v2701 = vpack.c.b16 %v2694, %v2693
    %v2702 = vpack.c.b16 %v2696, %v2695
    %v2703 = vpack.c.b16 %v2698, %v2697
    %v2704 = vpack.c.b16 %v2700, %v2699
    %v2705 = vunpack.c.l.b16 %v867
    %v2706 = vunpack.c.l.b16 %v869
    %v2707 = vunpack.c.l.b16 %v871
    %v2708 = vunpack.c.l.b16 %v873
    %v2709 = vunpack.c.l.b16 %v875
    %v2710 = vunpack.c.l.b16 %v877
    %v2711 = vunpack.c.l.b16 %v879
    %v2712 = vunpack.c.l.b16 %v881
    %v2713 = vpack.c.b16 %v2706, %v2705
    %v2714 = vpack.c.b16 %v2708, %v2707
    %v2715 = vpack.c.b16 %v2710, %v2709
    %v2716 = vpack.c.b16 %v2712, %v2711
    %v2722 = vsel %vm1531, %v2701, 0
    %v2725 = vsel %vm1531, %v2702, 0
    %v2728 = vsel %vm1531, %v2703, 0
    %v2731 = vsel %vm1531, %v2704, 0
    %2733 = vmatpush.bf16.msra.mxu0 0
    %2734 = vmatpush.bf16.msra.mxu0 0
    %2735 = vmatpush.bf16.msra.mxu0 0
    %2736 = vmatpush.bf16.msra.mxu0 0
    %2737 = vmatpush.bf16.msra.mxu0 %v2716
    %2738 = vmatpush.bf16.msra.mxu0 %v2715
    %2739 = vmatpush.bf16.msra.mxu0 %v2714
    %2740 = vmatpush.bf16.msra.mxu0 %v2713
    %2741 = vmatmul.bf16.gmra.mxu0 %v2722
    %v2742 = vpop.f32.mrf.mxu0
    %v2743 = vadd.f32 0.0, %v2742
    %v2744 = vpop.f32.mrf.mxu0
    %v2745 = vadd.f32 0.0, %v2744
    %2746 = vmatmul.bf16.gmra.mxu0 %v2725
    %v2747 = vpop.f32.mrf.mxu0
    %v2748 = vadd.f32 0.0, %v2747
    %v2749 = vpop.f32.mrf.mxu0
    %v2750 = vadd.f32 0.0, %v2749
    %2751 = vmatmul.bf16.gmra.mxu0 %v2728
    %v2752 = vpop.f32.mrf.mxu0
    %v2753 = vadd.f32 0.0, %v2752
    %v2754 = vpop.f32.mrf.mxu0
    %v2755 = vadd.f32 0.0, %v2754
    %2756 = vmatmul.bf16.gmra.mxu0 %v2731
    %v2757 = vpop.f32.mrf.mxu0
    %v2758 = vadd.f32 0.0, %v2757
    %v2759 = vpop.f32.mrf.mxu0
    %v2760 = vadd.f32 0.0, %v2759
    %2761 = vdwg.mxu0
    %v2770 = vunpack.c.l.b16 %v2284
    %v2771 = vunpack.c.l.b16 %v2285
    %v2772 = vunpack.c.l.b16 %v2286
    %v2773 = vunpack.c.l.b16 %v2287
    %v2774 = vunpack.c.l.b16 %v2288
    %v2775 = vunpack.c.l.b16 %v2289
    %v2776 = vunpack.c.l.b16 %v2290
    %v2777 = vunpack.c.l.b16 %v2291
    %v2778 = vpack.c.b16 %v2771, %v2770
    %v2779 = vpack.c.b16 %v2773, %v2772
    %v2780 = vpack.c.b16 %v2775, %v2774
    %v2781 = vpack.c.b16 %v2777, %v2776
    %v2782 = vunpack.c.l.b16 %v883
    %v2783 = vunpack.c.l.b16 %v885
    %v2784 = vunpack.c.l.b16 %v887
    %v2785 = vunpack.c.l.b16 %v889
    %v2786 = vunpack.c.l.b16 %v891
    %v2787 = vunpack.c.l.b16 %v893
    %v2788 = vunpack.c.l.b16 %v895
    %v2789 = vunpack.c.l.b16 %v897
    %v2790 = vpack.c.b16 %v2783, %v2782
    %v2791 = vpack.c.b16 %v2785, %v2784
    %v2792 = vpack.c.b16 %v2787, %v2786
    %v2793 = vpack.c.b16 %v2789, %v2788
    %v2799 = vsel %vm1531, %v2778, 0
    %v2802 = vsel %vm1531, %v2779, 0
    %v2805 = vsel %vm1531, %v2780, 0
    %v2808 = vsel %vm1531, %v2781, 0
    %2810 = vmatpush.bf16.msra.mxu0 0
    %2811 = vmatpush.bf16.msra.mxu0 0
    %2812 = vmatpush.bf16.msra.mxu0 0
    %2813 = vmatpush.bf16.msra.mxu0 0
    %2814 = vmatpush.bf16.msra.mxu0 %v2793
    %2815 = vmatpush.bf16.msra.mxu0 %v2792
    %2816 = vmatpush.bf16.msra.mxu0 %v2791
    %2817 = vmatpush.bf16.msra.mxu0 %v2790
    %2818 = vmatmul.bf16.gmra.mxu0 %v2799
    %v2819 = vpop.f32.mrf.mxu0
    %v2820 = vadd.f32 0.0, %v2819
    %v2821 = vpop.f32.mrf.mxu0
    %v2822 = vadd.f32 0.0, %v2821
    %2823 = vmatmul.bf16.gmra.mxu0 %v2802
    %v2824 = vpop.f32.mrf.mxu0
    %v2825 = vadd.f32 0.0, %v2824
    %v2826 = vpop.f32.mrf.mxu0
    %v2827 = vadd.f32 0.0, %v2826
    %2828 = vmatmul.bf16.gmra.mxu0 %v2805
    %v2829 = vpop.f32.mrf.mxu0
    %v2830 = vadd.f32 0.0, %v2829
    %v2831 = vpop.f32.mrf.mxu0
    %v2832 = vadd.f32 0.0, %v2831
    %2833 = vmatmul.bf16.gmra.mxu0 %v2808
    %v2834 = vpop.f32.mrf.mxu0
    %v2835 = vadd.f32 0.0, %v2834
    %v2836 = vpop.f32.mrf.mxu0
    %v2837 = vadd.f32 0.0, %v2836
    %2838 = vdwg.mxu0
    %v2847 = vunpack.c.l.b16 %v2292
    %v2848 = vunpack.c.l.b16 %v2293
    %v2849 = vunpack.c.l.b16 %v2294
    %v2850 = vunpack.c.l.b16 %v2295
    %v2851 = vunpack.c.l.b16 %v2296
    %v2852 = vunpack.c.l.b16 %v2297
    %v2853 = vunpack.c.l.b16 %v2298
    %v2854 = vunpack.c.l.b16 %v2299
    %v2855 = vpack.c.b16 %v2848, %v2847
    %v2856 = vpack.c.b16 %v2850, %v2849
    %v2857 = vpack.c.b16 %v2852, %v2851
    %v2858 = vpack.c.b16 %v2854, %v2853
    %v2859 = vunpack.c.l.b16 %v899
    %v2860 = vunpack.c.l.b16 %v901
    %v2861 = vunpack.c.l.b16 %v903
    %v2862 = vunpack.c.l.b16 %v905
    %v2863 = vunpack.c.l.b16 %v907
    %v2864 = vunpack.c.l.b16 %v909
    %v2865 = vunpack.c.l.b16 %v911
    %v2866 = vunpack.c.l.b16 %v913
    %v2867 = vpack.c.b16 %v2860, %v2859
    %v2868 = vpack.c.b16 %v2862, %v2861
    %v2869 = vpack.c.b16 %v2864, %v2863
    %v2870 = vpack.c.b16 %v2866, %v2865
    %v2876 = vsel %vm1531, %v2855, 0
    %v2879 = vsel %vm1531, %v2856, 0
    %v2882 = vsel %vm1531, %v2857, 0
    %v2885 = vsel %vm1531, %v2858, 0
    %2887 = vmatpush.bf16.msra.mxu0 0
    %2888 = vmatpush.bf16.msra.mxu0 0
    %2889 = vmatpush.bf16.msra.mxu0 0
    %2890 = vmatpush.bf16.msra.mxu0 0
    %2891 = vmatpush.bf16.msra.mxu0 %v2870
    %2892 = vmatpush.bf16.msra.mxu0 %v2869
    %2893 = vmatpush.bf16.msra.mxu0 %v2868
    %2894 = vmatpush.bf16.msra.mxu0 %v2867
    %2895 = vmatmul.bf16.gmra.mxu0 %v2876
    %v2896 = vpop.f32.mrf.mxu0
    %v2897 = vadd.f32 0.0, %v2896
    %v2898 = vpop.f32.mrf.mxu0
    %v2899 = vadd.f32 0.0, %v2898
    %2900 = vmatmul.bf16.gmra.mxu0 %v2879
    %v2901 = vpop.f32.mrf.mxu0
    %v2902 = vadd.f32 0.0, %v2901
    %v2903 = vpop.f32.mrf.mxu0
    %v2904 = vadd.f32 0.0, %v2903
    %2905 = vmatmul.bf16.gmra.mxu0 %v2882
    %v2906 = vpop.f32.mrf.mxu0
    %v2907 = vadd.f32 0.0, %v2906
    %v2908 = vpop.f32.mrf.mxu0
    %v2909 = vadd.f32 0.0, %v2908
    %2910 = vmatmul.bf16.gmra.mxu0 %v2885
    %v2911 = vpop.f32.mrf.mxu0
    %v2912 = vadd.f32 0.0, %v2911
    %v2913 = vpop.f32.mrf.mxu0
    %v2914 = vadd.f32 0.0, %v2913
    %2915 = vdwg.mxu0
    %v2916 = vpack.c.bf16 %v2358, %v2358
    %v2917 = vpack.c.bf16 %v2360, %v2360
    %v2918 = vpack.c.bf16 %v2363, %v2363
    %v2919 = vpack.c.bf16 %v2365, %v2365
    %v2920 = vpack.c.bf16 %v2368, %v2368
    %v2921 = vpack.c.bf16 %v2370, %v2370
    %v2922 = vpack.c.bf16 %v2373, %v2373
    %v2923 = vpack.c.bf16 %v2375, %v2375
    %v2924 = vpack.c.bf16 %v2435, %v2435
    %v2925 = vpack.c.bf16 %v2437, %v2437
    %v2926 = vpack.c.bf16 %v2440, %v2440
    %v2927 = vpack.c.bf16 %v2442, %v2442
    %v2928 = vpack.c.bf16 %v2445, %v2445
    %v2929 = vpack.c.bf16 %v2447, %v2447
    %v2930 = vpack.c.bf16 %v2450, %v2450
    %v2931 = vpack.c.bf16 %v2452, %v2452
    %v2932 = vpack.c.bf16 %v2512, %v2512
    %v2933 = vpack.c.bf16 %v2514, %v2514
    %v2934 = vpack.c.bf16 %v2517, %v2517
    %v2935 = vpack.c.bf16 %v2519, %v2519
    %v2936 = vpack.c.bf16 %v2522, %v2522
    %v2937 = vpack.c.bf16 %v2524, %v2524
    %v2938 = vpack.c.bf16 %v2527, %v2527
    %v2939 = vpack.c.bf16 %v2529, %v2529
    %v2940 = vpack.c.bf16 %v2589, %v2589
    %v2941 = vpack.c.bf16 %v2591, %v2591
    %v2942 = vpack.c.bf16 %v2594, %v2594
    %v2943 = vpack.c.bf16 %v2596, %v2596
    %v2944 = vpack.c.bf16 %v2599, %v2599
    %v2945 = vpack.c.bf16 %v2601, %v2601
    %v2946 = vpack.c.bf16 %v2604, %v2604
    %v2947 = vpack.c.bf16 %v2606, %v2606
    %v2948 = vpack.c.bf16 %v2666, %v2666
    %v2949 = vpack.c.bf16 %v2668, %v2668
    %v2950 = vpack.c.bf16 %v2671, %v2671
    %v2951 = vpack.c.bf16 %v2673, %v2673
    %v2952 = vpack.c.bf16 %v2676, %v2676
    %v2953 = vpack.c.bf16 %v2678, %v2678
    %v2954 = vpack.c.bf16 %v2681, %v2681
    %v2955 = vpack.c.bf16 %v2683, %v2683
    %v2956 = vpack.c.bf16 %v2743, %v2743
    %v2957 = vpack.c.bf16 %v2745, %v2745
    %v2958 = vpack.c.bf16 %v2748, %v2748
    %v2959 = vpack.c.bf16 %v2750, %v2750
    %v2960 = vpack.c.bf16 %v2753, %v2753
    %v2961 = vpack.c.bf16 %v2755, %v2755
    %v2962 = vpack.c.bf16 %v2758, %v2758
    %v2963 = vpack.c.bf16 %v2760, %v2760
    %v2964 = vpack.c.bf16 %v2820, %v2820
    %v2965 = vpack.c.bf16 %v2822, %v2822
    %v2966 = vpack.c.bf16 %v2825, %v2825
    %v2967 = vpack.c.bf16 %v2827, %v2827
    %v2968 = vpack.c.bf16 %v2830, %v2830
    %v2969 = vpack.c.bf16 %v2832, %v2832
    %v2970 = vpack.c.bf16 %v2835, %v2835
    %v2971 = vpack.c.bf16 %v2837, %v2837
    %v2972 = vpack.c.bf16 %v2897, %v2897
    %v2973 = vpack.c.bf16 %v2899, %v2899
    %v2974 = vpack.c.bf16 %v2902, %v2902
    %v2975 = vpack.c.bf16 %v2904, %v2904
    %v2976 = vpack.c.bf16 %v2907, %v2907
    %v2977 = vpack.c.bf16 %v2909, %v2909
    %v2978 = vpack.c.bf16 %v2912, %v2912
    %v2979 = vpack.c.bf16 %v2914, %v2914
    %v2980 = vld [vmem:[#allocation10] sm:$0xf]
    %v2981 = vld [vmem:[#allocation10 + $0x4] sm:$0xf]
    %v2982 = vld [vmem:[#allocation10 + $0x8] sm:$0xf]
    %v2983 = vld [vmem:[#allocation10 + $0xc] sm:$0xf]
    %v2984 = vld [vmem:[#allocation10 + $0x10] sm:$0xf]
    %v2985 = vld [vmem:[#allocation10 + $0x14] sm:$0xf]
    %v2986 = vld [vmem:[#allocation10 + $0x18] sm:$0xf]
    %v2987 = vld [vmem:[#allocation10 + $0x1c] sm:$0xf]
    %v2988 = vld [vmem:[#allocation10 + $0x20] sm:$0xf]
    %v2989 = vld [vmem:[#allocation10 + $0x24] sm:$0xf]
    %v2990 = vld [vmem:[#allocation10 + $0x28] sm:$0xf]
    %v2991 = vld [vmem:[#allocation10 + $0x2c] sm:$0xf]
    %v2992 = vld [vmem:[#allocation10 + $0x30] sm:$0xf]
    %v2993 = vld [vmem:[#allocation10 + $0x34] sm:$0xf]
    %v2994 = vld [vmem:[#allocation10 + $0x38] sm:$0xf]
    %v2995 = vld [vmem:[#allocation10 + $0x3c] sm:$0xf]
    %v2996 = vld [vmem:[#allocation10 + $0x40] sm:$0xf]
    %v2997 = vld [vmem:[#allocation10 + $0x44] sm:$0xf]
    %v2998 = vld [vmem:[#allocation10 + $0x48] sm:$0xf]
    %v2999 = vld [vmem:[#allocation10 + $0x4c] sm:$0xf]
    %v3000 = vld [vmem:[#allocation10 + $0x50] sm:$0xf]
    %v3001 = vld [vmem:[#allocation10 + $0x54] sm:$0xf]
    %v3002 = vld [vmem:[#allocation10 + $0x58] sm:$0xf]
    %v3003 = vld [vmem:[#allocation10 + $0x5c] sm:$0xf]
    %v3004 = vld [vmem:[#allocation10 + $0x60] sm:$0xf]
    %v3005 = vld [vmem:[#allocation10 + $0x64] sm:$0xf]
    %v3006 = vld [vmem:[#allocation10 + $0x68] sm:$0xf]
    %v3007 = vld [vmem:[#allocation10 + $0x6c] sm:$0xf]
    %v3008 = vld [vmem:[#allocation10 + $0x70] sm:$0xf]
    %v3009 = vld [vmem:[#allocation10 + $0x74] sm:$0xf]
    %v3010 = vld [vmem:[#allocation10 + $0x78] sm:$0xf]
    %v3011 = vld [vmem:[#allocation10 + $0x7c] sm:$0xf]
    %v3020 = vunpack.c.l.b16 %v2916
    %v3021 = vunpack.c.l.b16 %v2917
    %v3022 = vunpack.c.l.b16 %v2918
    %v3023 = vunpack.c.l.b16 %v2919
    %v3024 = vunpack.c.l.b16 %v2920
    %v3025 = vunpack.c.l.b16 %v2921
    %v3026 = vunpack.c.l.b16 %v2922
    %v3027 = vunpack.c.l.b16 %v2923
    %v3028 = vpack.c.b16 %v3021, %v3020
    %v3029 = vpack.c.b16 %v3023, %v3022
    %v3030 = vpack.c.b16 %v3025, %v3024
    %v3031 = vpack.c.b16 %v3027, %v3026
    %v3036 = vunpack.c.l.b16 %v2980
    %v3037 = vunpack.c.l.b16 %v2981
    %v3038 = vunpack.c.l.b16 %v2982
    %v3039 = vunpack.c.l.b16 %v2983
    %v3040 = vpack.c.b16 %v3037, %v3036
    %v3041 = vpack.c.b16 %v3039, %v3038
    %v3045 = vsel %vm938, %v3028, 0
    %v3048 = vsel %vm938, %v3029, 0
    %v3051 = vsel %vm938, %v3030, 0
    %v3054 = vsel %vm938, %v3031, 0
    %3056 = vmatpush.bf16.msra.mxu0 0
    %3057 = vmatpush.bf16.msra.mxu0 0
    %3058 = vmatpush.bf16.msra.mxu0 0
    %3059 = vmatpush.bf16.msra.mxu0 0
    %3060 = vmatpush.bf16.msra.mxu0 0
    %3061 = vmatpush.bf16.msra.mxu0 0
    %3062 = vmatpush.bf16.msra.mxu0 %v3041
    %3063 = vmatpush.bf16.msra.mxu0 %v3040
    %3064 = vmatmul.bf16.gmra.mxu0 %v3045
    %v3065 = vpop.f32.mrf.mxu0
    %v3066 = vadd.f32 0.0, %v3065
    %v3067 = vpop.f32.mrf.mxu0
    %v3068 = vadd.f32 0.0, %v3067
    %3069 = vmatmul.bf16.gmra.mxu0 %v3048
    %v3070 = vpop.f32.mrf.mxu0
    %v3071 = vadd.f32 0.0, %v3070
    %v3072 = vpop.f32.mrf.mxu0
    %v3073 = vadd.f32 0.0, %v3072
    %3074 = vmatmul.bf16.gmra.mxu0 %v3051
    %v3075 = vpop.f32.mrf.mxu0
    %v3076 = vadd.f32 0.0, %v3075
    %v3077 = vpop.f32.mrf.mxu0
    %v3078 = vadd.f32 0.0, %v3077
    %3079 = vmatmul.bf16.gmra.mxu0 %v3054
    %v3080 = vpop.f32.mrf.mxu0
    %v3081 = vadd.f32 0.0, %v3080
    %v3082 = vpop.f32.mrf.mxu0
    %v3083 = vadd.f32 0.0, %v3082
    %3084 = vdwg.mxu0
    %v3093 = vunpack.c.l.b16 %v2924
    %v3094 = vunpack.c.l.b16 %v2925
    %v3095 = vunpack.c.l.b16 %v2926
    %v3096 = vunpack.c.l.b16 %v2927
    %v3097 = vunpack.c.l.b16 %v2928
    %v3098 = vunpack.c.l.b16 %v2929
    %v3099 = vunpack.c.l.b16 %v2930
    %v3100 = vunpack.c.l.b16 %v2931
    %v3101 = vpack.c.b16 %v3094, %v3093
    %v3102 = vpack.c.b16 %v3096, %v3095
    %v3103 = vpack.c.b16 %v3098, %v3097
    %v3104 = vpack.c.b16 %v3100, %v3099
    %v3109 = vunpack.c.l.b16 %v2984
    %v3110 = vunpack.c.l.b16 %v2985
    %v3111 = vunpack.c.l.b16 %v2986
    %v3112 = vunpack.c.l.b16 %v2987
    %v3113 = vpack.c.b16 %v3110, %v3109
    %v3114 = vpack.c.b16 %v3112, %v3111
    %v3118 = vsel %vm938, %v3101, 0
    %v3121 = vsel %vm938, %v3102, 0
    %v3124 = vsel %vm938, %v3103, 0
    %v3127 = vsel %vm938, %v3104, 0
    %3129 = vmatpush.bf16.msra.mxu0 0
    %3130 = vmatpush.bf16.msra.mxu0 0
    %3131 = vmatpush.bf16.msra.mxu0 0
    %3132 = vmatpush.bf16.msra.mxu0 0
    %3133 = vmatpush.bf16.msra.mxu0 0
    %3134 = vmatpush.bf16.msra.mxu0 0
    %3135 = vmatpush.bf16.msra.mxu0 %v3114
    %3136 = vmatpush.bf16.msra.mxu0 %v3113
    %3137 = vmatmul.bf16.gmra.mxu0 %v3118
    %v3138 = vpop.f32.mrf.mxu0
    %v3139 = vadd.f32 0.0, %v3138
    %v3140 = vpop.f32.mrf.mxu0
    %v3141 = vadd.f32 0.0, %v3140
    %3142 = vmatmul.bf16.gmra.mxu0 %v3121
    %v3143 = vpop.f32.mrf.mxu0
    %v3144 = vadd.f32 0.0, %v3143
    %v3145 = vpop.f32.mrf.mxu0
    %v3146 = vadd.f32 0.0, %v3145
    %3147 = vmatmul.bf16.gmra.mxu0 %v3124
    %v3148 = vpop.f32.mrf.mxu0
    %v3149 = vadd.f32 0.0, %v3148
    %v3150 = vpop.f32.mrf.mxu0
    %v3151 = vadd.f32 0.0, %v3150
    %3152 = vmatmul.bf16.gmra.mxu0 %v3127
    %v3153 = vpop.f32.mrf.mxu0
    %v3154 = vadd.f32 0.0, %v3153
    %v3155 = vpop.f32.mrf.mxu0
    %v3156 = vadd.f32 0.0, %v3155
    %3157 = vdwg.mxu0
    %v3166 = vunpack.c.l.b16 %v2932
    %v3167 = vunpack.c.l.b16 %v2933
    %v3168 = vunpack.c.l.b16 %v2934
    %v3169 = vunpack.c.l.b16 %v2935
    %v3170 = vunpack.c.l.b16 %v2936
    %v3171 = vunpack.c.l.b16 %v2937
    %v3172 = vunpack.c.l.b16 %v2938
    %v3173 = vunpack.c.l.b16 %v2939
    %v3174 = vpack.c.b16 %v3167, %v3166
    %v3175 = vpack.c.b16 %v3169, %v3168
    %v3176 = vpack.c.b16 %v3171, %v3170
    %v3177 = vpack.c.b16 %v3173, %v3172
    %v3182 = vunpack.c.l.b16 %v2988
    %v3183 = vunpack.c.l.b16 %v2989
    %v3184 = vunpack.c.l.b16 %v2990
    %v3185 = vunpack.c.l.b16 %v2991
    %v3186 = vpack.c.b16 %v3183, %v3182
    %v3187 = vpack.c.b16 %v3185, %v3184
    %v3191 = vsel %vm938, %v3174, 0
    %v3194 = vsel %vm938, %v3175, 0
    %v3197 = vsel %vm938, %v3176, 0
    %v3200 = vsel %vm938, %v3177, 0
    %3202 = vmatpush.bf16.msra.mxu0 0
    %3203 = vmatpush.bf16.msra.mxu0 0
    %3204 = vmatpush.bf16.msra.mxu0 0
    %3205 = vmatpush.bf16.msra.mxu0 0
    %3206 = vmatpush.bf16.msra.mxu0 0
    %3207 = vmatpush.bf16.msra.mxu0 0
    %3208 = vmatpush.bf16.msra.mxu0 %v3187
    %3209 = vmatpush.bf16.msra.mxu0 %v3186
    %3210 = vmatmul.bf16.gmra.mxu0 %v3191
    %v3211 = vpop.f32.mrf.mxu0
    %v3212 = vadd.f32 0.0, %v3211
    %v3213 = vpop.f32.mrf.mxu0
    %v3214 = vadd.f32 0.0, %v3213
    %3215 = vmatmul.bf16.gmra.mxu0 %v3194
    %v3216 = vpop.f32.mrf.mxu0
    %v3217 = vadd.f32 0.0, %v3216
    %v3218 = vpop.f32.mrf.mxu0
    %v3219 = vadd.f32 0.0, %v3218
    %3220 = vmatmul.bf16.gmra.mxu0 %v3197
    %v3221 = vpop.f32.mrf.mxu0
    %v3222 = vadd.f32 0.0, %v3221
    %v3223 = vpop.f32.mrf.mxu0
    %v3224 = vadd.f32 0.0, %v3223
    %3225 = vmatmul.bf16.gmra.mxu0 %v3200
    %v3226 = vpop.f32.mrf.mxu0
    %v3227 = vadd.f32 0.0, %v3226
    %v3228 = vpop.f32.mrf.mxu0
    %v3229 = vadd.f32 0.0, %v3228
    %3230 = vdwg.mxu0
    %v3239 = vunpack.c.l.b16 %v2940
    %v3240 = vunpack.c.l.b16 %v2941
    %v3241 = vunpack.c.l.b16 %v2942
    %v3242 = vunpack.c.l.b16 %v2943
    %v3243 = vunpack.c.l.b16 %v2944
    %v3244 = vunpack.c.l.b16 %v2945
    %v3245 = vunpack.c.l.b16 %v2946
    %v3246 = vunpack.c.l.b16 %v2947
    %v3247 = vpack.c.b16 %v3240, %v3239
    %v3248 = vpack.c.b16 %v3242, %v3241
    %v3249 = vpack.c.b16 %v3244, %v3243
    %v3250 = vpack.c.b16 %v3246, %v3245
    %v3255 = vunpack.c.l.b16 %v2992
    %v3256 = vunpack.c.l.b16 %v2993
    %v3257 = vunpack.c.l.b16 %v2994
    %v3258 = vunpack.c.l.b16 %v2995
    %v3259 = vpack.c.b16 %v3256, %v3255
    %v3260 = vpack.c.b16 %v3258, %v3257
    %v3264 = vsel %vm938, %v3247, 0
    %v3267 = vsel %vm938, %v3248, 0
    %v3270 = vsel %vm938, %v3249, 0
    %v3273 = vsel %vm938, %v3250, 0
    %3275 = vmatpush.bf16.msra.mxu0 0
    %3276 = vmatpush.bf16.msra.mxu0 0
    %3277 = vmatpush.bf16.msra.mxu0 0
    %3278 = vmatpush.bf16.msra.mxu0 0
    %3279 = vmatpush.bf16.msra.mxu0 0
    %3280 = vmatpush.bf16.msra.mxu0 0
    %3281 = vmatpush.bf16.msra.mxu0 %v3260
    %3282 = vmatpush.bf16.msra.mxu0 %v3259
    %3283 = vmatmul.bf16.gmra.mxu0 %v3264
    %v3284 = vpop.f32.mrf.mxu0
    %v3285 = vadd.f32 0.0, %v3284
    %v3286 = vpop.f32.mrf.mxu0
    %v3287 = vadd.f32 0.0, %v3286
    %3288 = vmatmul.bf16.gmra.mxu0 %v3267
    %v3289 = vpop.f32.mrf.mxu0
    %v3290 = vadd.f32 0.0, %v3289
    %v3291 = vpop.f32.mrf.mxu0
    %v3292 = vadd.f32 0.0, %v3291
    %3293 = vmatmul.bf16.gmra.mxu0 %v3270
    %v3294 = vpop.f32.mrf.mxu0
    %v3295 = vadd.f32 0.0, %v3294
    %v3296 = vpop.f32.mrf.mxu0
    %v3297 = vadd.f32 0.0, %v3296
    %3298 = vmatmul.bf16.gmra.mxu0 %v3273
    %v3299 = vpop.f32.mrf.mxu0
    %v3300 = vadd.f32 0.0, %v3299
    %v3301 = vpop.f32.mrf.mxu0
    %v3302 = vadd.f32 0.0, %v3301
    %3303 = vdwg.mxu0
    %v3312 = vunpack.c.l.b16 %v2948
    %v3313 = vunpack.c.l.b16 %v2949
    %v3314 = vunpack.c.l.b16 %v2950
    %v3315 = vunpack.c.l.b16 %v2951
    %v3316 = vunpack.c.l.b16 %v2952
    %v3317 = vunpack.c.l.b16 %v2953
    %v3318 = vunpack.c.l.b16 %v2954
    %v3319 = vunpack.c.l.b16 %v2955
    %v3320 = vpack.c.b16 %v3313, %v3312
    %v3321 = vpack.c.b16 %v3315, %v3314
    %v3322 = vpack.c.b16 %v3317, %v3316
    %v3323 = vpack.c.b16 %v3319, %v3318
    %v3328 = vunpack.c.l.b16 %v2996
    %v3329 = vunpack.c.l.b16 %v2997
    %v3330 = vunpack.c.l.b16 %v2998
    %v3331 = vunpack.c.l.b16 %v2999
    %v3332 = vpack.c.b16 %v3329, %v3328
    %v3333 = vpack.c.b16 %v3331, %v3330
    %v3337 = vsel %vm938, %v3320, 0
    %v3340 = vsel %vm938, %v3321, 0
    %v3343 = vsel %vm938, %v3322, 0
    %v3346 = vsel %vm938, %v3323, 0
    %3348 = vmatpush.bf16.msra.mxu0 0
    %3349 = vmatpush.bf16.msra.mxu0 0
    %3350 = vmatpush.bf16.msra.mxu0 0
    %3351 = vmatpush.bf16.msra.mxu0 0
    %3352 = vmatpush.bf16.msra.mxu0 0
    %3353 = vmatpush.bf16.msra.mxu0 0
    %3354 = vmatpush.bf16.msra.mxu0 %v3333
    %3355 = vmatpush.bf16.msra.mxu0 %v3332
    %3356 = vmatmul.bf16.gmra.mxu0 %v3337
    %v3357 = vpop.f32.mrf.mxu0
    %v3358 = vadd.f32 0.0, %v3357
    %v3359 = vpop.f32.mrf.mxu0
    %v3360 = vadd.f32 0.0, %v3359
    %3361 = vmatmul.bf16.gmra.mxu0 %v3340
    %v3362 = vpop.f32.mrf.mxu0
    %v3363 = vadd.f32 0.0, %v3362
    %v3364 = vpop.f32.mrf.mxu0
    %v3365 = vadd.f32 0.0, %v3364
    %3366 = vmatmul.bf16.gmra.mxu0 %v3343
    %v3367 = vpop.f32.mrf.mxu0
    %v3368 = vadd.f32 0.0, %v3367
    %v3369 = vpop.f32.mrf.mxu0
    %v3370 = vadd.f32 0.0, %v3369
    %3371 = vmatmul.bf16.gmra.mxu0 %v3346
    %v3372 = vpop.f32.mrf.mxu0
    %v3373 = vadd.f32 0.0, %v3372
    %v3374 = vpop.f32.mrf.mxu0
    %v3375 = vadd.f32 0.0, %v3374
    %3376 = vdwg.mxu0
    %v3385 = vunpack.c.l.b16 %v2956
    %v3386 = vunpack.c.l.b16 %v2957
    %v3387 = vunpack.c.l.b16 %v2958
    %v3388 = vunpack.c.l.b16 %v2959
    %v3389 = vunpack.c.l.b16 %v2960
    %v3390 = vunpack.c.l.b16 %v2961
    %v3391 = vunpack.c.l.b16 %v2962
    %v3392 = vunpack.c.l.b16 %v2963
    %v3393 = vpack.c.b16 %v3386, %v3385
    %v3394 = vpack.c.b16 %v3388, %v3387
    %v3395 = vpack.c.b16 %v3390, %v3389
    %v3396 = vpack.c.b16 %v3392, %v3391
    %v3401 = vunpack.c.l.b16 %v3000
    %v3402 = vunpack.c.l.b16 %v3001
    %v3403 = vunpack.c.l.b16 %v3002
    %v3404 = vunpack.c.l.b16 %v3003
    %v3405 = vpack.c.b16 %v3402, %v3401
    %v3406 = vpack.c.b16 %v3404, %v3403
    %v3410 = vsel %vm938, %v3393, 0
    %v3413 = vsel %vm938, %v3394, 0
    %v3416 = vsel %vm938, %v3395, 0
    %v3419 = vsel %vm938, %v3396, 0
    %3421 = vmatpush.bf16.msra.mxu0 0
    %3422 = vmatpush.bf16.msra.mxu0 0
    %3423 = vmatpush.bf16.msra.mxu0 0
    %3424 = vmatpush.bf16.msra.mxu0 0
    %3425 = vmatpush.bf16.msra.mxu0 0
    %3426 = vmatpush.bf16.msra.mxu0 0
    %3427 = vmatpush.bf16.msra.mxu0 %v3406
    %3428 = vmatpush.bf16.msra.mxu0 %v3405
    %3429 = vmatmul.bf16.gmra.mxu0 %v3410
    %v3430 = vpop.f32.mrf.mxu0
    %v3431 = vadd.f32 0.0, %v3430
    %v3432 = vpop.f32.mrf.mxu0
    %v3433 = vadd.f32 0.0, %v3432
    %3434 = vmatmul.bf16.gmra.mxu0 %v3413
    %v3435 = vpop.f32.mrf.mxu0
    %v3436 = vadd.f32 0.0, %v3435
    %v3437 = vpop.f32.mrf.mxu0
    %v3438 = vadd.f32 0.0, %v3437
    %3439 = vmatmul.bf16.gmra.mxu0 %v3416
    %v3440 = vpop.f32.mrf.mxu0
    %v3441 = vadd.f32 0.0, %v3440
    %v3442 = vpop.f32.mrf.mxu0
    %v3443 = vadd.f32 0.0, %v3442
    %3444 = vmatmul.bf16.gmra.mxu0 %v3419
    %v3445 = vpop.f32.mrf.mxu0
    %v3446 = vadd.f32 0.0, %v3445
    %v3447 = vpop.f32.mrf.mxu0
    %v3448 = vadd.f32 0.0, %v3447
    %3449 = vdwg.mxu0
    %v3458 = vunpack.c.l.b16 %v2964
    %v3459 = vunpack.c.l.b16 %v2965
    %v3460 = vunpack.c.l.b16 %v2966
    %v3461 = vunpack.c.l.b16 %v2967
    %v3462 = vunpack.c.l.b16 %v2968
    %v3463 = vunpack.c.l.b16 %v2969
    %v3464 = vunpack.c.l.b16 %v2970
    %v3465 = vunpack.c.l.b16 %v2971
    %v3466 = vpack.c.b16 %v3459, %v3458
    %v3467 = vpack.c.b16 %v3461, %v3460
    %v3468 = vpack.c.b16 %v3463, %v3462
    %v3469 = vpack.c.b16 %v3465, %v3464
    %v3474 = vunpack.c.l.b16 %v3004
    %v3475 = vunpack.c.l.b16 %v3005
    %v3476 = vunpack.c.l.b16 %v3006
    %v3477 = vunpack.c.l.b16 %v3007
    %v3478 = vpack.c.b16 %v3475, %v3474
    %v3479 = vpack.c.b16 %v3477, %v3476
    %v3483 = vsel %vm938, %v3466, 0
    %v3486 = vsel %vm938, %v3467, 0
    %v3489 = vsel %vm938, %v3468, 0
    %v3492 = vsel %vm938, %v3469, 0
    %3494 = vmatpush.bf16.msra.mxu0 0
    %3495 = vmatpush.bf16.msra.mxu0 0
    %3496 = vmatpush.bf16.msra.mxu0 0
    %3497 = vmatpush.bf16.msra.mxu0 0
    %3498 = vmatpush.bf16.msra.mxu0 0
    %3499 = vmatpush.bf16.msra.mxu0 0
    %3500 = vmatpush.bf16.msra.mxu0 %v3479
    %3501 = vmatpush.bf16.msra.mxu0 %v3478
    %3502 = vmatmul.bf16.gmra.mxu0 %v3483
    %v3503 = vpop.f32.mrf.mxu0
    %v3504 = vadd.f32 0.0, %v3503
    %v3505 = vpop.f32.mrf.mxu0
    %v3506 = vadd.f32 0.0, %v3505
    %3507 = vmatmul.bf16.gmra.mxu0 %v3486
    %v3508 = vpop.f32.mrf.mxu0
    %v3509 = vadd.f32 0.0, %v3508
    %v3510 = vpop.f32.mrf.mxu0
    %v3511 = vadd.f32 0.0, %v3510
    %3512 = vmatmul.bf16.gmra.mxu0 %v3489
    %v3513 = vpop.f32.mrf.mxu0
    %v3514 = vadd.f32 0.0, %v3513
    %v3515 = vpop.f32.mrf.mxu0
    %v3516 = vadd.f32 0.0, %v3515
    %3517 = vmatmul.bf16.gmra.mxu0 %v3492
    %v3518 = vpop.f32.mrf.mxu0
    %v3519 = vadd.f32 0.0, %v3518
    %v3520 = vpop.f32.mrf.mxu0
    %v3521 = vadd.f32 0.0, %v3520
    %3522 = vdwg.mxu0
    %v3531 = vunpack.c.l.b16 %v2972
    %v3532 = vunpack.c.l.b16 %v2973
    %v3533 = vunpack.c.l.b16 %v2974
    %v3534 = vunpack.c.l.b16 %v2975
    %v3535 = vunpack.c.l.b16 %v2976
    %v3536 = vunpack.c.l.b16 %v2977
    %v3537 = vunpack.c.l.b16 %v2978
    %v3538 = vunpack.c.l.b16 %v2979
    %v3539 = vpack.c.b16 %v3532, %v3531
    %v3540 = vpack.c.b16 %v3534, %v3533
    %v3541 = vpack.c.b16 %v3536, %v3535
    %v3542 = vpack.c.b16 %v3538, %v3537
    %v3547 = vunpack.c.l.b16 %v3008
    %v3548 = vunpack.c.l.b16 %v3009
    %v3549 = vunpack.c.l.b16 %v3010
    %v3550 = vunpack.c.l.b16 %v3011
    %v3551 = vpack.c.b16 %v3548, %v3547
    %v3552 = vpack.c.b16 %v3550, %v3549
    %v3556 = vsel %vm938, %v3539, 0
    %v3559 = vsel %vm938, %v3540, 0
    %v3562 = vsel %vm938, %v3541, 0
    %v3565 = vsel %vm938, %v3542, 0
    %3567 = vmatpush.bf16.msra.mxu0 0
    %3568 = vmatpush.bf16.msra.mxu0 0
    %3569 = vmatpush.bf16.msra.mxu0 0
    %3570 = vmatpush.bf16.msra.mxu0 0
    %3571 = vmatpush.bf16.msra.mxu0 0
    %3572 = vmatpush.bf16.msra.mxu0 0
    %3573 = vmatpush.bf16.msra.mxu0 %v3552
    %3574 = vmatpush.bf16.msra.mxu0 %v3551
    %3575 = vmatmul.bf16.gmra.mxu0 %v3556
    %v3576 = vpop.f32.mrf.mxu0
    %v3577 = vadd.f32 0.0, %v3576
    %v3578 = vpop.f32.mrf.mxu0
    %v3579 = vadd.f32 0.0, %v3578
    %3580 = vmatmul.bf16.gmra.mxu0 %v3559
    %v3581 = vpop.f32.mrf.mxu0
    %v3582 = vadd.f32 0.0, %v3581
    %v3583 = vpop.f32.mrf.mxu0
    %v3584 = vadd.f32 0.0, %v3583
    %3585 = vmatmul.bf16.gmra.mxu0 %v3562
    %v3586 = vpop.f32.mrf.mxu0
    %v3587 = vadd.f32 0.0, %v3586
    %v3588 = vpop.f32.mrf.mxu0
    %v3589 = vadd.f32 0.0, %v3588
    %3590 = vmatmul.bf16.gmra.mxu0 %v3565
    %v3591 = vpop.f32.mrf.mxu0
    %v3592 = vadd.f32 0.0, %v3591
    %v3593 = vpop.f32.mrf.mxu0
    %v3594 = vadd.f32 0.0, %v3593
    %3595 = vdwg.mxu0
    %v3596 = vadd.f32 %v3066, %v3139
    %v3597 = vadd.f32 %v3068, %v3141
    %v3598 = vadd.f32 %v3071, %v3144
    %v3599 = vadd.f32 %v3073, %v3146
    %v3600 = vadd.f32 %v3076, %v3149
    %v3601 = vadd.f32 %v3078, %v3151
    %v3602 = vadd.f32 %v3081, %v3154
    %v3603 = vadd.f32 %v3083, %v3156
    %v3604 = vadd.f32 %v3596, %v3212
    %v3605 = vadd.f32 %v3597, %v3214
    %v3606 = vadd.f32 %v3598, %v3217
    %v3607 = vadd.f32 %v3599, %v3219
    %v3608 = vadd.f32 %v3600, %v3222
    %v3609 = vadd.f32 %v3601, %v3224
    %v3610 = vadd.f32 %v3602, %v3227
    %v3611 = vadd.f32 %v3603, %v3229
    %v3612 = vadd.f32 %v3604, %v3285
    %v3613 = vadd.f32 %v3605, %v3287
    %v3614 = vadd.f32 %v3606, %v3290
    %v3615 = vadd.f32 %v3607, %v3292
    %v3616 = vadd.f32 %v3608, %v3295
    %v3617 = vadd.f32 %v3609, %v3297
    %v3618 = vadd.f32 %v3610, %v3300
    %v3619 = vadd.f32 %v3611, %v3302
    %v3620 = vadd.f32 %v3358, %v3431
    %v3621 = vadd.f32 %v3360, %v3433
    %v3622 = vadd.f32 %v3363, %v3436
    %v3623 = vadd.f32 %v3365, %v3438
    %v3624 = vadd.f32 %v3368, %v3441
    %v3625 = vadd.f32 %v3370, %v3443
    %v3626 = vadd.f32 %v3373, %v3446
    %v3627 = vadd.f32 %v3375, %v3448
    %v3628 = vadd.f32 %v3620, %v3504
    %v3629 = vadd.f32 %v3621, %v3506
    %v3630 = vadd.f32 %v3622, %v3509
    %v3631 = vadd.f32 %v3623, %v3511
    %v3632 = vadd.f32 %v3624, %v3514
    %v3633 = vadd.f32 %v3625, %v3516
    %v3634 = vadd.f32 %v3626, %v3519
    %v3635 = vadd.f32 %v3627, %v3521
    %v3636 = vadd.f32 %v3628, %v3577
    %v3637 = vadd.f32 %v3629, %v3579
    %v3638 = vadd.f32 %v3630, %v3582
    %v3639 = vadd.f32 %v3631, %v3584
    %v3640 = vadd.f32 %v3632, %v3587
    %v3641 = vadd.f32 %v3633, %v3589
    %v3642 = vadd.f32 %v3634, %v3592
    %v3643 = vadd.f32 %v3635, %v3594
    %v3644 = vld [vmem:[%s6] sm:$0x1]
    %v3646 = vperm.slane %v3644, 0
    %v3648 = vadd.f32 %v3612, %v3646
    %v3649 = vadd.f32 %v3613, %v3646
    %v3650 = vadd.f32 %v3614, %v3646
    %v3651 = vadd.f32 %v3615, %v3646
    %v3652 = vadd.f32 %v3616, %v3646
    %v3653 = vadd.f32 %v3617, %v3646
    %v3654 = vadd.f32 %v3618, %v3646
    %v3655 = vadd.f32 %v3619, %v3646
    %v3656 = vadd.f32 %v3636, %v3646
    %v3657 = vadd.f32 %v3637, %v3646
    %v3658 = vadd.f32 %v3638, %v3646
    %v3659 = vadd.f32 %v3639, %v3646
    %v3660 = vadd.f32 %v3640, %v3646
    %v3661 = vadd.f32 %v3641, %v3646
    %v3662 = vadd.f32 %v3642, %v3646
    %v3663 = vadd.f32 %v3643, %v3646
    %v3664 = vadd.f32 %v3648, %v151
    %v3665 = vadd.f32 %v3649, %v152
    %v3666 = vadd.f32 %v3650, %v153
    %v3667 = vadd.f32 %v3651, %v154
    %v3668 = vadd.f32 %v3652, %v155
    %v3669 = vadd.f32 %v3653, %v156
    %v3670 = vadd.f32 %v3654, %v157
    %v3671 = vadd.f32 %v3655, %v158
    %v3672 = vadd.f32 %v3656, %v159
    %v3673 = vadd.f32 %v3657, %v160
    %v3674 = vadd.f32 %v3658, %v161
    %v3675 = vadd.f32 %v3659, %v162
    %v3676 = vadd.f32 %v3660, %v163
    %v3677 = vadd.f32 %v3661, %v164
    %v3678 = vadd.f32 %v3662, %v165
    %v3679 = vadd.f32 %v3663, %v166
    %v3680 = vld [vmem:[%s7] sm:$0x1]
    %v3682 = vperm.slane %v3680, 0
    %v3684 = vmul.f32 %v3664, %v3682
    %v3685 = vmul.f32 %v3665, %v3682
    %v3686 = vmul.f32 %v3666, %v3682
    %v3687 = vmul.f32 %v3667, %v3682
    %v3688 = vmul.f32 %v3668, %v3682
    %v3689 = vmul.f32 %v3669, %v3682
    %v3690 = vmul.f32 %v3670, %v3682
    %v3691 = vmul.f32 %v3671, %v3682
    %v3692 = vmul.f32 %v3672, %v3682
    %v3693 = vmul.f32 %v3673, %v3682
    %v3694 = vmul.f32 %v3674, %v3682
    %v3695 = vmul.f32 %v3675, %v3682
    %v3696 = vmul.f32 %v3676, %v3682
    %v3697 = vmul.f32 %v3677, %v3682
    %v3698 = vmul.f32 %v3678, %v3682
    %v3699 = vmul.f32 %v3679, %v3682
    %v3700 = vld [vmem:[%s8] sm:$0x1]
    %v3702 = vperm.slane %v3700, 0
    %v3704 = vadd.f32 %v3684, %v3702
    %v3705 = vadd.f32 %v3685, %v3702
    %v3706 = vadd.f32 %v3686, %v3702
    %v3707 = vadd.f32 %v3687, %v3702
    %v3708 = vadd.f32 %v3688, %v3702
    %v3709 = vadd.f32 %v3689, %v3702
    %v3710 = vadd.f32 %v3690, %v3702
    %v3711 = vadd.f32 %v3691, %v3702
    %v3712 = vadd.f32 %v3692, %v3702
    %v3713 = vadd.f32 %v3693, %v3702
    %v3714 = vadd.f32 %v3694, %v3702
    %v3715 = vadd.f32 %v3695, %v3702
    %v3716 = vadd.f32 %v3696, %v3702
    %v3717 = vadd.f32 %v3697, %v3702
    %v3718 = vadd.f32 %v3698, %v3702
    %v3719 = vadd.f32 %v3699, %v3702
    %v3720 = vpack.c.bf16 %v3705, %v3704
    %v3721 = vpack.c.bf16 %v3707, %v3706
    %v3722 = vpack.c.bf16 %v3709, %v3708
    %v3723 = vpack.c.bf16 %v3711, %v3710
    %v3724 = vpack.c.bf16 %v3713, %v3712
    %v3725 = vpack.c.bf16 %v3715, %v3714
    %v3726 = vpack.c.bf16 %v3717, %v3716
    %v3727 = vpack.c.bf16 %v3719, %v3718
    %v3728 = vld [vmem:[#allocation11] sm:$0xf]
    %v3729 = vld [vmem:[#allocation11 + $0x4] sm:$0xf]
    %v3730 = vld [vmem:[#allocation11 + $0x8] sm:$0xf]
    %v3731 = vld [vmem:[#allocation11 + $0xc] sm:$0xf]
    %v3732 = vld [vmem:[#allocation11 + $0x10] sm:$0xf]
    %v3733 = vld [vmem:[#allocation11 + $0x14] sm:$0xf]
    %v3734 = vld [vmem:[#allocation11 + $0x18] sm:$0xf]
    %v3735 = vld [vmem:[#allocation11 + $0x1c] sm:$0xf]
    %v3736 = vld [vmem:[#allocation11 + $0x20] sm:$0xf]
    %v3737 = vld [vmem:[#allocation11 + $0x24] sm:$0xf]
    %v3738 = vld [vmem:[#allocation11 + $0x28] sm:$0xf]
    %v3739 = vld [vmem:[#allocation11 + $0x2c] sm:$0xf]
    %v3740 = vld [vmem:[#allocation11 + $0x30] sm:$0xf]
    %v3741 = vld [vmem:[#allocation11 + $0x34] sm:$0xf]
    %v3742 = vld [vmem:[#allocation11 + $0x38] sm:$0xf]
    %v3743 = vld [vmem:[#allocation11 + $0x3c] sm:$0xf]
    %v3744 = vld [vmem:[%s10] sm:$0x1]
    %v3746 = vperm.slane %v3744, 0
    %v3764 = vunpack.c.l.b16 %v3728
    %v3765 = vunpack.c.l.b16 %v3729
    %v3766 = vunpack.c.l.b16 %v3730
    %v3767 = vunpack.c.l.b16 %v3731
    %v3768 = vunpack.c.l.b16 %v3732
    %v3769 = vunpack.c.l.b16 %v3733
    %v3770 = vunpack.c.l.b16 %v3734
    %v3771 = vunpack.c.l.b16 %v3735
    %v3772 = vunpack.c.l.b16 %v3736
    %v3773 = vunpack.c.l.b16 %v3737
    %v3774 = vunpack.c.l.b16 %v3738
    %v3775 = vunpack.c.l.b16 %v3739
    %v3776 = vunpack.c.l.b16 %v3740
    %v3777 = vunpack.c.l.b16 %v3741
    %v3778 = vunpack.c.l.b16 %v3742
    %v3779 = vunpack.c.l.b16 %v3743
    %v3780 = vpack.c.b16 %v3765, %v3764
    %v3781 = vpack.c.b16 %v3767, %v3766
    %v3782 = vpack.c.b16 %v3769, %v3768
    %v3783 = vpack.c.b16 %v3771, %v3770
    %v3784 = vpack.c.b16 %v3773, %v3772
    %v3785 = vpack.c.b16 %v3775, %v3774
    %v3786 = vpack.c.b16 %v3777, %v3776
    %v3787 = vpack.c.b16 %v3779, %v3778
    %3796 = vmatpush.bf16.msra.mxu0 %v3787
    %3797 = vmatpush.bf16.msra.mxu0 %v3786
    %3798 = vmatpush.bf16.msra.mxu0 %v3785
    %3799 = vmatpush.bf16.msra.mxu0 %v3784
    %3800 = vmatpush.bf16.msra.mxu0 %v3783
    %3801 = vmatpush.bf16.msra.mxu0 %v3782
    %3802 = vmatpush.bf16.msra.mxu0 %v3781
    %3803 = vmatpush.bf16.msra.mxu0 %v3780
    %3804 = vmatmul.bf16.gmra.mxu0 %v3720
    %v3805 = vpop.f32.mrf.mxu0
    %v3806 = vadd.f32 %v3746, %v3805
    %v3807 = vpop.f32.mrf.mxu0
    %v3808 = vadd.f32 %v3746, %v3807
    %3809 = vmatmul.bf16.gmra.mxu0 %v3721
    %v3810 = vpop.f32.mrf.mxu0
    %v3811 = vadd.f32 %v3746, %v3810
    %v3812 = vpop.f32.mrf.mxu0
    %v3813 = vadd.f32 %v3746, %v3812
    %3814 = vmatmul.bf16.gmra.mxu0 %v3722
    %v3815 = vpop.f32.mrf.mxu0
    %v3816 = vadd.f32 %v3746, %v3815
    %v3817 = vpop.f32.mrf.mxu0
    %v3818 = vadd.f32 %v3746, %v3817
    %3819 = vmatmul.bf16.gmra.mxu0 %v3723
    %v3820 = vpop.f32.mrf.mxu0
    %v3821 = vadd.f32 %v3746, %v3820
    %v3822 = vpop.f32.mrf.mxu0
    %v3823 = vadd.f32 %v3746, %v3822
    %3824 = vmatmul.bf16.gmra.mxu0 %v3724
    %v3825 = vpop.f32.mrf.mxu0
    %v3826 = vadd.f32 %v3746, %v3825
    %v3827 = vpop.f32.mrf.mxu0
    %v3828 = vadd.f32 %v3746, %v3827
    %3829 = vmatmul.bf16.gmra.mxu0 %v3725
    %v3830 = vpop.f32.mrf.mxu0
    %v3831 = vadd.f32 %v3746, %v3830
    %v3832 = vpop.f32.mrf.mxu0
    %v3833 = vadd.f32 %v3746, %v3832
    %3834 = vmatmul.bf16.gmra.mxu0 %v3726
    %v3835 = vpop.f32.mrf.mxu0
    %v3836 = vadd.f32 %v3746, %v3835
    %v3837 = vpop.f32.mrf.mxu0
    %v3838 = vadd.f32 %v3746, %v3837
    %3839 = vmatmul.bf16.gmra.mxu0 %v3727
    %v3840 = vpop.f32.mrf.mxu0
    %v3841 = vadd.f32 %v3746, %v3840
    %v3842 = vpop.f32.mrf.mxu0
    %v3843 = vadd.f32 %v3746, %v3842
    %3844 = vdwg.mxu0
    %v3845 = vmul.f32 %v3806, 0.5
    %v3846 = vmul.f32 %v3808, 0.5
    %v3847 = vmul.f32 %v3811, 0.5
    %v3848 = vmul.f32 %v3813, 0.5
    %v3849 = vmul.f32 %v3816, 0.5
    %v3850 = vmul.f32 %v3818, 0.5
    %v3851 = vmul.f32 %v3821, 0.5
    %v3852 = vmul.f32 %v3823, 0.5
    %v3853 = vmul.f32 %v3826, 0.5
    %v3854 = vmul.f32 %v3828, 0.5
    %v3855 = vmul.f32 %v3831, 0.5
    %v3856 = vmul.f32 %v3833, 0.5
    %v3857 = vmul.f32 %v3836, 0.5
    %v3858 = vmul.f32 %v3838, 0.5
    %v3859 = vmul.f32 %v3841, 0.5
    %v3860 = vmul.f32 %v3843, 0.5
    %v3861 = vmul.f32 %v3806, 0.044715
    %v3862 = vmul.f32 %v3808, 0.044715
    %v3863 = vmul.f32 %v3811, 0.044715
    %v3864 = vmul.f32 %v3813, 0.044715
    %v3865 = vmul.f32 %v3816, 0.044715
    %v3866 = vmul.f32 %v3818, 0.044715
    %v3867 = vmul.f32 %v3821, 0.044715
    %v3868 = vmul.f32 %v3823, 0.044715
    %v3869 = vmul.f32 %v3826, 0.044715
    %v3870 = vmul.f32 %v3828, 0.044715
    %v3871 = vmul.f32 %v3831, 0.044715
    %v3872 = vmul.f32 %v3833, 0.044715
    %v3873 = vmul.f32 %v3836, 0.044715
    %v3874 = vmul.f32 %v3838, 0.044715
    %v3875 = vmul.f32 %v3841, 0.044715
    %v3876 = vmul.f32 %v3843, 0.044715
    %v3877 = vmul.f32 %v3861, %v3806
    %v3878 = vmul.f32 %v3862, %v3808
    %v3879 = vmul.f32 %v3863, %v3811
    %v3880 = vmul.f32 %v3864, %v3813
    %v3881 = vmul.f32 %v3865, %v3816
    %v3882 = vmul.f32 %v3866, %v3818
    %v3883 = vmul.f32 %v3867, %v3821
    %v3884 = vmul.f32 %v3868, %v3823
    %v3885 = vmul.f32 %v3869, %v3826
    %v3886 = vmul.f32 %v3870, %v3828
    %v3887 = vmul.f32 %v3871, %v3831
    %v3888 = vmul.f32 %v3872, %v3833
    %v3889 = vmul.f32 %v3873, %v3836
    %v3890 = vmul.f32 %v3874, %v3838
    %v3891 = vmul.f32 %v3875, %v3841
    %v3892 = vmul.f32 %v3876, %v3843
    %v3893 = vmul.f32 %v3877, %v3806
    %v3894 = vmul.f32 %v3878, %v3808
    %v3895 = vmul.f32 %v3879, %v3811
    %v3896 = vmul.f32 %v3880, %v3813
    %v3897 = vmul.f32 %v3881, %v3816
    %v3898 = vmul.f32 %v3882, %v3818
    %v3899 = vmul.f32 %v3883, %v3821
    %v3900 = vmul.f32 %v3884, %v3823
    %v3901 = vmul.f32 %v3885, %v3826
    %v3902 = vmul.f32 %v3886, %v3828
    %v3903 = vmul.f32 %v3887, %v3831
    %v3904 = vmul.f32 %v3888, %v3833
    %v3905 = vmul.f32 %v3889, %v3836
    %v3906 = vmul.f32 %v3890, %v3838
    %v3907 = vmul.f32 %v3891, %v3841
    %v3908 = vmul.f32 %v3892, %v3843
    %v3909 = vadd.f32 %v3806, %v3893
    %v3910 = vadd.f32 %v3808, %v3894
    %v3911 = vadd.f32 %v3811, %v3895
    %v3912 = vadd.f32 %v3813, %v3896
    %v3913 = vadd.f32 %v3816, %v3897
    %v3914 = vadd.f32 %v3818, %v3898
    %v3915 = vadd.f32 %v3821, %v3899
    %v3916 = vadd.f32 %v3823, %v3900
    %v3917 = vadd.f32 %v3826, %v3901
    %v3918 = vadd.f32 %v3828, %v3902
    %v3919 = vadd.f32 %v3831, %v3903
    %v3920 = vadd.f32 %v3833, %v3904
    %v3921 = vadd.f32 %v3836, %v3905
    %v3922 = vadd.f32 %v3838, %v3906
    %v3923 = vadd.f32 %v3841, %v3907
    %v3924 = vadd.f32 %v3843, %v3908
    %v3925 = vmul.f32 %v3909, 0.7978846
    %v3926 = vmul.f32 %v3910, 0.7978846
    %v3927 = vmul.f32 %v3911, 0.7978846
    %v3928 = vmul.f32 %v3912, 0.7978846
    %v3929 = vmul.f32 %v3913, 0.7978846
    %v3930 = vmul.f32 %v3914, 0.7978846
    %v3931 = vmul.f32 %v3915, 0.7978846
    %v3932 = vmul.f32 %v3916, 0.7978846
    %v3933 = vmul.f32 %v3917, 0.7978846
    %v3934 = vmul.f32 %v3918, 0.7978846
    %v3935 = vmul.f32 %v3919, 0.7978846
    %v3936 = vmul.f32 %v3920, 0.7978846
    %v3937 = vmul.f32 %v3921, 0.7978846
    %v3938 = vmul.f32 %v3922, 0.7978846
    %v3939 = vmul.f32 %v3923, 0.7978846
    %v3940 = vmul.f32 %v3924, 0.7978846
    %v3941 = vtanh.pop %v3925
    %v3942 = vtanh.pop %v3926
    %v3943 = vtanh.pop %v3927
    %v3944 = vtanh.pop %v3928
    %v3945 = vtanh.pop %v3929
    %v3946 = vtanh.pop %v3930
    %v3947 = vtanh.pop %v3931
    %v3948 = vtanh.pop %v3932
    %v3949 = vtanh.pop %v3933
    %v3950 = vtanh.pop %v3934
    %v3951 = vtanh.pop %v3935
    %v3952 = vtanh.pop %v3936
    %v3953 = vtanh.pop %v3937
    %v3954 = vtanh.pop %v3938
    %v3955 = vtanh.pop %v3939
    %v3956 = vtanh.pop %v3940
    %v3957 = vadd.f32 %v3941, 1.0
    %v3958 = vadd.f32 %v3942, 1.0
    %v3959 = vadd.f32 %v3943, 1.0
    %v3960 = vadd.f32 %v3944, 1.0
    %v3961 = vadd.f32 %v3945, 1.0
    %v3962 = vadd.f32 %v3946, 1.0
    %v3963 = vadd.f32 %v3947, 1.0
    %v3964 = vadd.f32 %v3948, 1.0
    %v3965 = vadd.f32 %v3949, 1.0
    %v3966 = vadd.f32 %v3950, 1.0
    %v3967 = vadd.f32 %v3951, 1.0
    %v3968 = vadd.f32 %v3952, 1.0
    %v3969 = vadd.f32 %v3953, 1.0
    %v3970 = vadd.f32 %v3954, 1.0
    %v3971 = vadd.f32 %v3955, 1.0
    %v3972 = vadd.f32 %v3956, 1.0
    %v3973 = vmul.f32 %v3845, %v3957
    %v3974 = vmul.f32 %v3846, %v3958
    %v3975 = vmul.f32 %v3847, %v3959
    %v3976 = vmul.f32 %v3848, %v3960
    %v3977 = vmul.f32 %v3849, %v3961
    %v3978 = vmul.f32 %v3850, %v3962
    %v3979 = vmul.f32 %v3851, %v3963
    %v3980 = vmul.f32 %v3852, %v3964
    %v3981 = vmul.f32 %v3853, %v3965
    %v3982 = vmul.f32 %v3854, %v3966
    %v3983 = vmul.f32 %v3855, %v3967
    %v3984 = vmul.f32 %v3856, %v3968
    %v3985 = vmul.f32 %v3857, %v3969
    %v3986 = vmul.f32 %v3858, %v3970
    %v3987 = vmul.f32 %v3859, %v3971
    %v3988 = vmul.f32 %v3860, %v3972
    %v3989 = vpack.c.bf16 %v3974, %v3973
    %v3990 = vpack.c.bf16 %v3976, %v3975
    %v3991 = vpack.c.bf16 %v3978, %v3977
    %v3992 = vpack.c.bf16 %v3980, %v3979
    %v3993 = vpack.c.bf16 %v3982, %v3981
    %v3994 = vpack.c.bf16 %v3984, %v3983
    %v3995 = vpack.c.bf16 %v3986, %v3985
    %v3996 = vpack.c.bf16 %v3988, %v3987
    %v3997 = vld [vmem:[#allocation13] sm:$0xf]
    %v3998 = vld [vmem:[#allocation13 + $0x4] sm:$0xf]
    %v3999 = vld [vmem:[#allocation13 + $0x8] sm:$0xf]
    %v4000 = vld [vmem:[#allocation13 + $0xc] sm:$0xf]
    %v4001 = vld [vmem:[#allocation13 + $0x10] sm:$0xf]
    %v4002 = vld [vmem:[#allocation13 + $0x14] sm:$0xf]
    %v4003 = vld [vmem:[#allocation13 + $0x18] sm:$0xf]
    %v4004 = vld [vmem:[#allocation13 + $0x1c] sm:$0xf]
    %v4005 = vld [vmem:[#allocation13 + $0x20] sm:$0xf]
    %v4006 = vld [vmem:[#allocation13 + $0x24] sm:$0xf]
    %v4007 = vld [vmem:[#allocation13 + $0x28] sm:$0xf]
    %v4008 = vld [vmem:[#allocation13 + $0x2c] sm:$0xf]
    %v4009 = vld [vmem:[#allocation13 + $0x30] sm:$0xf]
    %v4010 = vld [vmem:[#allocation13 + $0x34] sm:$0xf]
    %v4011 = vld [vmem:[#allocation13 + $0x38] sm:$0xf]
    %v4012 = vld [vmem:[#allocation13 + $0x3c] sm:$0xf]
    %v4013 = vld [vmem:[%s12] sm:$0x1]
    %v4015 = vperm.slane %v4013, 0
    %v4033 = vunpack.c.l.b16 %v3997
    %v4034 = vunpack.c.l.b16 %v3998
    %v4035 = vunpack.c.l.b16 %v3999
    %v4036 = vunpack.c.l.b16 %v4000
    %v4037 = vunpack.c.l.b16 %v4001
    %v4038 = vunpack.c.l.b16 %v4002
    %v4039 = vunpack.c.l.b16 %v4003
    %v4040 = vunpack.c.l.b16 %v4004
    %v4041 = vunpack.c.l.b16 %v4005
    %v4042 = vunpack.c.l.b16 %v4006
    %v4043 = vunpack.c.l.b16 %v4007
    %v4044 = vunpack.c.l.b16 %v4008
    %v4045 = vunpack.c.l.b16 %v4009
    %v4046 = vunpack.c.l.b16 %v4010
    %v4047 = vunpack.c.l.b16 %v4011
    %v4048 = vunpack.c.l.b16 %v4012
    %v4049 = vpack.c.b16 %v4034, %v4033
    %v4050 = vpack.c.b16 %v4036, %v4035
    %v4051 = vpack.c.b16 %v4038, %v4037
    %v4052 = vpack.c.b16 %v4040, %v4039
    %v4053 = vpack.c.b16 %v4042, %v4041
    %v4054 = vpack.c.b16 %v4044, %v4043
    %v4055 = vpack.c.b16 %v4046, %v4045
    %v4056 = vpack.c.b16 %v4048, %v4047
    %4065 = vmatpush.bf16.msra.mxu0 %v4056
    %4066 = vmatpush.bf16.msra.mxu0 %v4055
    %4067 = vmatpush.bf16.msra.mxu0 %v4054
    %4068 = vmatpush.bf16.msra.mxu0 %v4053
    %4069 = vmatpush.bf16.msra.mxu0 %v4052
    %4070 = vmatpush.bf16.msra.mxu0 %v4051
    %4071 = vmatpush.bf16.msra.mxu0 %v4050
    %4072 = vmatpush.bf16.msra.mxu0 %v4049
    %4073 = vmatmul.bf16.gmra.mxu0 %v3989
    %v4074 = vpop.f32.mrf.mxu0
    %v4075 = vadd.f32 %v4015, %v4074
    %v4076 = vpop.f32.mrf.mxu0
    %v4077 = vadd.f32 %v4015, %v4076
    %4078 = vmatmul.bf16.gmra.mxu0 %v3990
    %v4079 = vpop.f32.mrf.mxu0
    %v4080 = vadd.f32 %v4015, %v4079
    %v4081 = vpop.f32.mrf.mxu0
    %v4082 = vadd.f32 %v4015, %v4081
    %4083 = vmatmul.bf16.gmra.mxu0 %v3991
    %v4084 = vpop.f32.mrf.mxu0
    %v4085 = vadd.f32 %v4015, %v4084
    %v4086 = vpop.f32.mrf.mxu0
    %v4087 = vadd.f32 %v4015, %v4086
    %4088 = vmatmul.bf16.gmra.mxu0 %v3992
    %v4089 = vpop.f32.mrf.mxu0
    %v4090 = vadd.f32 %v4015, %v4089
    %v4091 = vpop.f32.mrf.mxu0
    %v4092 = vadd.f32 %v4015, %v4091
    %4093 = vmatmul.bf16.gmra.mxu0 %v3993
    %v4094 = vpop.f32.mrf.mxu0
    %v4095 = vadd.f32 %v4015, %v4094
    %v4096 = vpop.f32.mrf.mxu0
    %v4097 = vadd.f32 %v4015, %v4096
    %4098 = vmatmul.bf16.gmra.mxu0 %v3994
    %v4099 = vpop.f32.mrf.mxu0
    %v4100 = vadd.f32 %v4015, %v4099
    %v4101 = vpop.f32.mrf.mxu0
    %v4102 = vadd.f32 %v4015, %v4101
    %4103 = vmatmul.bf16.gmra.mxu0 %v3995
    %v4104 = vpop.f32.mrf.mxu0
    %v4105 = vadd.f32 %v4015, %v4104
    %v4106 = vpop.f32.mrf.mxu0
    %v4107 = vadd.f32 %v4015, %v4106
    %4108 = vmatmul.bf16.gmra.mxu0 %v3996
    %v4109 = vpop.f32.mrf.mxu0
    %v4110 = vadd.f32 %v4015, %v4109
    %v4111 = vpop.f32.mrf.mxu0
    %v4112 = vadd.f32 %v4015, %v4111
    %4113 = vdwg.mxu0
    %v4114 = vadd.f32 %v4075, %v3664
    %v4115 = vadd.f32 %v4077, %v3665
    %v4116 = vadd.f32 %v4080, %v3666
    %v4117 = vadd.f32 %v4082, %v3667
    %v4118 = vadd.f32 %v4085, %v3668
    %v4119 = vadd.f32 %v4087, %v3669
    %v4120 = vadd.f32 %v4090, %v3670
    %v4121 = vadd.f32 %v4092, %v3671
    %v4122 = vadd.f32 %v4095, %v3672
    %v4123 = vadd.f32 %v4097, %v3673
    %v4124 = vadd.f32 %v4100, %v3674
    %v4125 = vadd.f32 %v4102, %v3675
    %v4126 = vadd.f32 %v4105, %v3676
    %v4127 = vadd.f32 %v4107, %v3677
    %v4128 = vadd.f32 %v4110, %v3678
    %v4129 = vadd.f32 %v4112, %v3679
    %4130 = vst [vmem:[#allocation14] sm:$0xff] %v4114
    %4131 = vst [vmem:[#allocation14 + $0x8] sm:$0xff] %v4115
    %4132 = vst [vmem:[#allocation14 + $0x10] sm:$0xff] %v4116
    %4133 = vst [vmem:[#allocation14 + $0x18] sm:$0xff] %v4117
    %4134 = vst [vmem:[#allocation14 + $0x20] sm:$0xff] %v4118
    %4135 = vst [vmem:[#allocation14 + $0x28] sm:$0xff] %v4119
    %4136 = vst [vmem:[#allocation14 + $0x30] sm:$0xff] %v4120
    %4137 = vst [vmem:[#allocation14 + $0x38] sm:$0xff] %v4121
    %4138 = vst [vmem:[#allocation14 + $0x40] sm:$0xff] %v4122
    %4139 = vst [vmem:[#allocation14 + $0x48] sm:$0xff] %v4123
    %4140 = vst [vmem:[#allocation14 + $0x50] sm:$0xff] %v4124
    %4141 = vst [vmem:[#allocation14 + $0x58] sm:$0xff] %v4125
    %4142 = vst [vmem:[#allocation14 + $0x60] sm:$0xff] %v4126
    %4143 = vst [vmem:[#allocation14 + $0x68] sm:$0xff] %v4127
    %4144 = vst [vmem:[#allocation14 + $0x70] sm:$0xff] %v4128
    %4145 = vst [vmem:[#allocation14 + $0x78] sm:$0xff] %v4129
    // Predicated region
    $region82: #{tpu_custom_call.1} parent=1 // pred_check
      _
    $region83: #{tpu_custom_call.1} parent=1 // pred_check_branch
      %4147 = sbr.rel (0) target = $region85
    $region84: #{tpu_custom_call.1} parent=1 // pred_region
      %4149 = vsyncadd [#allocation4], 0
      %s4150 = sshll.u32 [#allocation14], 4
      %s4151 = int_to_ptr.vmem [resolvable:$true] %s4150
      %s4152 = sshll.u32 %s13, 4
      %s4153 = int_to_ptr.hbm [resolvable:$true] %s4152
      %4158 = dma.vmem_to_hbm [thread:$0]  %s4151, 2048, %s4153, [#allocation4], 128, 128, 8
    $region85: #{tpu_custom_call.1} parent=1 // pred_fallthru
      _
    // Predicated region
    $region86: #{tpu_custom_call.1} parent=1 // pred_check
      _
    $region87: #{tpu_custom_call.1} parent=1 // pred_check_branch
      %4160 = sbr.rel (0) target = $region89
    $region88: #{tpu_custom_call.1} parent=1 // pred_region
      %4162 = dma.done [#allocation4], 2048
    $region89: #{tpu_custom_call.1} parent=1 // pred_fallthru
      _
    %4163 = vsyncpa [#allocation3], 1
    %4164 = vsyncpa [#allocation6], 1
    %4165 = vsyncpa [#allocation9], 1
    %4166 = vsyncpa [#allocation12], 1
    %4167 = vsyncpa [#allocation4], 1

</llo_original>
